<compile_context>
chip_gen: v6e
topology: v6e:2x2x1
jax: 0.10.0
libtpu: 0.0.40
codegen_flags: <defaults>
</compile_context>

<pallas_src>
import functools

import jax
import jax.numpy as jnp
from jax.experimental import pallas as pl
from jax.experimental.pallas import tpu as pltpu

DTYPE = jnp.float32
BN_EPS = 1e-5


# ------------------------------ fused RefineUp kernel ------------------------------
def _refine_up_kernel(*refs, H, W, c_in, c_out, n_mid, upsample):
    f32, bf16 = jnp.float32, jnp.bfloat16
    if upsample:
        (x_ref, add_ref, w_mid_ref, b_mid_ref, w_last_ref, b_last_ref,
         w_up_e_ref, w_up_o_ref, b_up_ref, up_ref, y_ref) = refs
    else:
        (x_ref, add_ref, w_mid_ref, b_mid_ref, w_last_ref, b_last_ref, y_ref) = refs

    # --- small zero-padded spatial shifts (values, no scratch) ---
    def shift_w_minus(v):          # out[h, w] = v[h, w-1], zero at w = 0
        z = jnp.zeros((H, 1, v.shape[-1]), v.dtype)
        return jnp.concatenate([z, v[:, :W - 1, :]], axis=1)

    def shift_w_plus(v):           # out[h, w] = v[h, w+1], zero at w = W-1
        z = jnp.zeros((H, 1, v.shape[-1]), v.dtype)
        return jnp.concatenate([v[:, 1:, :], z], axis=1)

    def shift_h_minus(v):          # out[h, w] = v[h-1, w], zero at h = 0
        z = jnp.zeros((1, W, v.shape[-1]), v.dtype)
        return jnp.concatenate([z, v[:H - 1, :, :]], axis=0)

    def shift_h_plus(v):           # out[h, w] = v[h+1, w], zero at h = H-1
        z = jnp.zeros((1, W, v.shape[-1]), v.dtype)
        return jnp.concatenate([v[1:, :, :], z], axis=0)

    def add_lead_channels(v, add):     # v[..., :F] += add   (in f32)
        c, fc = v.shape[-1], add.shape[-1]
        if fc == c:
            return v + add
        pad = jnp.zeros((H, W, c - fc), v.dtype)
        return v + jnp.concatenate([add, pad], axis=-1)

    def conv3x3(v, w_row_block, bias, relu, co):
        # 'same' 3x3 conv: column taps packed on the contraction axis (K = 3*ci, two
        # sublane shifts of the bf16 input), one MXU matmul per kernel row kh with f32
        # accumulation; row taps are cheap leading-dim shifts of the f32 outputs.
        ci = v.shape[-1]
        vb = v.astype(bf16)
        xcat = jnp.concatenate([shift_w_minus(vb), vb, shift_w_plus(vb)], axis=-1)
        xcat = xcat.reshape(H * W, 3 * ci)
        acc = None
        for kh in range(3):
            p = jnp.dot(xcat, w_row_block(kh),
                        preferred_element_type=f32).reshape(H, W, co)
            if kh == 0:
                p = shift_h_minus(p)       # out[h] += p[h-1]
            elif kh == 2:
                p = shift_h_plus(p)        # out[h] += p[h+1]
            acc = p if acc is None else acc + p
        acc = acc + bias.reshape(1, 1, co)
        return jnp.maximum(acc, 0.0) if relu else acc

    add = add_ref[0].astype(f32)                                   # (H, W, F)
    h = add_lead_channels(x_ref[0].astype(f32), add)               # input_feats[:, :F] += add
    for layer in range(n_mid):
        h = conv3x3(
            h,
            lambda kh, l=layer: w_mid_ref[l, kh * 3 * c_in:(kh + 1) * 3 * c_in, :],
            b_mid_ref[layer], relu=True, co=c_in)
    y = conv3x3(h, lambda kh: w_last_ref[kh * 3 * c_in:(kh + 1) * 3 * c_in, :],
                b_last_ref[...], relu=False, co=c_out)
    y = add_lead_channels(y, add)                                  # y[:, :F] += add
    y_ref[0] = y.astype(y_ref.dtype)

    if upsample:
        # ConvTranspose2d(k=3, s=2, p=1, output_padding=1) fused in the epilogue while y
        # is still VMEM-resident.  Two lane-dense matmuls (column phase packed on lanes,
        # last dim 2*c_out), one per output-row phase; row phase is a separate output dim
        # so the wrapper's final (2H, 2W, c_out) reshape is contiguous and free.
        yb = y.astype(bf16)
        y_w = shift_w_plus(yb)             # y[r, c+1]
        y_h = shift_h_plus(yb)             # y[r+1, c]
        y_hw = shift_h_plus(y_w)           # y[r+1, c+1]
        b_up = b_up_ref[...].reshape(1, 1, 2 * c_out)
        cat_e = jnp.concatenate([yb, y_w], axis=-1).reshape(H * W, 2 * c_out)
        p_e = jnp.dot(cat_e, w_up_e_ref[...],
                      preferred_element_type=f32).reshape(H, W, 2 * c_out) + b_up
        cat_o = jnp.concatenate([yb, y_w, y_h, y_hw], axis=-1).reshape(H * W, 4 * c_out)
        p_o = jnp.dot(cat_o, w_up_o_ref[...],
                      preferred_element_type=f32).reshape(H, W, 2 * c_out) + b_up
        up_ref[0] = jnp.stack([p_e, p_o], axis=1).astype(up_ref.dtype)   # (H, 2, W, 2*c_out)


# --------------------------------- forward wrapper ---------------------------------
@functools.partial(jax.jit, static_argnames=("feature_chns", "upsample"))
def refine_up_forward(kparams, input_feats_nhwc, additional_feats_nhwc, *,
                      feature_chns, upsample=True):
    """NHWC in / NHWC out, mirroring RefineUp.forward -> (refined_feats, additional_feats_)."""
    N, H, W, c_in = input_feats_nhwc.shape
    c_out = kparams["w_last"].shape[-1]
    n_mid = kparams["w_mid"].shape[0]
    F = feature_chns
    add_f = additional_feats_nhwc[..., :F]            # (N,H,W,F): no zero-padded concat

    kern = functools.partial(_refine_up_kernel, H=H, W=W, c_in=c_in, c_out=c_out,
                             n_mid=n_mid, upsample=upsample)
    in_specs = [
        pl.BlockSpec((1, H, W, c_in), lambda n: (n, 0, 0, 0)),
        pl.BlockSpec((1, H, W, F), lambda n: (n, 0, 0, 0)),
        pl.BlockSpec((n_mid, 9 * c_in, c_in), lambda n: (0, 0, 0)),
        pl.BlockSpec((n_mid, 1, c_in), lambda n: (0, 0, 0)),
        pl.BlockSpec((9 * c_in, c_out), lambda n: (0, 0)),
        pl.BlockSpec((1, c_out), lambda n: (0, 0)),
    ]
    args = [input_feats_nhwc, add_f, kparams["w_mid"], kparams["b_mid"],
            kparams["w_last"], kparams["b_last"]]
    if upsample:
        in_specs += [
            pl.BlockSpec((2 * c_out, 2 * c_out), lambda n: (0, 0)),
            pl.BlockSpec((4 * c_out, 2 * c_out), lambda n: (0, 0)),
            pl.BlockSpec((1, 2 * c_out), lambda n: (0, 0)),
        ]
        args += [kparams["w_up_e"], kparams["w_up_o"], kparams["b_up"]]
        out_shape = (jax.ShapeDtypeStruct((N, H, 2, W, 2 * c_out), input_feats_nhwc.dtype),
                     jax.ShapeDtypeStruct((N, H, W, c_out), input_feats_nhwc.dtype))
        out_specs = (pl.BlockSpec((1, H, 2, W, 2 * c_out), lambda n: (n, 0, 0, 0, 0)),
                     pl.BlockSpec((1, H, W, c_out), lambda n: (n, 0, 0, 0)))
    else:
        out_shape = jax.ShapeDtypeStruct((N, H, W, c_out), input_feats_nhwc.dtype)
        out_specs = pl.BlockSpec((1, H, W, c_out), lambda n: (n, 0, 0, 0))

    out = pl.pallas_call(
        kern, out_shape=out_shape, grid=(N,), in_specs=in_specs, out_specs=out_specs,
        compiler_params=pltpu.CompilerParams(dimension_semantics=("parallel",)),
    )(*args)

    if upsample:
        up_packed, y = out
        refined = up_packed.reshape(N, 2 * H, 2 * W, c_out)   # contiguous -> free reshape
        return refined, y
    y = out
    return y, y


# ----------------------------- parameter preparation -----------------------------
def init_refine_up_params(key, in_chns, out_chns, depth=3, upsample=True):
    """PyTorch-layout params: Conv2d (OIHW)+bias, BatchNorm2d stats/affine, ConvTranspose2d (IOHW)+bias."""
    assert depth >= 2  # TODO(synk): depth == 1 (no intermediate ConvLayer) is not wired up here.
    keys = iter(jax.random.split(key, 8 * depth + 8))

    def conv_layer(ci, co):
        return {
            "w": ((9 * ci) ** -0.5) * jax.random.normal(next(keys), (co, ci, 3, 3), DTYPE),
            "b": 0.1 * jax.random.normal(next(keys), (co,), DTYPE),
            "bn_gamma": 1.0 + 0.1 * jax.random.normal(next(keys), (co,), DTYPE),
            "bn_beta": 0.05 * jax.random.normal(next(keys), (co,), DTYPE),
            "bn_mean": 0.05 * jax.random.normal(next(keys), (co,), DTYPE),
            "bn_var": jax.random.uniform(next(keys), (co,), DTYPE, 0.5, 1.5),
        }

    convs = [conv_layer(in_chns, in_chns) for _ in range(depth - 1)]
    convs.append(conv_layer(in_chns, out_chns))
    params = {"convs": convs}
    if upsample:
        params["up_w"] = ((9 * out_chns) ** -0.5) * jax.random.normal(
            next(keys), (out_chns, out_chns, 3, 3), DTYPE)           # (Cin, Cout, kh, kw)
        params["up_b"] = 0.1 * jax.random.normal(next(keys), (out_chns,), DTYPE)
    return params


def fold_params(params, upsample=True):
    """Fold eval-mode BatchNorm into conv weight/bias; re-lay-out weights as bf16 MXU operands."""
    folded_w, folded_b = [], []
    for layer in params["convs"]:
        scale = layer["bn_gamma"] / jnp.sqrt(layer["bn_var"] + BN_EPS)        # (Co,)
        wf = layer["w"] * scale[:, None, None, None]                          # (Co,Ci,3,3)
        bf = (layer["b"] - layer["bn_mean"]) * scale + layer["bn_beta"]       # (Co,)
        ci, co = wf.shape[1], wf.shape[0]
        # rows ordered (kh, kw, ci): each kh block is a (3*ci, co) operand for the kernel.
        folded_w.append(jnp.transpose(wf, (2, 3, 1, 0)).reshape(9 * ci, co).astype(jnp.bfloat16))
        folded_b.append(bf.reshape(1, co).astype(jnp.float32))
    k = {
        "w_mid": jnp.stack(folded_w[:-1], axis=0),
        "b_mid": jnp.stack(folded_b[:-1], axis=0),
        "w_last": folded_w[-1],
        "b_last": folded_b[-1],
    }
    if upsample and "up_w" in params:
        wt = params["up_w"]                                                   # (Ci, Co, 3, 3)
        wk = [[wt[:, :, kh, kw] for kw in range(3)] for kh in range(3)]       # each (Ci, Co)
        z = jnp.zeros_like(wk[0][0])
        # Even output rows: operand [y | y(r,c+1)]; lanes [even col | odd col].
        w_e = jnp.concatenate([
            jnp.concatenate([wk[1][1], wk[1][2]], axis=1),
            jnp.concatenate([z,        wk[1][0]], axis=1)], axis=0)           # (2Ci, 2Co)
        # Odd output rows: operand [y | y(r,c+1) | y(r+1,c) | y(r+1,c+1)].
        w_o = jnp.concatenate([
            jnp.concatenate([wk[2][1], wk[2][2]], axis=1),
            jnp.concatenate([z,        wk[2][0]], axis=1),
            jnp.concatenate([wk[0][1], wk[0][2]], axis=1),
            jnp.concatenate([z,        wk[0][0]], axis=1)], axis=0)           # (4Ci, 2Co)
        k["w_up_e"] = w_e.astype(jnp.bfloat16)
        k["w_up_o"] = w_o.astype(jnp.bfloat16)
        k["b_up"] = jnp.tile(params["up_b"], 2).reshape(1, -1).astype(jnp.float32)
    return k


# ------------------------- pure-JAX reference (correctness check) -------------------------
def _ref_forward(params, input_feats, additional_feats, *, feature_chns, upsample=True):
    hp = jax.lax.Precision.HIGHEST
    F = feature_chns
    h = input_feats.at[:, :F].add(additional_feats[:, :F])
    n_layers = len(params["convs"])
    for i, layer in enumerate(params["convs"]):
        h = jax.lax.conv_general_dilated(
            h, layer["w"], (1, 1), ((1, 1), (1, 1)),
            dimension_numbers=("NCHW", "OIHW", "NCHW"), precision=hp)
        h = h + layer["b"][None, :, None, None]
        inv = layer["bn_gamma"] / jnp.sqrt(layer["bn_var"] + BN_EPS)
        h = (h - layer["bn_mean"][None, :, None, None]) * inv[None, :, None, None] \
            + layer["bn_beta"][None, :, None, None]
        if i < n_layers - 1:
            h = jnp.maximum(h, 0.0)
    y = h.at[:, :F].add(additional_feats[:, :F])
    if not upsample:
        return y, y
    wt = params["up_w"]
    kmat = jnp.transpose(wt[:, :, ::-1, ::-1], (1, 0, 2, 3))                  # OIHW, flipped
    up = jax.lax.conv_general_dilated(
        y, kmat, (1, 1), ((1, 2), (1, 2)), lhs_dilation=(2, 2),
        dimension_numbers=("NCHW", "OIHW", "NCHW"), precision=hp)
    up = up + params["up_b"][None, :, None, None]
    return up, y


# ------------------------------------ main ------------------------------------
if __name__ == "__main__":
    IN_CHNS, OUT_CHNS, FEAT_CHNS, DEPTH = 64, 64, 32, 3
    N, H, W = 2, 16, 16

    key = jax.random.PRNGKey(0)
    k_in, k_add, k_par = jax.random.split(key, 3)
    input_feats = jax.random.normal(k_in, (N, IN_CHNS, H, W), DTYPE)          # NCHW (PyTorch layout)
    additional_feats = jax.random.normal(k_add, (N, IN_CHNS, H, W), DTYPE)

    params = init_refine_up_params(k_par, IN_CHNS, OUT_CHNS, depth=DEPTH, upsample=True)
    kparams = fold_params(params, upsample=True)

    # The fused kernel is NHWC-native (perf feedback: keep the surrounding model NHWC);
    # convert once here only because the PyTorch reference spec is NCHW.
    x_nhwc = jnp.transpose(input_feats, (0, 2, 3, 1))
    add_nhwc = jnp.transpose(additional_feats, (0, 2, 3, 1))

    refined, additional_out = refine_up_forward(
        kparams, x_nhwc, add_nhwc, feature_chns=FEAT_CHNS, upsample=True)
    jax.block_until_ready((refined, additional_out))

    assert refined.shape == (N, 2 * H, 2 * W, OUT_CHNS)
    assert additional_out.shape == (N, H, W, OUT_CHNS)

    ref_refined, ref_additional = _ref_forward(
        params, input_feats, additional_feats, feature_chns=FEAT_CHNS, upsample=True)
    ref_refined = jnp.transpose(ref_refined, (0, 2, 3, 1))
    ref_additional = jnp.transpose(ref_additional, (0, 2, 3, 1))

    def _errs(a, b):
        max_abs = float(jnp.max(jnp.abs(a - b)))
        rel = float(jnp.linalg.norm((a - b).ravel()) / jnp.linalg.norm(b.ravel()))
        return max_abs, rel

    max_r, rel_r = _errs(refined, ref_refined)
    max_a, rel_a = _errs(additional_out, ref_additional)
    # bf16 MXU operands (per the perf feedback) dominate the numerical difference against
    # the f32 HIGHEST-precision reference; structural errors would be O(1) absolute and
    # O(1) relative, far above these bounds.
    assert max_r < 0.25 and max_a < 0.25, (max_r, max_a)
    assert rel_r < 3e-2 and rel_a < 3e-2, (rel_r, rel_a)
    print("KERNEL_OK")
</pallas_src>

<mosaic_0001>
module attributes {stable_mosaic.version = 11 : i64} {
  func.func @_refine_up_kernel(%arg0: i32, %arg1: memref<1x16x16x64xf32, #tpu.memory_space<vmem>>, %arg2: memref<1x16x16x32xf32, #tpu.memory_space<vmem>>, %arg3: memref<2x576x64xbf16, #tpu.memory_space<vmem>>, %arg4: memref<2x1x64xf32, #tpu.memory_space<vmem>>, %arg5: memref<576x64xbf16, #tpu.memory_space<vmem>>, %arg6: memref<1x64xf32, #tpu.memory_space<vmem>>, %arg7: memref<128x128xbf16, #tpu.memory_space<vmem>>, %arg8: memref<256x128xbf16, #tpu.memory_space<vmem>>, %arg9: memref<1x128xf32, #tpu.memory_space<vmem>>, %arg10: memref<1x16x2x16x128xf32, #tpu.memory_space<vmem>>, %arg11: memref<1x16x16x64xf32, #tpu.memory_space<vmem>>) attributes {dimension_semantics = [#tpu.dimension_semantics<parallel>], iteration_bounds = array<i64: 2>, scalar_prefetch = 0 : i64, scratch_operands = 0 : i64, tpu.core_type = #tpu.core_type<tc>, window_params = [{transform_indices = @transform_0, window_bounds = array<i64: 1, 16, 16, 64>}, {transform_indices = @transform_1, window_bounds = array<i64: 1, 16, 16, 32>}, {pipeline_mode = #tpu.pipeline_mode<synchronous>, transform_indices = @transform_2, window_bounds = array<i64: 2, 576, 64>}, {pipeline_mode = #tpu.pipeline_mode<synchronous>, transform_indices = @transform_3, window_bounds = array<i64: 2, 1, 64>}, {pipeline_mode = #tpu.pipeline_mode<synchronous>, transform_indices = @transform_4, window_bounds = array<i64: 576, 64>}, {pipeline_mode = #tpu.pipeline_mode<synchronous>, transform_indices = @transform_5, window_bounds = array<i64: 1, 64>}, {pipeline_mode = #tpu.pipeline_mode<synchronous>, transform_indices = @transform_6, window_bounds = array<i64: 128, 128>}, {pipeline_mode = #tpu.pipeline_mode<synchronous>, transform_indices = @transform_7, window_bounds = array<i64: 256, 128>}, {pipeline_mode = #tpu.pipeline_mode<synchronous>, transform_indices = @transform_8, window_bounds = array<i64: 1, 128>}, {transform_indices = @transform_9, window_bounds = array<i64: 1, 16, 2, 16, 128>}, {transform_indices = @transform_10, window_bounds = array<i64: 1, 16, 16, 64>}]} {
    %c0 = arith.constant 0 : index
    %c0_0 = arith.constant 0 : index
    %c0_1 = arith.constant 0 : index
    %c0_2 = arith.constant 0 : index
    %0 = vector.load %arg2[%c0, %c0_0, %c0_1, %c0_2] : memref<1x16x16x32xf32, #tpu.memory_space<vmem>>, vector<1x16x16x32xf32>
    %1 = vector.shape_cast %0 : vector<1x16x16x32xf32> to vector<16x16x32xf32>
    %c0_3 = arith.constant 0 : index
    %c0_4 = arith.constant 0 : index
    %c0_5 = arith.constant 0 : index
    %c0_6 = arith.constant 0 : index
    %2 = vector.load %arg1[%c0_3, %c0_4, %c0_5, %c0_6] : memref<1x16x16x64xf32, #tpu.memory_space<vmem>>, vector<1x16x16x64xf32>
    %3 = vector.shape_cast %2 : vector<1x16x16x64xf32> to vector<16x16x64xf32>
    %cst = arith.constant 0.000000e+00 : f32
    %4 = vector.broadcast %cst : f32 to vector<16x16x32xf32>
    %5 = tpu.concatenate %1, %4 in 2 : vector<16x16x32xf32>, vector<16x16x32xf32> -> vector<16x16x64xf32>
    %6 = arith.addf %3, %5 : vector<16x16x64xf32>
    %c0_7 = arith.constant 0 : index
    %c0_8 = arith.constant 0 : index
    %c0_9 = arith.constant 0 : index
    %7 = vector.load %arg4[%c0_7, %c0_8, %c0_9] : memref<2x1x64xf32, #tpu.memory_space<vmem>>, vector<1x1x64xf32>
    %8 = vector.shape_cast %7 : vector<1x1x64xf32> to vector<1x64xf32>
    %9 = arith.truncf %6 : vector<16x16x64xf32> to vector<16x16x64xbf16>
    %cst_10 = arith.constant 0.000000e+00 : bf16
    %10 = vector.broadcast %cst_10 : bf16 to vector<16x1x64xbf16>
    %11 = vector.extract_strided_slice %9 {offsets = [0, 0, 0], sizes = [16, 15, 64], strides = [1, 1, 1]} : vector<16x16x64xbf16> to vector<16x15x64xbf16>
    %12 = tpu.concatenate %10, %11 in 1 : vector<16x1x64xbf16>, vector<16x15x64xbf16> -> vector<16x16x64xbf16>
    %cst_11 = arith.constant 0.000000e+00 : bf16
    %13 = vector.broadcast %cst_11 : bf16 to vector<16x1x64xbf16>
    %14 = vector.extract_strided_slice %9 {offsets = [0, 1, 0], sizes = [16, 15, 64], strides = [1, 1, 1]} : vector<16x16x64xbf16> to vector<16x15x64xbf16>
    %15 = tpu.concatenate %14, %13 in 1 : vector<16x15x64xbf16>, vector<16x1x64xbf16> -> vector<16x16x64xbf16>
    %16 = tpu.concatenate %12, %9, %15 in 2 : vector<16x16x64xbf16>, vector<16x16x64xbf16>, vector<16x16x64xbf16> -> vector<16x16x192xbf16>
    %17 = vector.shape_cast %16 : vector<16x16x192xbf16> to vector<256x192xbf16>
    %c0_12 = arith.constant 0 : index
    %c0_13 = arith.constant 0 : index
    %c0_14 = arith.constant 0 : index
    %18 = vector.load %arg3[%c0_12, %c0_13, %c0_14] : memref<2x576x64xbf16, #tpu.memory_space<vmem>>, vector<1x192x64xbf16>
    %19 = vector.shape_cast %18 : vector<1x192x64xbf16> to vector<192x64xbf16>
    %cst_15 = arith.constant dense<0.000000e+00> : vector<256x64xf32>
    %20 = tpu.matmul %17, %19, %cst_15 {dimension_numbers = #tpu.dot_dimension_numbers<[1], [0], [0], [1], [0, 0, 1, 1], [], []>} : vector<256x192xbf16>, vector<192x64xbf16>, vector<256x64xf32> -> vector<256x64xf32>
    %21 = vector.shape_cast %20 : vector<256x64xf32> to vector<16x16x64xf32>
    %cst_16 = arith.constant 0.000000e+00 : f32
    %22 = vector.broadcast %cst_16 : f32 to vector<1x16x64xf32>
    %23 = vector.extract_strided_slice %21 {offsets = [0, 0, 0], sizes = [15, 16, 64], strides = [1, 1, 1]} : vector<16x16x64xf32> to vector<15x16x64xf32>
    %24 = tpu.concatenate %22, %23 in 0 : vector<1x16x64xf32>, vector<15x16x64xf32> -> vector<16x16x64xf32>
    %c0_17 = arith.constant 0 : index
    %c192 = arith.constant 192 : index
    %c0_18 = arith.constant 0 : index
    %25 = vector.load %arg3[%c0_17, %c192, %c0_18] : memref<2x576x64xbf16, #tpu.memory_space<vmem>>, vector<1x192x64xbf16>
    %26 = vector.shape_cast %25 : vector<1x192x64xbf16> to vector<192x64xbf16>
    %cst_19 = arith.constant dense<0.000000e+00> : vector<256x64xf32>
    %27 = tpu.matmul %17, %26, %cst_19 {dimension_numbers = #tpu.dot_dimension_numbers<[1], [0], [0], [1], [0, 0, 1, 1], [], []>} : vector<256x192xbf16>, vector<192x64xbf16>, vector<256x64xf32> -> vector<256x64xf32>
    %28 = vector.shape_cast %27 : vector<256x64xf32> to vector<16x16x64xf32>
    %29 = arith.addf %24, %28 : vector<16x16x64xf32>
    %c0_20 = arith.constant 0 : index
    %c384 = arith.constant 384 : index
    %c0_21 = arith.constant 0 : index
    %30 = vector.load %arg3[%c0_20, %c384, %c0_21] : memref<2x576x64xbf16, #tpu.memory_space<vmem>>, vector<1x192x64xbf16>
    %31 = vector.shape_cast %30 : vector<1x192x64xbf16> to vector<192x64xbf16>
    %cst_22 = arith.constant dense<0.000000e+00> : vector<256x64xf32>
    %32 = tpu.matmul %17, %31, %cst_22 {dimension_numbers = #tpu.dot_dimension_numbers<[1], [0], [0], [1], [0, 0, 1, 1], [], []>} : vector<256x192xbf16>, vector<192x64xbf16>, vector<256x64xf32> -> vector<256x64xf32>
    %33 = vector.shape_cast %32 : vector<256x64xf32> to vector<16x16x64xf32>
    %cst_23 = arith.constant 0.000000e+00 : f32
    %34 = vector.broadcast %cst_23 : f32 to vector<1x16x64xf32>
    %35 = vector.extract_strided_slice %33 {offsets = [1, 0, 0], sizes = [15, 16, 64], strides = [1, 1, 1]} : vector<16x16x64xf32> to vector<15x16x64xf32>
    %36 = tpu.concatenate %35, %34 in 0 : vector<15x16x64xf32>, vector<1x16x64xf32> -> vector<16x16x64xf32>
    %37 = arith.addf %29, %36 : vector<16x16x64xf32>
    %38 = vector.shape_cast %8 : vector<1x64xf32> to vector<1x1x64xf32>
    %39 = vector.broadcast %38 : vector<1x1x64xf32> to vector<16x16x64xf32>
    %40 = arith.addf %37, %39 : vector<16x16x64xf32>
    %cst_24 = arith.constant 0.000000e+00 : f32
    %41 = vector.broadcast %cst_24 : f32 to vector<16x16x64xf32>
    %42 = arith.maximumf %40, %41 : vector<16x16x64xf32>
    %c1 = arith.constant 1 : index
    %c0_25 = arith.constant 0 : index
    %c0_26 = arith.constant 0 : index
    %43 = vector.load %arg4[%c1, %c0_25, %c0_26] : memref<2x1x64xf32, #tpu.memory_space<vmem>>, vector<1x1x64xf32>
    %44 = vector.shape_cast %43 : vector<1x1x64xf32> to vector<1x64xf32>
    %45 = arith.truncf %42 : vector<16x16x64xf32> to vector<16x16x64xbf16>
    %cst_27 = arith.constant 0.000000e+00 : bf16
    %46 = vector.broadcast %cst_27 : bf16 to vector<16x1x64xbf16>
    %47 = vector.extract_strided_slice %45 {offsets = [0, 0, 0], sizes = [16, 15, 64], strides = [1, 1, 1]} : vector<16x16x64xbf16> to vector<16x15x64xbf16>
    %48 = tpu.concatenate %46, %47 in 1 : vector<16x1x64xbf16>, vector<16x15x64xbf16> -> vector<16x16x64xbf16>
    %cst_28 = arith.constant 0.000000e+00 : bf16
    %49 = vector.broadcast %cst_28 : bf16 to vector<16x1x64xbf16>
    %50 = vector.extract_strided_slice %45 {offsets = [0, 1, 0], sizes = [16, 15, 64], strides = [1, 1, 1]} : vector<16x16x64xbf16> to vector<16x15x64xbf16>
    %51 = tpu.concatenate %50, %49 in 1 : vector<16x15x64xbf16>, vector<16x1x64xbf16> -> vector<16x16x64xbf16>
    %52 = tpu.concatenate %48, %45, %51 in 2 : vector<16x16x64xbf16>, vector<16x16x64xbf16>, vector<16x16x64xbf16> -> vector<16x16x192xbf16>
    %53 = vector.shape_cast %52 : vector<16x16x192xbf16> to vector<256x192xbf16>
    %c1_29 = arith.constant 1 : index
    %c0_30 = arith.constant 0 : index
    %c0_31 = arith.constant 0 : index
    %54 = vector.load %arg3[%c1_29, %c0_30, %c0_31] : memref<2x576x64xbf16, #tpu.memory_space<vmem>>, vector<1x192x64xbf16>
    %55 = vector.shape_cast %54 : vector<1x192x64xbf16> to vector<192x64xbf16>
    %cst_32 = arith.constant dense<0.000000e+00> : vector<256x64xf32>
    %56 = tpu.matmul %53, %55, %cst_32 {dimension_numbers = #tpu.dot_dimension_numbers<[1], [0], [0], [1], [0, 0, 1, 1], [], []>} : vector<256x192xbf16>, vector<192x64xbf16>, vector<256x64xf32> -> vector<256x64xf32>
    %57 = vector.shape_cast %56 : vector<256x64xf32> to vector<16x16x64xf32>
    %cst_33 = arith.constant 0.000000e+00 : f32
    %58 = vector.broadcast %cst_33 : f32 to vector<1x16x64xf32>
    %59 = vector.extract_strided_slice %57 {offsets = [0, 0, 0], sizes = [15, 16, 64], strides = [1, 1, 1]} : vector<16x16x64xf32> to vector<15x16x64xf32>
    %60 = tpu.concatenate %58, %59 in 0 : vector<1x16x64xf32>, vector<15x16x64xf32> -> vector<16x16x64xf32>
    %c1_34 = arith.constant 1 : index
    %c192_35 = arith.constant 192 : index
    %c0_36 = arith.constant 0 : index
    %61 = vector.load %arg3[%c1_34, %c192_35, %c0_36] : memref<2x576x64xbf16, #tpu.memory_space<vmem>>, vector<1x192x64xbf16>
    %62 = vector.shape_cast %61 : vector<1x192x64xbf16> to vector<192x64xbf16>
    %cst_37 = arith.constant dense<0.000000e+00> : vector<256x64xf32>
    %63 = tpu.matmul %53, %62, %cst_37 {dimension_numbers = #tpu.dot_dimension_numbers<[1], [0], [0], [1], [0, 0, 1, 1], [], []>} : vector<256x192xbf16>, vector<192x64xbf16>, vector<256x64xf32> -> vector<256x64xf32>
    %64 = vector.shape_cast %63 : vector<256x64xf32> to vector<16x16x64xf32>
    %65 = arith.addf %60, %64 : vector<16x16x64xf32>
    %c1_38 = arith.constant 1 : index
    %c384_39 = arith.constant 384 : index
    %c0_40 = arith.constant 0 : index
    %66 = vector.load %arg3[%c1_38, %c384_39, %c0_40] : memref<2x576x64xbf16, #tpu.memory_space<vmem>>, vector<1x192x64xbf16>
    %67 = vector.shape_cast %66 : vector<1x192x64xbf16> to vector<192x64xbf16>
    %cst_41 = arith.constant dense<0.000000e+00> : vector<256x64xf32>
    %68 = tpu.matmul %53, %67, %cst_41 {dimension_numbers = #tpu.dot_dimension_numbers<[1], [0], [0], [1], [0, 0, 1, 1], [], []>} : vector<256x192xbf16>, vector<192x64xbf16>, vector<256x64xf32> -> vector<256x64xf32>
    %69 = vector.shape_cast %68 : vector<256x64xf32> to vector<16x16x64xf32>
    %cst_42 = arith.constant 0.000000e+00 : f32
    %70 = vector.broadcast %cst_42 : f32 to vector<1x16x64xf32>
    %71 = vector.extract_strided_slice %69 {offsets = [1, 0, 0], sizes = [15, 16, 64], strides = [1, 1, 1]} : vector<16x16x64xf32> to vector<15x16x64xf32>
    %72 = tpu.concatenate %71, %70 in 0 : vector<15x16x64xf32>, vector<1x16x64xf32> -> vector<16x16x64xf32>
    %73 = arith.addf %65, %72 : vector<16x16x64xf32>
    %74 = vector.shape_cast %44 : vector<1x64xf32> to vector<1x1x64xf32>
    %75 = vector.broadcast %74 : vector<1x1x64xf32> to vector<16x16x64xf32>
    %76 = arith.addf %73, %75 : vector<16x16x64xf32>
    %cst_43 = arith.constant 0.000000e+00 : f32
    %77 = vector.broadcast %cst_43 : f32 to vector<16x16x64xf32>
    %78 = arith.maximumf %76, %77 : vector<16x16x64xf32>
    %c0_44 = arith.constant 0 : index
    %c0_45 = arith.constant 0 : index
    %79 = vector.load %arg6[%c0_44, %c0_45] : memref<1x64xf32, #tpu.memory_space<vmem>>, vector<1x64xf32>
    %80 = arith.truncf %78 : vector<16x16x64xf32> to vector<16x16x64xbf16>
    %cst_46 = arith.constant 0.000000e+00 : bf16
    %81 = vector.broadcast %cst_46 : bf16 to vector<16x1x64xbf16>
    %82 = vector.extract_strided_slice %80 {offsets = [0, 0, 0], sizes = [16, 15, 64], strides = [1, 1, 1]} : vector<16x16x64xbf16> to vector<16x15x64xbf16>
    %83 = tpu.concatenate %81, %82 in 1 : vector<16x1x64xbf16>, vector<16x15x64xbf16> -> vector<16x16x64xbf16>
    %cst_47 = arith.constant 0.000000e+00 : bf16
    %84 = vector.broadcast %cst_47 : bf16 to vector<16x1x64xbf16>
    %85 = vector.extract_strided_slice %80 {offsets = [0, 1, 0], sizes = [16, 15, 64], strides = [1, 1, 1]} : vector<16x16x64xbf16> to vector<16x15x64xbf16>
    %86 = tpu.concatenate %85, %84 in 1 : vector<16x15x64xbf16>, vector<16x1x64xbf16> -> vector<16x16x64xbf16>
    %87 = tpu.concatenate %83, %80, %86 in 2 : vector<16x16x64xbf16>, vector<16x16x64xbf16>, vector<16x16x64xbf16> -> vector<16x16x192xbf16>
    %88 = vector.shape_cast %87 : vector<16x16x192xbf16> to vector<256x192xbf16>
    %c0_48 = arith.constant 0 : index
    %c0_49 = arith.constant 0 : index
    %89 = vector.load %arg5[%c0_48, %c0_49] : memref<576x64xbf16, #tpu.memory_space<vmem>>, vector<192x64xbf16>
    %cst_50 = arith.constant dense<0.000000e+00> : vector<256x64xf32>
    %90 = tpu.matmul %88, %89, %cst_50 {dimension_numbers = #tpu.dot_dimension_numbers<[1], [0], [0], [1], [0, 0, 1, 1], [], []>} : vector<256x192xbf16>, vector<192x64xbf16>, vector<256x64xf32> -> vector<256x64xf32>
    %91 = vector.shape_cast %90 : vector<256x64xf32> to vector<16x16x64xf32>
    %cst_51 = arith.constant 0.000000e+00 : f32
    %92 = vector.broadcast %cst_51 : f32 to vector<1x16x64xf32>
    %93 = vector.extract_strided_slice %91 {offsets = [0, 0, 0], sizes = [15, 16, 64], strides = [1, 1, 1]} : vector<16x16x64xf32> to vector<15x16x64xf32>
    %94 = tpu.concatenate %92, %93 in 0 : vector<1x16x64xf32>, vector<15x16x64xf32> -> vector<16x16x64xf32>
    %c192_52 = arith.constant 192 : index
    %c0_53 = arith.constant 0 : index
    %95 = vector.load %arg5[%c192_52, %c0_53] : memref<576x64xbf16, #tpu.memory_space<vmem>>, vector<192x64xbf16>
    %cst_54 = arith.constant dense<0.000000e+00> : vector<256x64xf32>
    %96 = tpu.matmul %88, %95, %cst_54 {dimension_numbers = #tpu.dot_dimension_numbers<[1], [0], [0], [1], [0, 0, 1, 1], [], []>} : vector<256x192xbf16>, vector<192x64xbf16>, vector<256x64xf32> -> vector<256x64xf32>
    %97 = vector.shape_cast %96 : vector<256x64xf32> to vector<16x16x64xf32>
    %98 = arith.addf %94, %97 : vector<16x16x64xf32>
    %c384_55 = arith.constant 384 : index
    %c0_56 = arith.constant 0 : index
    %99 = vector.load %arg5[%c384_55, %c0_56] : memref<576x64xbf16, #tpu.memory_space<vmem>>, vector<192x64xbf16>
    %cst_57 = arith.constant dense<0.000000e+00> : vector<256x64xf32>
    %100 = tpu.matmul %88, %99, %cst_57 {dimension_numbers = #tpu.dot_dimension_numbers<[1], [0], [0], [1], [0, 0, 1, 1], [], []>} : vector<256x192xbf16>, vector<192x64xbf16>, vector<256x64xf32> -> vector<256x64xf32>
    %101 = vector.shape_cast %100 : vector<256x64xf32> to vector<16x16x64xf32>
    %cst_58 = arith.constant 0.000000e+00 : f32
    %102 = vector.broadcast %cst_58 : f32 to vector<1x16x64xf32>
    %103 = vector.extract_strided_slice %101 {offsets = [1, 0, 0], sizes = [15, 16, 64], strides = [1, 1, 1]} : vector<16x16x64xf32> to vector<15x16x64xf32>
    %104 = tpu.concatenate %103, %102 in 0 : vector<15x16x64xf32>, vector<1x16x64xf32> -> vector<16x16x64xf32>
    %105 = arith.addf %98, %104 : vector<16x16x64xf32>
    %106 = vector.shape_cast %79 : vector<1x64xf32> to vector<1x1x64xf32>
    %107 = vector.broadcast %106 : vector<1x1x64xf32> to vector<16x16x64xf32>
    %108 = arith.addf %105, %107 : vector<16x16x64xf32>
    %cst_59 = arith.constant 0.000000e+00 : f32
    %109 = vector.broadcast %cst_59 : f32 to vector<16x16x32xf32>
    %110 = tpu.concatenate %1, %109 in 2 : vector<16x16x32xf32>, vector<16x16x32xf32> -> vector<16x16x64xf32>
    %111 = arith.addf %108, %110 : vector<16x16x64xf32>
    %c0_60 = arith.constant 0 : index
    %c0_61 = arith.constant 0 : index
    %c0_62 = arith.constant 0 : index
    %c0_63 = arith.constant 0 : index
    %112 = vector.load %arg11[%c0_60, %c0_61, %c0_62, %c0_63] : memref<1x16x16x64xf32, #tpu.memory_space<vmem>>, vector<1x16x16x64xf32>
    %113 = vector.shape_cast %112 : vector<1x16x16x64xf32> to vector<16x16x64xf32>
    %114 = vector.shape_cast %111 : vector<16x16x64xf32> to vector<1x16x16x64xf32>
    tpu.vector_store %arg11[%c0_60, %c0_61, %c0_62, %c0_63], %114 {strides = array<i32>} : memref<1x16x16x64xf32, #tpu.memory_space<vmem>>, vector<1x16x16x64xf32>,
    %115 = arith.truncf %111 : vector<16x16x64xf32> to vector<16x16x64xbf16>
    %cst_64 = arith.constant 0.000000e+00 : bf16
    %116 = vector.broadcast %cst_64 : bf16 to vector<16x1x64xbf16>
    %117 = vector.extract_strided_slice %115 {offsets = [0, 1, 0], sizes = [16, 15, 64], strides = [1, 1, 1]} : vector<16x16x64xbf16> to vector<16x15x64xbf16>
    %118 = tpu.concatenate %117, %116 in 1 : vector<16x15x64xbf16>, vector<16x1x64xbf16> -> vector<16x16x64xbf16>
    %cst_65 = arith.constant 0.000000e+00 : bf16
    %119 = vector.broadcast %cst_65 : bf16 to vector<1x16x64xbf16>
    %120 = vector.extract_strided_slice %115 {offsets = [1, 0, 0], sizes = [15, 16, 64], strides = [1, 1, 1]} : vector<16x16x64xbf16> to vector<15x16x64xbf16>
    %121 = tpu.concatenate %120, %119 in 0 : vector<15x16x64xbf16>, vector<1x16x64xbf16> -> vector<16x16x64xbf16>
    %cst_66 = arith.constant 0.000000e+00 : bf16
    %122 = vector.broadcast %cst_66 : bf16 to vector<1x16x64xbf16>
    %123 = vector.extract_strided_slice %118 {offsets = [1, 0, 0], sizes = [15, 16, 64], strides = [1, 1, 1]} : vector<16x16x64xbf16> to vector<15x16x64xbf16>
    %124 = tpu.concatenate %123, %122 in 0 : vector<15x16x64xbf16>, vector<1x16x64xbf16> -> vector<16x16x64xbf16>
    %c0_67 = arith.constant 0 : index
    %c0_68 = arith.constant 0 : index
    %125 = vector.load %arg9[%c0_67, %c0_68] : memref<1x128xf32, #tpu.memory_space<vmem>>, vector<1x128xf32>
    %126 = vector.shape_cast %125 : vector<1x128xf32> to vector<1x1x128xf32>
    %127 = tpu.concatenate %115, %118 in 2 : vector<16x16x64xbf16>, vector<16x16x64xbf16> -> vector<16x16x128xbf16>
    %128 = vector.shape_cast %127 : vector<16x16x128xbf16> to vector<256x128xbf16>
    %c0_69 = arith.constant 0 : index
    %c0_70 = arith.constant 0 : index
    %129 = vector.load %arg7[%c0_69, %c0_70] : memref<128x128xbf16, #tpu.memory_space<vmem>>, vector<128x128xbf16>
    %cst_71 = arith.constant dense<0.000000e+00> : vector<256x128xf32>
    %130 = tpu.matmul %128, %129, %cst_71 {dimension_numbers = #tpu.dot_dimension_numbers<[1], [0], [0], [1], [0, 0, 1, 1], [], []>} : vector<256x128xbf16>, vector<128x128xbf16>, vector<256x128xf32> -> vector<256x128xf32>
    %131 = vector.shape_cast %130 : vector<256x128xf32> to vector<16x16x128xf32>
    %132 = vector.broadcast %126 : vector<1x1x128xf32> to vector<16x16x128xf32>
    %133 = arith.addf %131, %132 : vector<16x16x128xf32>
    %134 = tpu.concatenate %115, %118, %121, %124 in 2 : vector<16x16x64xbf16>, vector<16x16x64xbf16>, vector<16x16x64xbf16>, vector<16x16x64xbf16> -> vector<16x16x256xbf16>
    %135 = vector.shape_cast %134 : vector<16x16x256xbf16> to vector<256x256xbf16>
    %c0_72 = arith.constant 0 : index
    %c0_73 = arith.constant 0 : index
    %136 = vector.load %arg8[%c0_72, %c0_73] : memref<256x128xbf16, #tpu.memory_space<vmem>>, vector<256x128xbf16>
    %cst_74 = arith.constant dense<0.000000e+00> : vector<256x128xf32>
    %137 = tpu.matmul %135, %136, %cst_74 {dimension_numbers = #tpu.dot_dimension_numbers<[1], [0], [0], [1], [0, 0, 1, 1], [], []>} : vector<256x256xbf16>, vector<256x128xbf16>, vector<256x128xf32> -> vector<256x128xf32>
    %138 = vector.shape_cast %137 : vector<256x128xf32> to vector<16x16x128xf32>
    %139 = vector.broadcast %126 : vector<1x1x128xf32> to vector<16x16x128xf32>
    %140 = arith.addf %138, %139 : vector<16x16x128xf32>
    %141 = vector.shape_cast %133 : vector<16x16x128xf32> to vector<16x1x16x128xf32>
    %142 = vector.shape_cast %140 : vector<16x16x128xf32> to vector<16x1x16x128xf32>
    %143 = tpu.concatenate %141, %142 in 1 : vector<16x1x16x128xf32>, vector<16x1x16x128xf32> -> vector<16x2x16x128xf32>
    %c0_75 = arith.constant 0 : index
    %c0_76 = arith.constant 0 : index
    %c0_77 = arith.constant 0 : index
    %c0_78 = arith.constant 0 : index
    %c0_79 = arith.constant 0 : index
    %144 = vector.load %arg10[%c0_75, %c0_76, %c0_77, %c0_78, %c0_79] : memref<1x16x2x16x128xf32, #tpu.memory_space<vmem>>, vector<1x16x2x16x128xf32>
    %145 = vector.shape_cast %144 : vector<1x16x2x16x128xf32> to vector<16x2x16x128xf32>
    %146 = vector.shape_cast %143 : vector<16x2x16x128xf32> to vector<1x16x2x16x128xf32>
    tpu.vector_store %arg10[%c0_75, %c0_76, %c0_77, %c0_78, %c0_79], %146 {strides = array<i32>} : memref<1x16x2x16x128xf32, #tpu.memory_space<vmem>>, vector<1x16x2x16x128xf32>,
    return
  }
  func.func @transform_0(%arg0: i32) -> (i32, i32, i32, i32) {
    %c0_i32 = arith.constant 0 : i32
    %c0_i32_0 = arith.constant 0 : i32
    %c0_i32_1 = arith.constant 0 : i32
    %c0_i32_2 = arith.constant 0 : i32
    return %arg0, %c0_i32, %c0_i32_0, %c0_i32_1 : i32, i32, i32, i32
  }
  func.func @transform_1(%arg0: i32) -> (i32, i32, i32, i32) {
    %c0_i32 = arith.constant 0 : i32
    %c0_i32_0 = arith.constant 0 : i32
    %c0_i32_1 = arith.constant 0 : i32
    %c0_i32_2 = arith.constant 0 : i32
    return %arg0, %c0_i32, %c0_i32_0, %c0_i32_1 : i32, i32, i32, i32
  }
  func.func @transform_2(%arg0: i32) -> (i32, i32, i32) {
    %c0_i32 = arith.constant 0 : i32
    %c0_i32_0 = arith.constant 0 : i32
    %c0_i32_1 = arith.constant 0 : i32
    %c0_i32_2 = arith.constant 0 : i32
    return %c0_i32, %c0_i32_0, %c0_i32_1 : i32, i32, i32
  }
  func.func @transform_3(%arg0: i32) -> (i32, i32, i32) {
    %c0_i32 = arith.constant 0 : i32
    %c0_i32_0 = arith.constant 0 : i32
    %c0_i32_1 = arith.constant 0 : i32
    %c0_i32_2 = arith.constant 0 : i32
    return %c0_i32, %c0_i32_0, %c0_i32_1 : i32, i32, i32
  }
  func.func @transform_4(%arg0: i32) -> (i32, i32) {
    %c0_i32 = arith.constant 0 : i32
    %c0_i32_0 = arith.constant 0 : i32
    %c0_i32_1 = arith.constant 0 : i32
    return %c0_i32, %c0_i32_0 : i32, i32
  }
  func.func @transform_5(%arg0: i32) -> (i32, i32) {
    %c0_i32 = arith.constant 0 : i32
    %c0_i32_0 = arith.constant 0 : i32
    %c0_i32_1 = arith.constant 0 : i32
    return %c0_i32, %c0_i32_0 : i32, i32
  }
  func.func @transform_6(%arg0: i32) -> (i32, i32) {
    %c0_i32 = arith.constant 0 : i32
    %c0_i32_0 = arith.constant 0 : i32
    %c0_i32_1 = arith.constant 0 : i32
    return %c0_i32, %c0_i32_0 : i32, i32
  }
  func.func @transform_7(%arg0: i32) -> (i32, i32) {
    %c0_i32 = arith.constant 0 : i32
    %c0_i32_0 = arith.constant 0 : i32
    %c0_i32_1 = arith.constant 0 : i32
    return %c0_i32, %c0_i32_0 : i32, i32
  }
  func.func @transform_8(%arg0: i32) -> (i32, i32) {
    %c0_i32 = arith.constant 0 : i32
    %c0_i32_0 = arith.constant 0 : i32
    %c0_i32_1 = arith.constant 0 : i32
    return %c0_i32, %c0_i32_0 : i32, i32
  }
  func.func @transform_9(%arg0: i32) -> (i32, i32, i32, i32, i32) {
    %c0_i32 = arith.constant 0 : i32
    %c0_i32_0 = arith.constant 0 : i32
    %c0_i32_1 = arith.constant 0 : i32
    %c0_i32_2 = arith.constant 0 : i32
    %c0_i32_3 = arith.constant 0 : i32
    return %arg0, %c0_i32, %c0_i32_0, %c0_i32_1, %c0_i32_2 : i32, i32, i32, i32, i32
  }
  func.func @transform_10(%arg0: i32) -> (i32, i32, i32, i32) {
    %c0_i32 = arith.constant 0 : i32
    %c0_i32_0 = arith.constant 0 : i32
    %c0_i32_1 = arith.constant 0 : i32
    %c0_i32_2 = arith.constant 0 : i32
    return %arg0, %c0_i32, %c0_i32_0, %c0_i32_1 : i32, i32, i32, i32
  }
}

</mosaic_0001>

<llo_original>
// kernel: refine_up_forward.1
$region0: #{refine_up_forward.1}
  #allocation0 [shape = 'u32[]', space=smem, size = 0x4, offset = 0x4, fixed_abs, tag = 'smem constant byte address 0x4 - core index']
  #allocation1 [shape = 'u32[144,128]{1,0:T(1,128)}', space=vmem, size = 0x12000, scoped, tag = 'internal scratch']
  %s0 = inlined_call_operand.vmem [shape: f32[2,16,16,64], index: 0, kind: input, shape index: {}]
  %s1 = inlined_call_operand.vmem [shape: f32[2,16,16,32], index: 1, kind: input, shape index: {}]
  %s2 = inlined_call_operand.vmem [shape: bf16[2,576,64], index: 2, kind: input, shape index: {}]
  %s3 = inlined_call_operand.vmem [shape: f32[2,1,64], index: 3, kind: input, shape index: {}]
  %s4 = inlined_call_operand.vmem [shape: bf16[576,64], index: 4, kind: input, shape index: {}]
  %s5 = inlined_call_operand.vmem [shape: f32[1,64], index: 5, kind: input, shape index: {}]
  %s6 = inlined_call_operand.hbm [shape: bf16[128,128], index: 6, kind: input, shape index: {}]
  %s7 = inlined_call_operand.hbm [shape: bf16[256,128], index: 7, kind: input, shape index: {}]
  %s8 = inlined_call_operand.vmem [shape: f32[1,128], index: 8, kind: input, shape index: {}]
  %s9 = inlined_call_operand.vmem [shape: f32[2,16,2,16,128], index: 9, kind: output, shape index: {0}]
  %s10 = inlined_call_operand.hbm [shape: f32[2,16,16,64], index: 10, kind: output, shape index: {1}]
  %11 = xla_tuple %s9, %s10
  %s12 = sld [smem:[#allocation0]]
  $region85: #{refine_up_forward.1} parent=0
    _
  %s14 = ssub.s32 1, %s12
  %s15 = scalar_select 0, %s14, %s12
  $region1: #{refine_up_forward.1} parent=0
    #allocation2 [shape = 'u8[32768]{0}', space=vmem, size = 0x8000, scoped, tag = 'input window, operand 6, single buffered']
    #allocation3 [shape = 's32[2]{0}', space=sflag, size = 0x8, scoped, tag = 'scoped memory for refine_up_forward.1']
    #allocation4 [shape = 's32[2]{0}', space=sflag, size = 0x8, scoped, tag = 'scoped memory for refine_up_forward.1']
    #allocation5 [shape = 'u8[65536]{0}', space=vmem, size = 0x10000, scoped, tag = 'input window, operand 7, single buffered']
    #allocation6 [shape = 's32[1]{0}', space=sflag, size = 0x4, scoped, tag = 'scoped memory for refine_up_forward.1']
    #allocation7 [shape = 'u8[262144]{0}', space=vmem, size = 0x40000, scoped, tag = 'output window, operand 1']
    %16 = vsyncpa [#allocation3], 0
    %17 = vsyncpa [#allocation6], 0
    %18 = vsyncpa [#allocation4], 0
    %s19 = scalar_lea.sflag [#allocation4], 1
    %20 = vsyncpa %s19, 0
    loop: start=0, step=1, limit=4
    $region2: #{refine_up_forward.1} parent=1 // loop_pre_header
      _
    $region3: #{refine_up_forward.1} parent=1 // loop_header
      %s22 = sphi 0, %s26
      %p23 = scmp.ge.s32.totalorder %s22, 4
      %s32 = sphi 0, %s34
      %s35 = sphi 0, %s32
      %s36 = sphi 0, %s35
      %s52 = sphi 0, %s36
      %s58 = sphi 0, %s60
      %s61 = sphi 0, %s58
      %s62 = sphi 0, %s61
      %s78 = sphi 0, %s62
      %s82 = sphi 0, %s82
      %s84 = sphi 0, %s82
      %s85 = sphi 0, %s84
      %s99 = sphi 0, %s85
      %s103 = sphi 0, %s103
      %s105 = sphi 0, %s103
      %s106 = sphi 0, %s105
      %s120 = sphi 0, %s106
      %s124 = sphi 0, %s124
      %s126 = sphi 0, %s124
      %s127 = sphi 0, %s126
      %s141 = sphi 0, %s127
      %s145 = sphi 0, %s145
      %s147 = sphi 0, %s145
      %s148 = sphi 0, %s147
      %s162 = sphi 0, %s148
      %s166 = sphi 0, %s166
      %s168 = sphi 0, %s166
      %s169 = sphi 0, %s168
      %s183 = sphi 0, %s169
      %s187 = sphi 0, %s187
      %s189 = sphi 0, %s187
      %s190 = sphi 0, %s189
      %s204 = sphi 0, %s190
      %s208 = sphi 0, %s208
      %s210 = sphi 0, %s208
      %s211 = sphi 0, %s210
      %s225 = sphi 0, %s211
      %s231 = sphi 0, %s233
      %s234 = sphi 0, %s231
      %s235 = sphi 0, %s234
      %s251 = sphi 0, %s235
      %s257 = sphi 0, %s259
      %s260 = sphi 0, %s257
      %s261 = sphi 0, %s260
      %s277 = sphi 0, %s261
    $region4: #{refine_up_forward.1} parent=1 // loop_header_branch
      %25 = sbr.rel (%p23) target = $region8
    $region5: #{refine_up_forward.1} parent=1 // loop_body
      %s27 = ssub.s32 %s22, 1
      %s28 = ssub.s32 %s22, 2
      %s29 = sadd.s32 %s22, 1
      %s30 = ssub.s32 %s22, %s29
      %p31 = scmp.eq.s32.totalorder %s30, 0
      %s33 = sadd.s32 %s32, 1
      %s34 = scalar_select %p31, %s32, %s33
      %p37 = pneg %p31
      %p38 = scmp.eq.s32.totalorder %s22, 1
      %p39 = por %p37, %p38
      %p40 = scmp.ne.s32.totalorder %s32, %s35
      %p41 = scmp.eq.s32.totalorder %s22, 0
      %p42 = por %p40, %p41
      %p43 = scmp.ne.s32.totalorder %s32, %s35
      %p44 = scmp.eq.s32.totalorder %s27, 1
      %p45 = por %p43, %p44
      %p46 = scmp.ne.s32.totalorder %s35, %s36
      %p47 = scmp.eq.s32.totalorder %s27, 0
      %p48 = por %p46, %p47
      %p49 = scmp.ne.s32.totalorder %s35, %s36
      %p50 = scmp.eq.s32.totalorder %s28, 1
      %p51 = por %p49, %p50
      %p53 = scmp.ne.s32.totalorder %s36, %s52
      %p54 = scmp.eq.s32.totalorder %s28, 0
      %p55 = por %p53, %p54
      %s56 = ssub.s32 %s22, %s29
      %p57 = scmp.eq.s32.totalorder %s56, 0
      %s59 = sadd.s32 %s58, 1
      %s60 = scalar_select %p57, %s58, %s59
      %p63 = pneg %p57
      %p64 = scmp.eq.s32.totalorder %s22, 1
      %p65 = por %p63, %p64
      %p66 = scmp.ne.s32.totalorder %s58, %s61
      %p67 = scmp.eq.s32.totalorder %s22, 0
      %p68 = por %p66, %p67
      %p69 = scmp.ne.s32.totalorder %s58, %s61
      %p70 = scmp.eq.s32.totalorder %s27, 1
      %p71 = por %p69, %p70
      %p72 = scmp.ne.s32.totalorder %s61, %s62
      %p73 = scmp.eq.s32.totalorder %s27, 0
      %p74 = por %p72, %p73
      %p75 = scmp.ne.s32.totalorder %s61, %s62
      %p76 = scmp.eq.s32.totalorder %s28, 1
      %p77 = por %p75, %p76
      %p79 = scmp.ne.s32.totalorder %s62, %s78
      %p80 = scmp.eq.s32.totalorder %s28, 0
      %p81 = por %p79, %p80
      %s83 = sadd.s32 %s82, 1
      %p86 = scmp.eq.s32.totalorder %s22, 1
      %p87 = scmp.ne.s32.totalorder %s82, %s84
      %p88 = scmp.eq.s32.totalorder %s22, 0
      %p89 = por %p87, %p88
      %p90 = scmp.ne.s32.totalorder %s82, %s84
      %p91 = scmp.eq.s32.totalorder %s27, 1
      %p92 = por %p90, %p91
      %p93 = scmp.ne.s32.totalorder %s84, %s85
      %p94 = scmp.eq.s32.totalorder %s27, 0
      %p95 = por %p93, %p94
      %p96 = scmp.ne.s32.totalorder %s84, %s85
      %p97 = scmp.eq.s32.totalorder %s28, 1
      %p98 = por %p96, %p97
      %p100 = scmp.ne.s32.totalorder %s85, %s99
      %p101 = scmp.eq.s32.totalorder %s28, 0
      %p102 = por %p100, %p101
      %s104 = sadd.s32 %s103, 1
      %p107 = scmp.eq.s32.totalorder %s22, 1
      %p108 = scmp.ne.s32.totalorder %s103, %s105
      %p109 = scmp.eq.s32.totalorder %s22, 0
      %p110 = por %p108, %p109
      %p111 = scmp.ne.s32.totalorder %s103, %s105
      %p112 = scmp.eq.s32.totalorder %s27, 1
      %p113 = por %p111, %p112
      %p114 = scmp.ne.s32.totalorder %s105, %s106
      %p115 = scmp.eq.s32.totalorder %s27, 0
      %p116 = por %p114, %p115
      %p117 = scmp.ne.s32.totalorder %s105, %s106
      %p118 = scmp.eq.s32.totalorder %s28, 1
      %p119 = por %p117, %p118
      %p121 = scmp.ne.s32.totalorder %s106, %s120
      %p122 = scmp.eq.s32.totalorder %s28, 0
      %p123 = por %p121, %p122
      %s125 = sadd.s32 %s124, 1
      %p128 = scmp.eq.s32.totalorder %s22, 1
      %p129 = scmp.ne.s32.totalorder %s124, %s126
      %p130 = scmp.eq.s32.totalorder %s22, 0
      %p131 = por %p129, %p130
      %p132 = scmp.ne.s32.totalorder %s124, %s126
      %p133 = scmp.eq.s32.totalorder %s27, 1
      %p134 = por %p132, %p133
      %p135 = scmp.ne.s32.totalorder %s126, %s127
      %p136 = scmp.eq.s32.totalorder %s27, 0
      %p137 = por %p135, %p136
      %p138 = scmp.ne.s32.totalorder %s126, %s127
      %p139 = scmp.eq.s32.totalorder %s28, 1
      %p140 = por %p138, %p139
      %p142 = scmp.ne.s32.totalorder %s127, %s141
      %p143 = scmp.eq.s32.totalorder %s28, 0
      %p144 = por %p142, %p143
      %s146 = sadd.s32 %s145, 1
      %p149 = scmp.eq.s32.totalorder %s22, 1
      %p150 = scmp.ne.s32.totalorder %s145, %s147
      %p151 = scmp.eq.s32.totalorder %s22, 0
      %p152 = por %p150, %p151
      %p153 = scmp.ne.s32.totalorder %s145, %s147
      %p154 = scmp.eq.s32.totalorder %s27, 1
      %p155 = por %p153, %p154
      %p156 = scmp.ne.s32.totalorder %s147, %s148
      %p157 = scmp.eq.s32.totalorder %s27, 0
      %p158 = por %p156, %p157
      %p159 = scmp.ne.s32.totalorder %s147, %s148
      %p160 = scmp.eq.s32.totalorder %s28, 1
      %p161 = por %p159, %p160
      %p163 = scmp.ne.s32.totalorder %s148, %s162
      %p164 = scmp.eq.s32.totalorder %s28, 0
      %p165 = por %p163, %p164
      %s167 = sadd.s32 %s166, 1
      %p170 = scmp.eq.s32.totalorder %s22, 1
      %p171 = scmp.ne.s32.totalorder %s166, %s168
      %p172 = scmp.eq.s32.totalorder %s22, 0
      %p173 = por %p171, %p172
      %p174 = scmp.ne.s32.totalorder %s166, %s168
      %p175 = scmp.eq.s32.totalorder %s27, 1
      %p176 = por %p174, %p175
      %p177 = scmp.ne.s32.totalorder %s168, %s169
      %p178 = scmp.eq.s32.totalorder %s27, 0
      %p179 = por %p177, %p178
      %p180 = scmp.ne.s32.totalorder %s168, %s169
      %p181 = scmp.eq.s32.totalorder %s28, 1
      %p182 = por %p180, %p181
      %p184 = scmp.ne.s32.totalorder %s169, %s183
      %p185 = scmp.eq.s32.totalorder %s28, 0
      %p186 = por %p184, %p185
      %s188 = sadd.s32 %s187, 1
      %p191 = scmp.eq.s32.totalorder %s22, 1
      %p192 = scmp.ne.s32.totalorder %s187, %s189
      %p193 = scmp.eq.s32.totalorder %s22, 0
      %p194 = por %p192, %p193
      %p195 = scmp.ne.s32.totalorder %s187, %s189
      %p196 = scmp.eq.s32.totalorder %s27, 1
      %p197 = por %p195, %p196
      %p198 = scmp.ne.s32.totalorder %s189, %s190
      %p199 = scmp.eq.s32.totalorder %s27, 0
      %p200 = por %p198, %p199
      %p201 = scmp.ne.s32.totalorder %s189, %s190
      %p202 = scmp.eq.s32.totalorder %s28, 1
      %p203 = por %p201, %p202
      %p205 = scmp.ne.s32.totalorder %s190, %s204
      %p206 = scmp.eq.s32.totalorder %s28, 0
      %p207 = por %p205, %p206
      %s209 = sadd.s32 %s208, 1
      %p212 = scmp.eq.s32.totalorder %s22, 1
      %p213 = scmp.ne.s32.totalorder %s208, %s210
      %p214 = scmp.eq.s32.totalorder %s22, 0
      %p215 = por %p213, %p214
      %p216 = scmp.ne.s32.totalorder %s208, %s210
      %p217 = scmp.eq.s32.totalorder %s27, 1
      %p218 = por %p216, %p217
      %p219 = scmp.ne.s32.totalorder %s210, %s211
      %p220 = scmp.eq.s32.totalorder %s27, 0
      %p221 = por %p219, %p220
      %p222 = scmp.ne.s32.totalorder %s210, %s211
      %p223 = scmp.eq.s32.totalorder %s28, 1
      %p224 = por %p222, %p223
      %p226 = scmp.ne.s32.totalorder %s211, %s225
      %p227 = scmp.eq.s32.totalorder %s28, 0
      %p228 = por %p226, %p227
      %s229 = ssub.s32 %s22, %s29
      %p230 = scmp.eq.s32.totalorder %s229, 0
      %s232 = sadd.s32 %s231, 1
      %s233 = scalar_select %p230, %s231, %s232
      %p236 = pneg %p230
      %p237 = scmp.eq.s32.totalorder %s22, 1
      %p238 = por %p236, %p237
      %p239 = scmp.ne.s32.totalorder %s231, %s234
      %p240 = scmp.eq.s32.totalorder %s22, 0
      %p241 = por %p239, %p240
      %p242 = scmp.ne.s32.totalorder %s231, %s234
      %p243 = scmp.eq.s32.totalorder %s27, 1
      %p244 = por %p242, %p243
      %p245 = scmp.ne.s32.totalorder %s234, %s235
      %p246 = scmp.eq.s32.totalorder %s27, 0
      %p247 = por %p245, %p246
      %p248 = scmp.ne.s32.totalorder %s234, %s235
      %p249 = scmp.eq.s32.totalorder %s28, 1
      %p250 = por %p248, %p249
      %p252 = scmp.ne.s32.totalorder %s235, %s251
      %p253 = scmp.eq.s32.totalorder %s28, 0
      %p254 = por %p252, %p253
      %s255 = ssub.s32 %s22, %s29
      %p256 = scmp.eq.s32.totalorder %s255, 0
      %s258 = sadd.s32 %s257, 1
      %s259 = scalar_select %p256, %s257, %s258
      %p262 = pneg %p256
      %p263 = scmp.eq.s32.totalorder %s22, 1
      %p264 = por %p262, %p263
      %p265 = scmp.ne.s32.totalorder %s257, %s260
      %p266 = scmp.eq.s32.totalorder %s22, 0
      %p267 = por %p265, %p266
      %p268 = scmp.ne.s32.totalorder %s257, %s260
      %p269 = scmp.eq.s32.totalorder %s27, 1
      %p270 = por %p268, %p269
      %p271 = scmp.ne.s32.totalorder %s260, %s261
      %p272 = scmp.eq.s32.totalorder %s27, 0
      %p273 = por %p271, %p272
      %p274 = scmp.ne.s32.totalorder %s260, %s261
      %p275 = scmp.eq.s32.totalorder %s28, 1
      %p276 = por %p274, %p275
      %p278 = scmp.ne.s32.totalorder %s261, %s277
      %p279 = scmp.eq.s32.totalorder %s28, 0
      %p280 = por %p278, %p279
      %p281 = scmp.le.s32.totalorder 1, %s22
      %p282 = scmp.lt.s32.totalorder %s22, 3
      %p283 = pnand %p281, %p282
      %p284 = pneg %p283
      // Predicated region
      $region9: #{refine_up_forward.1} parent=5 // pred_check
        _
      $region10: #{refine_up_forward.1} parent=5 // pred_check_branch
        %286 = sbr.rel (%p283) target = $region12
      $region11: #{refine_up_forward.1} parent=5 // pred_region
        %s287 = ssub.s32 %s22, 1
        // Predicated region
        $region13: #{refine_up_forward.1} parent=11 // pred_check
          %p288 = pneg %p95
        $region14: #{refine_up_forward.1} parent=11 // pred_check_branch
          %290 = sbr.rel (%p288) target = $region16
        $region15: #{refine_up_forward.1} parent=11 // pred_region
          _
        $region16: #{refine_up_forward.1} parent=11 // pred_fallthru
          _
        // Predicated region
        $region17: #{refine_up_forward.1} parent=11 // pred_check
          %p291 = pneg %p116
        $region18: #{refine_up_forward.1} parent=11 // pred_check_branch
          %293 = sbr.rel (%p291) target = $region20
        $region19: #{refine_up_forward.1} parent=11 // pred_region
          _
        $region20: #{refine_up_forward.1} parent=11 // pred_fallthru
          _
        // Predicated region
        $region21: #{refine_up_forward.1} parent=11 // pred_check
          %p294 = pneg %p137
        $region22: #{refine_up_forward.1} parent=11 // pred_check_branch
          %296 = sbr.rel (%p294) target = $region24
        $region23: #{refine_up_forward.1} parent=11 // pred_region
          _
        $region24: #{refine_up_forward.1} parent=11 // pred_fallthru
          _
        // Predicated region
        $region25: #{refine_up_forward.1} parent=11 // pred_check
          %p297 = pneg %p158
        $region26: #{refine_up_forward.1} parent=11 // pred_check_branch
          %299 = sbr.rel (%p297) target = $region28
        $region27: #{refine_up_forward.1} parent=11 // pred_region
          _
        $region28: #{refine_up_forward.1} parent=11 // pred_fallthru
          _
        // Predicated region
        $region29: #{refine_up_forward.1} parent=11 // pred_check
          %p300 = pneg %p179
        $region30: #{refine_up_forward.1} parent=11 // pred_check_branch
          %302 = sbr.rel (%p300) target = $region32
        $region31: #{refine_up_forward.1} parent=11 // pred_region
          %s304 = ssub.s32 1024, 1024
          %305 = vsyncadd [#allocation3], %s304
          %s306 = sshll.u32 [#allocation2], 4
          %s307 = int_to_ptr.vmem [resolvable:$true] %s306
          %312 = dma.hbm_to_vmem [thread:$0]  %s6, 1024, %s307, [#allocation3], 64, 64, 4
        $region32: #{refine_up_forward.1} parent=11 // pred_fallthru
          _
        // Predicated region
        $region33: #{refine_up_forward.1} parent=11 // pred_check
          %p313 = pneg %p200
        $region34: #{refine_up_forward.1} parent=11 // pred_check_branch
          %315 = sbr.rel (%p313) target = $region36
        $region35: #{refine_up_forward.1} parent=11 // pred_region
          %s317 = ssub.s32 2048, 2048
          %318 = vsyncadd [#allocation6], %s317
          %s319 = sshll.u32 [#allocation5], 4
          %s320 = int_to_ptr.vmem [resolvable:$true] %s319
          %325 = dma.hbm_to_vmem [thread:$0]  %s7, 2048, %s320, [#allocation6], 64, 64, 4
        $region36: #{refine_up_forward.1} parent=11 // pred_fallthru
          _
        // Predicated region
        $region37: #{refine_up_forward.1} parent=11 // pred_check
          %p326 = pneg %p221
        $region38: #{refine_up_forward.1} parent=11 // pred_check_branch
          %328 = sbr.rel (%p326) target = $region40
        $region39: #{refine_up_forward.1} parent=11 // pred_region
          _
        $region40: #{refine_up_forward.1} parent=11 // pred_fallthru
          _
      $region12: #{refine_up_forward.1} parent=5 // pred_fallthru
        _
      %p329 = scmp.lt.s32.totalorder %s22, 2
      // Predicated region
      $region41: #{refine_up_forward.1} parent=5 // pred_check
        %p330 = pneg %p329
      $region42: #{refine_up_forward.1} parent=5 // pred_check_branch
        %332 = sbr.rel (%p330) target = $region44
      $region43: #{refine_up_forward.1} parent=5 // pred_region
        // Predicated region
        $region45: #{refine_up_forward.1} parent=43 // pred_check
          %p333 = pneg %p42
        $region46: #{refine_up_forward.1} parent=43 // pred_check_branch
          %335 = sbr.rel (%p333) target = $region48
        $region47: #{refine_up_forward.1} parent=43 // pred_region
          %p336 = scmp.lt.s32.totalorder %s22, 1
          %s337 = scalar_select %p336, %s22, 1
          %s338 = smul.addr %s337, 32
          %s339 = smul.addr %s338, 8
          %s340 = scalar_lea.vmem %s0, %s339
        $region48: #{refine_up_forward.1} parent=43 // pred_fallthru
          _
        // Predicated region
        $region49: #{refine_up_forward.1} parent=43 // pred_check
          %p341 = pneg %p68
        $region50: #{refine_up_forward.1} parent=43 // pred_check_branch
          %343 = sbr.rel (%p341) target = $region52
        $region51: #{refine_up_forward.1} parent=43 // pred_region
          %p344 = scmp.lt.s32.totalorder %s22, 1
          %s345 = scalar_select %p344, %s22, 1
          %s346 = smul.addr %s345, 32
          %s347 = smul.addr %s346, 8
          %s348 = scalar_lea.vmem %s1, %s347
        $region52: #{refine_up_forward.1} parent=43 // pred_fallthru
          _
      $region44: #{refine_up_forward.1} parent=5 // pred_fallthru
        _
      %p349 = scmp.le.s32.totalorder 1, %s22
      %p350 = scmp.lt.s32.totalorder %s22, 3
      %p351 = pnand %p349, %p350
      %p352 = pneg %p351
      // Predicated region
      $region53: #{refine_up_forward.1} parent=5 // pred_check
        _
      $region54: #{refine_up_forward.1} parent=5 // pred_check_branch
        %354 = sbr.rel (%p351) target = $region56
      $region55: #{refine_up_forward.1} parent=5 // pred_region
        %s355 = ssub.s32 %s22, 1
        // Predicated region
        $region57: #{refine_up_forward.1} parent=55 // pred_check
          %p356 = pneg %p179
        $region58: #{refine_up_forward.1} parent=55 // pred_check_branch
          %358 = sbr.rel (%p356) target = $region60
        $region59: #{refine_up_forward.1} parent=55 // pred_region
          %359 = dma.done [#allocation3], 1024
        $region60: #{refine_up_forward.1} parent=55 // pred_fallthru
          _
        // Predicated region
        $region61: #{refine_up_forward.1} parent=55 // pred_check
          %p360 = pneg %p200
        $region62: #{refine_up_forward.1} parent=55 // pred_check_branch
          %362 = sbr.rel (%p360) target = $region64
        $region63: #{refine_up_forward.1} parent=55 // pred_region
          %363 = dma.done [#allocation6], 2048
        $region64: #{refine_up_forward.1} parent=55 // pred_fallthru
          _
        %p364 = scmp.lt.s32.totalorder %s27, 1
        %s365 = scalar_select %p364, %s27, 1
        %s366 = smul.addr %s365, 32
        %s367 = smul.addr %s366, 8
        %s368 = scalar_lea.vmem %s0, %s367
        %p369 = pneg %p48
        %p370 = pneg %p45
        %p371 = scmp.lt.s32.totalorder %s27, 1
        %s372 = scalar_select %p371, %s27, 1
        %s373 = smul.addr %s372, 32
        %s374 = smul.addr %s373, 8
        %s375 = scalar_lea.vmem %s1, %s374
        %p376 = pneg %p74
        %p377 = pneg %p71
        %p378 = pneg %p95
        %p379 = pneg %p92
        %p380 = pneg %p116
        %p381 = pneg %p113
        %p382 = pneg %p137
        %p383 = pneg %p134
        %p384 = pneg %p158
        %p385 = pneg %p155
        %p386 = pneg %p179
        %p387 = pneg %p176
        %p388 = pneg %p200
        %p389 = pneg %p197
        %p390 = pneg %p221
        %p391 = pneg %p218
        %p392 = pneg %p247
        %p393 = pneg %p244
        %p394 = scmp.lt.s32.totalorder %s27, 1
        %s395 = scalar_select %p394, %s27, 1
        %s396 = smul.addr %s395, 64
        %s397 = smul.addr %s396, 8
        %s398 = scalar_lea.vmem %s9, %s397
        %p399 = pneg %p273
        %p400 = pneg %p270
        %s401 = sand.u32 %s260, 1
        %s402 = scalar_lea.sflag [#allocation4], %s401
        %s403 = sand.u32 %s260, 1
        %s404 = smul.addr %s403, 256
        %s405 = scalar_lea.vmem [#allocation7], %s404
        %p406 = scmp.lt.s32.totalorder %s27, 1
        %s407 = scalar_select %p406, %s27, 1
        %s408 = smul.addr %s407, 32
        %s409 = smul.addr %s408, 8
        %s410 = scalar_lea.vmem %s0, %s409
        %p411 = scmp.lt.s32.totalorder %s27, 1
        %s412 = scalar_select %p411, %s27, 1
        %s413 = smul.addr %s412, 32
        %s414 = smul.addr %s413, 8
        %s415 = scalar_lea.vmem %s1, %s414
        %p416 = scmp.lt.s32.totalorder %s27, 1
        %s417 = scalar_select %p416, %s27, 1
        %s418 = smul.addr %s417, 64
        %s419 = smul.addr %s418, 8
        %s420 = scalar_lea.vmem %s9, %s419
        %v422 = vld [vmem:[%s415] sm:$0xff]
        %v423 = vld [vmem:[%s415 + $0x8] sm:$0xff]
        %v424 = vld [vmem:[%s415 + $0x10] sm:$0xff]
        %v425 = vld [vmem:[%s415 + $0x18] sm:$0xff]
        %v426 = vld [vmem:[%s415 + $0x20] sm:$0xff]
        %v427 = vld [vmem:[%s415 + $0x28] sm:$0xff]
        %v428 = vld [vmem:[%s415 + $0x30] sm:$0xff]
        %v429 = vld [vmem:[%s415 + $0x38] sm:$0xff]
        %v430 = vld [vmem:[%s415 + $0x40] sm:$0xff]
        %v431 = vld [vmem:[%s415 + $0x48] sm:$0xff]
        %v432 = vld [vmem:[%s415 + $0x50] sm:$0xff]
        %v433 = vld [vmem:[%s415 + $0x58] sm:$0xff]
        %v434 = vld [vmem:[%s415 + $0x60] sm:$0xff]
        %v435 = vld [vmem:[%s415 + $0x68] sm:$0xff]
        %v436 = vld [vmem:[%s415 + $0x70] sm:$0xff]
        %v437 = vld [vmem:[%s415 + $0x78] sm:$0xff]
        %v438 = vld [vmem:[%s415 + $0x80] sm:$0xff]
        %v439 = vld [vmem:[%s415 + $0x88] sm:$0xff]
        %v440 = vld [vmem:[%s415 + $0x90] sm:$0xff]
        %v441 = vld [vmem:[%s415 + $0x98] sm:$0xff]
        %v442 = vld [vmem:[%s415 + $0xa0] sm:$0xff]
        %v443 = vld [vmem:[%s415 + $0xa8] sm:$0xff]
        %v444 = vld [vmem:[%s415 + $0xb0] sm:$0xff]
        %v445 = vld [vmem:[%s415 + $0xb8] sm:$0xff]
        %v446 = vld [vmem:[%s415 + $0xc0] sm:$0xff]
        %v447 = vld [vmem:[%s415 + $0xc8] sm:$0xff]
        %v448 = vld [vmem:[%s415 + $0xd0] sm:$0xff]
        %v449 = vld [vmem:[%s415 + $0xd8] sm:$0xff]
        %v450 = vld [vmem:[%s415 + $0xe0] sm:$0xff]
        %v451 = vld [vmem:[%s415 + $0xe8] sm:$0xff]
        %v452 = vld [vmem:[%s415 + $0xf0] sm:$0xff]
        %v453 = vld [vmem:[%s415 + $0xf8] sm:$0xff]
        %v454 = vld [vmem:[%s410] sm:$0xff]
        %v455 = vld [vmem:[%s410 + $0x8] sm:$0xff]
        %v456 = vld [vmem:[%s410 + $0x10] sm:$0xff]
        %v457 = vld [vmem:[%s410 + $0x18] sm:$0xff]
        %v458 = vld [vmem:[%s410 + $0x20] sm:$0xff]
        %v459 = vld [vmem:[%s410 + $0x28] sm:$0xff]
        %v460 = vld [vmem:[%s410 + $0x30] sm:$0xff]
        %v461 = vld [vmem:[%s410 + $0x38] sm:$0xff]
        %v462 = vld [vmem:[%s410 + $0x40] sm:$0xff]
        %v463 = vld [vmem:[%s410 + $0x48] sm:$0xff]
        %v464 = vld [vmem:[%s410 + $0x50] sm:$0xff]
        %v465 = vld [vmem:[%s410 + $0x58] sm:$0xff]
        %v466 = vld [vmem:[%s410 + $0x60] sm:$0xff]
        %v467 = vld [vmem:[%s410 + $0x68] sm:$0xff]
        %v468 = vld [vmem:[%s410 + $0x70] sm:$0xff]
        %v469 = vld [vmem:[%s410 + $0x78] sm:$0xff]
        %v470 = vld [vmem:[%s410 + $0x80] sm:$0xff]
        %v471 = vld [vmem:[%s410 + $0x88] sm:$0xff]
        %v472 = vld [vmem:[%s410 + $0x90] sm:$0xff]
        %v473 = vld [vmem:[%s410 + $0x98] sm:$0xff]
        %v474 = vld [vmem:[%s410 + $0xa0] sm:$0xff]
        %v475 = vld [vmem:[%s410 + $0xa8] sm:$0xff]
        %v476 = vld [vmem:[%s410 + $0xb0] sm:$0xff]
        %v477 = vld [vmem:[%s410 + $0xb8] sm:$0xff]
        %v478 = vld [vmem:[%s410 + $0xc0] sm:$0xff]
        %v479 = vld [vmem:[%s410 + $0xc8] sm:$0xff]
        %v480 = vld [vmem:[%s410 + $0xd0] sm:$0xff]
        %v481 = vld [vmem:[%s410 + $0xd8] sm:$0xff]
        %v482 = vld [vmem:[%s410 + $0xe0] sm:$0xff]
        %v483 = vld [vmem:[%s410 + $0xe8] sm:$0xff]
        %v484 = vld [vmem:[%s410 + $0xf0] sm:$0xff]
        %v485 = vld [vmem:[%s410 + $0xf8] sm:$0xff]
        %vm486 = vcmask 261120
        %v487 = vsel %vm486, %v422, 0.0
        %v488 = vsel %vm486, %v423, 0.0
        %v489 = vsel %vm486, %v424, 0.0
        %v490 = vsel %vm486, %v425, 0.0
        %v491 = vsel %vm486, %v426, 0.0
        %v492 = vsel %vm486, %v427, 0.0
        %v493 = vsel %vm486, %v428, 0.0
        %v494 = vsel %vm486, %v429, 0.0
        %v495 = vsel %vm486, %v430, 0.0
        %v496 = vsel %vm486, %v431, 0.0
        %v497 = vsel %vm486, %v432, 0.0
        %v498 = vsel %vm486, %v433, 0.0
        %v499 = vsel %vm486, %v434, 0.0
        %v500 = vsel %vm486, %v435, 0.0
        %v501 = vsel %vm486, %v436, 0.0
        %v502 = vsel %vm486, %v437, 0.0
        %v503 = vsel %vm486, %v438, 0.0
        %v504 = vsel %vm486, %v439, 0.0
        %v505 = vsel %vm486, %v440, 0.0
        %v506 = vsel %vm486, %v441, 0.0
        %v507 = vsel %vm486, %v442, 0.0
        %v508 = vsel %vm486, %v443, 0.0
        %v509 = vsel %vm486, %v444, 0.0
        %v510 = vsel %vm486, %v445, 0.0
        %v511 = vsel %vm486, %v446, 0.0
        %v512 = vsel %vm486, %v447, 0.0
        %v513 = vsel %vm486, %v448, 0.0
        %v514 = vsel %vm486, %v449, 0.0
        %v515 = vsel %vm486, %v450, 0.0
        %v516 = vsel %vm486, %v451, 0.0
        %v517 = vsel %vm486, %v452, 0.0
        %v518 = vsel %vm486, %v453, 0.0
        %v519 = vadd.f32 %v454, %v487
        %v520 = vadd.f32 %v455, %v488
        %v521 = vadd.f32 %v456, %v489
        %v522 = vadd.f32 %v457, %v490
        %v523 = vadd.f32 %v458, %v491
        %v524 = vadd.f32 %v459, %v492
        %v525 = vadd.f32 %v460, %v493
        %v526 = vadd.f32 %v461, %v494
        %v527 = vadd.f32 %v462, %v495
        %v528 = vadd.f32 %v463, %v496
        %v529 = vadd.f32 %v464, %v497
        %v530 = vadd.f32 %v465, %v498
        %v531 = vadd.f32 %v466, %v499
        %v532 = vadd.f32 %v467, %v500
        %v533 = vadd.f32 %v468, %v501
        %v534 = vadd.f32 %v469, %v502
        %v535 = vadd.f32 %v470, %v503
        %v536 = vadd.f32 %v471, %v504
        %v537 = vadd.f32 %v472, %v505
        %v538 = vadd.f32 %v473, %v506
        %v539 = vadd.f32 %v474, %v507
        %v540 = vadd.f32 %v475, %v508
        %v541 = vadd.f32 %v476, %v509
        %v542 = vadd.f32 %v477, %v510
        %v543 = vadd.f32 %v478, %v511
        %v544 = vadd.f32 %v479, %v512
        %v545 = vadd.f32 %v480, %v513
        %v546 = vadd.f32 %v481, %v514
        %v547 = vadd.f32 %v482, %v515
        %v548 = vadd.f32 %v483, %v516
        %v549 = vadd.f32 %v484, %v517
        %v550 = vadd.f32 %v485, %v518
        %v551 = vld [vmem:[%s3] sm:$0x1]
        %v552 = vpack.c.bf16 %v520, %v519
        %v553 = vpack.c.bf16 %v522, %v521
        %v554 = vpack.c.bf16 %v524, %v523
        %v555 = vpack.c.bf16 %v526, %v525
        %v556 = vpack.c.bf16 %v528, %v527
        %v557 = vpack.c.bf16 %v530, %v529
        %v558 = vpack.c.bf16 %v532, %v531
        %v559 = vpack.c.bf16 %v534, %v533
        %v560 = vpack.c.bf16 %v536, %v535
        %v561 = vpack.c.bf16 %v538, %v537
        %v562 = vpack.c.bf16 %v540, %v539
        %v563 = vpack.c.bf16 %v542, %v541
        %v564 = vpack.c.bf16 %v544, %v543
        %v565 = vpack.c.bf16 %v546, %v545
        %v566 = vpack.c.bf16 %v548, %v547
        %v567 = vpack.c.bf16 %v550, %v549
        %v569 = vshrl.u32 %v552, 16
        %v571 = vrot.slane %v569, 7
        %v572 = vshll.u32 %v552, 16
        %v574 = vor.u32 %v571, %v572
        %v576 = vshrl.u32 %v553, 16
        %v578 = vrot.slane %v576, 7
        %v579 = vshll.u32 %v553, 16
        %v581 = vor.u32 %v578, %v579
        %v583 = vshrl.u32 %v554, 16
        %v585 = vrot.slane %v583, 7
        %v586 = vshll.u32 %v554, 16
        %v588 = vor.u32 %v585, %v586
        %v590 = vshrl.u32 %v555, 16
        %v592 = vrot.slane %v590, 7
        %v593 = vshll.u32 %v555, 16
        %v595 = vor.u32 %v592, %v593
        %v597 = vshrl.u32 %v556, 16
        %v599 = vrot.slane %v597, 7
        %v600 = vshll.u32 %v556, 16
        %v602 = vor.u32 %v599, %v600
        %v604 = vshrl.u32 %v557, 16
        %v606 = vrot.slane %v604, 7
        %v607 = vshll.u32 %v557, 16
        %v609 = vor.u32 %v606, %v607
        %v611 = vshrl.u32 %v558, 16
        %v613 = vrot.slane %v611, 7
        %v614 = vshll.u32 %v558, 16
        %v616 = vor.u32 %v613, %v614
        %v618 = vshrl.u32 %v559, 16
        %v620 = vrot.slane %v618, 7
        %v621 = vshll.u32 %v559, 16
        %v623 = vor.u32 %v620, %v621
        %v625 = vshrl.u32 %v560, 16
        %v627 = vrot.slane %v625, 7
        %v628 = vshll.u32 %v560, 16
        %v630 = vor.u32 %v627, %v628
        %v632 = vshrl.u32 %v561, 16
        %v634 = vrot.slane %v632, 7
        %v635 = vshll.u32 %v561, 16
        %v637 = vor.u32 %v634, %v635
        %v639 = vshrl.u32 %v562, 16
        %v641 = vrot.slane %v639, 7
        %v642 = vshll.u32 %v562, 16
        %v644 = vor.u32 %v641, %v642
        %v646 = vshrl.u32 %v563, 16
        %v648 = vrot.slane %v646, 7
        %v649 = vshll.u32 %v563, 16
        %v651 = vor.u32 %v648, %v649
        %v653 = vshrl.u32 %v564, 16
        %v655 = vrot.slane %v653, 7
        %v656 = vshll.u32 %v564, 16
        %v658 = vor.u32 %v655, %v656
        %v660 = vshrl.u32 %v565, 16
        %v662 = vrot.slane %v660, 7
        %v663 = vshll.u32 %v565, 16
        %v665 = vor.u32 %v662, %v663
        %v667 = vshrl.u32 %v566, 16
        %v669 = vrot.slane %v667, 7
        %v670 = vshll.u32 %v566, 16
        %v672 = vor.u32 %v669, %v670
        %v674 = vshrl.u32 %v567, 16
        %v676 = vrot.slane %v674, 7
        %v677 = vshll.u32 %v567, 16
        %v679 = vor.u32 %v676, %v677
        %vm696 = vcmask 1040384
        %vm697 = vsmask.f32 256
        %vm698 = vmand %vm696, %vm697
        %v699 = vsel %vm698, 0, %v574
        %v700 = vsel %vm698, 0, %v581
        %v701 = vsel %vm698, 0, %v588
        %v702 = vsel %vm698, 0, %v595
        %v703 = vsel %vm698, 0, %v602
        %v704 = vsel %vm698, 0, %v609
        %v705 = vsel %vm698, 0, %v616
        %v706 = vsel %vm698, 0, %v623
        %v707 = vsel %vm698, 0, %v630
        %v708 = vsel %vm698, 0, %v637
        %v709 = vsel %vm698, 0, %v644
        %v710 = vsel %vm698, 0, %v651
        %v711 = vsel %vm698, 0, %v658
        %v712 = vsel %vm698, 0, %v665
        %v713 = vsel %vm698, 0, %v672
        %v714 = vsel %vm698, 0, %v679
        %v715 = vrot.slane %v572, 1
        %v716 = vor.u32 %v569, %v715
        %v717 = vrot.slane %v579, 1
        %v718 = vor.u32 %v576, %v717
        %v719 = vrot.slane %v586, 1
        %v720 = vor.u32 %v583, %v719
        %v721 = vrot.slane %v593, 1
        %v722 = vor.u32 %v590, %v721
        %v723 = vrot.slane %v600, 1
        %v724 = vor.u32 %v597, %v723
        %v725 = vrot.slane %v607, 1
        %v726 = vor.u32 %v604, %v725
        %v727 = vrot.slane %v614, 1
        %v728 = vor.u32 %v611, %v727
        %v729 = vrot.slane %v621, 1
        %v730 = vor.u32 %v618, %v729
        %v731 = vrot.slane %v628, 1
        %v732 = vor.u32 %v625, %v731
        %v733 = vrot.slane %v635, 1
        %v734 = vor.u32 %v632, %v733
        %v735 = vrot.slane %v642, 1
        %v736 = vor.u32 %v639, %v735
        %v737 = vrot.slane %v649, 1
        %v738 = vor.u32 %v646, %v737
        %v739 = vrot.slane %v656, 1
        %v740 = vor.u32 %v653, %v739
        %v741 = vrot.slane %v663, 1
        %v742 = vor.u32 %v660, %v741
        %v743 = vrot.slane %v670, 1
        %v744 = vor.u32 %v667, %v743
        %v745 = vrot.slane %v677, 1
        %v746 = vor.u32 %v674, %v745
        %vm763 = vcmask 1047552
        %vm764 = vsmask.f32 7424
        %vm765 = vmand %vm763, %vm764
        %v766 = vsel %vm765, %v716, 0
        %v767 = vsel %vm765, %v718, 0
        %v768 = vsel %vm765, %v720, 0
        %v769 = vsel %vm765, %v722, 0
        %v770 = vsel %vm765, %v724, 0
        %v771 = vsel %vm765, %v726, 0
        %v772 = vsel %vm765, %v728, 0
        %v773 = vsel %vm765, %v730, 0
        %v774 = vsel %vm765, %v732, 0
        %v775 = vsel %vm765, %v734, 0
        %v776 = vsel %vm765, %v736, 0
        %v777 = vsel %vm765, %v738, 0
        %v778 = vsel %vm765, %v740, 0
        %v779 = vsel %vm765, %v742, 0
        %v780 = vsel %vm765, %v744, 0
        %v781 = vsel %vm765, %v746, 0
        %798 = vrot.lane.b32.xlu0 %v552, 64
        %v799 = vpop.permute.xlu0 %798
        %800 = vrot.lane.b32.xlu0 %v553, 64
        %v801 = vpop.permute.xlu0 %800
        %802 = vrot.lane.b32.xlu0 %v554, 64
        %v803 = vpop.permute.xlu0 %802
        %804 = vrot.lane.b32.xlu0 %v555, 64
        %v805 = vpop.permute.xlu0 %804
        %806 = vrot.lane.b32.xlu0 %v556, 64
        %v807 = vpop.permute.xlu0 %806
        %808 = vrot.lane.b32.xlu0 %v557, 64
        %v809 = vpop.permute.xlu0 %808
        %810 = vrot.lane.b32.xlu0 %v558, 64
        %v811 = vpop.permute.xlu0 %810
        %812 = vrot.lane.b32.xlu0 %v559, 64
        %v813 = vpop.permute.xlu0 %812
        %814 = vrot.lane.b32.xlu0 %v560, 64
        %v815 = vpop.permute.xlu0 %814
        %816 = vrot.lane.b32.xlu0 %v561, 64
        %v817 = vpop.permute.xlu0 %816
        %818 = vrot.lane.b32.xlu0 %v562, 64
        %v819 = vpop.permute.xlu0 %818
        %820 = vrot.lane.b32.xlu0 %v563, 64
        %v821 = vpop.permute.xlu0 %820
        %822 = vrot.lane.b32.xlu0 %v564, 64
        %v823 = vpop.permute.xlu0 %822
        %824 = vrot.lane.b32.xlu0 %v565, 64
        %v825 = vpop.permute.xlu0 %824
        %826 = vrot.lane.b32.xlu0 %v566, 64
        %v827 = vpop.permute.xlu0 %826
        %828 = vrot.lane.b32.xlu0 %v567, 64
        %v829 = vpop.permute.xlu0 %828
        %vm830 = vcmask 523264
        %v833 = vsel %vm830, %v699, %v799
        %v837 = vsel %vm830, %v700, %v801
        %v841 = vsel %vm830, %v701, %v803
        %v845 = vsel %vm830, %v702, %v805
        %v849 = vsel %vm830, %v703, %v807
        %v853 = vsel %vm830, %v704, %v809
        %v857 = vsel %vm830, %v705, %v811
        %v861 = vsel %vm830, %v706, %v813
        %v865 = vsel %vm830, %v707, %v815
        %v869 = vsel %vm830, %v708, %v817
        %v873 = vsel %vm830, %v709, %v819
        %v877 = vsel %vm830, %v710, %v821
        %v881 = vsel %vm830, %v711, %v823
        %v885 = vsel %vm830, %v712, %v825
        %v889 = vsel %vm830, %v713, %v827
        %v893 = vsel %vm830, %v714, %v829
        %v895 = vld [vmem:[%s2] sm:$0xf]
        %v896 = vld [vmem:[%s2 + $0x4] sm:$0xf]
        %v897 = vld [vmem:[%s2 + $0x8] sm:$0xf]
        %v898 = vld [vmem:[%s2 + $0xc] sm:$0xf]
        %v899 = vld [vmem:[%s2 + $0x10] sm:$0xf]
        %v900 = vld [vmem:[%s2 + $0x14] sm:$0xf]
        %v901 = vld [vmem:[%s2 + $0x18] sm:$0xf]
        %v902 = vld [vmem:[%s2 + $0x1c] sm:$0xf]
        %v903 = vld [vmem:[%s2 + $0x20] sm:$0xf]
        %v904 = vld [vmem:[%s2 + $0x24] sm:$0xf]
        %v905 = vld [vmem:[%s2 + $0x28] sm:$0xf]
        %v906 = vld [vmem:[%s2 + $0x2c] sm:$0xf]
        %v907 = vld [vmem:[%s2 + $0x30] sm:$0xf]
        %v908 = vld [vmem:[%s2 + $0x34] sm:$0xf]
        %v909 = vld [vmem:[%s2 + $0x38] sm:$0xf]
        %v910 = vld [vmem:[%s2 + $0x3c] sm:$0xf]
        %v911 = vld [vmem:[%s2 + $0x40] sm:$0xf]
        %v912 = vld [vmem:[%s2 + $0x44] sm:$0xf]
        %v913 = vld [vmem:[%s2 + $0x48] sm:$0xf]
        %v914 = vld [vmem:[%s2 + $0x4c] sm:$0xf]
        %v915 = vld [vmem:[%s2 + $0x50] sm:$0xf]
        %v916 = vld [vmem:[%s2 + $0x54] sm:$0xf]
        %v917 = vld [vmem:[%s2 + $0x58] sm:$0xf]
        %v918 = vld [vmem:[%s2 + $0x5c] sm:$0xf]
        %v943 = vunpack.c.l.b16 %v895
        %v944 = vunpack.c.l.b16 %v896
        %v945 = vunpack.c.l.b16 %v897
        %v946 = vunpack.c.l.b16 %v898
        %v947 = vunpack.c.l.b16 %v899
        %v948 = vunpack.c.l.b16 %v900
        %v949 = vunpack.c.l.b16 %v901
        %v950 = vunpack.c.l.b16 %v902
        %v951 = vunpack.c.l.b16 %v903
        %v952 = vunpack.c.l.b16 %v904
        %v953 = vunpack.c.l.b16 %v905
        %v954 = vunpack.c.l.b16 %v906
        %v955 = vunpack.c.l.b16 %v907
        %v956 = vunpack.c.l.b16 %v908
        %v957 = vunpack.c.l.b16 %v909
        %v958 = vunpack.c.l.b16 %v910
        %v959 = vunpack.c.l.b16 %v911
        %v960 = vunpack.c.l.b16 %v912
        %v961 = vunpack.c.l.b16 %v913
        %v962 = vunpack.c.l.b16 %v914
        %v963 = vunpack.c.l.b16 %v915
        %v964 = vunpack.c.l.b16 %v916
        %v965 = vunpack.c.l.b16 %v917
        %v966 = vunpack.c.l.b16 %v918
        %v967 = vpack.c.b16 %v944, %v943
        %v968 = vpack.c.b16 %v946, %v945
        %v969 = vpack.c.b16 %v948, %v947
        %v970 = vpack.c.b16 %v950, %v949
        %v971 = vpack.c.b16 %v952, %v951
        %v972 = vpack.c.b16 %v954, %v953
        %v973 = vpack.c.b16 %v956, %v955
        %v974 = vpack.c.b16 %v958, %v957
        %v975 = vpack.c.b16 %v960, %v959
        %v976 = vpack.c.b16 %v962, %v961
        %v977 = vpack.c.b16 %v964, %v963
        %v978 = vpack.c.b16 %v966, %v965
        %v992 = vsel %vm830, %v766, 0
        %v995 = vsel %vm830, %v767, 0
        %v998 = vsel %vm830, %v768, 0
        %v1001 = vsel %vm830, %v769, 0
        %v1004 = vsel %vm830, %v770, 0
        %v1007 = vsel %vm830, %v771, 0
        %v1010 = vsel %vm830, %v772, 0
        %v1013 = vsel %vm830, %v773, 0
        %v1016 = vsel %vm830, %v774, 0
        %v1019 = vsel %vm830, %v775, 0
        %v1022 = vsel %vm830, %v776, 0
        %v1025 = vsel %vm830, %v777, 0
        %v1028 = vsel %vm830, %v778, 0
        %v1031 = vsel %vm830, %v779, 0
        %v1034 = vsel %vm830, %v780, 0
        %v1037 = vsel %vm830, %v781, 0
        %1039 = vmatprep.subr.bf16.mxu0 0
        %1040 = vmatpush1.bf16.msra.mxu0 %v974
        %1041 = vmatprep.subr.bf16.mxu0 0
        %1042 = vmatpush1.bf16.msra.mxu0 %v973
        %1043 = vmatprep.subr.bf16.mxu0 0
        %1044 = vmatpush1.bf16.msra.mxu0 %v972
        %1045 = vmatprep.subr.bf16.mxu0 0
        %1046 = vmatpush1.bf16.msra.mxu0 %v971
        %1047 = vmatprep.subr.bf16.mxu0 0
        %1048 = vmatpush1.bf16.msra.mxu0 %v970
        %1049 = vmatprep.subr.bf16.mxu0 0
        %1050 = vmatpush1.bf16.msra.mxu0 %v969
        %1051 = vmatprep.subr.bf16.mxu0 0
        %1052 = vmatpush1.bf16.msra.mxu0 %v968
        %1053 = vmatprep.subr.bf16.mxu0 0
        %1054 = vmatpush1.bf16.msra.mxu0 %v967
        %1055 = vmatprep.subr.bf16.mxu0 0
        %1056 = vmatpush2.bf16.msra.mxu0 0
        %1057 = vmatprep.subr.bf16.mxu0 0
        %1058 = vmatpush2.bf16.msra.mxu0 0
        %1059 = vmatprep.subr.bf16.mxu0 0
        %1060 = vmatpush2.bf16.msra.mxu0 0
        %1061 = vmatprep.subr.bf16.mxu0 0
        %1062 = vmatpush2.bf16.msra.mxu0 0
        %1063 = vmatprep.subr.bf16.mxu0 0
        %1064 = vmatpush2.bf16.msra.mxu0 %v978
        %1065 = vmatprep.subr.bf16.mxu0 0
        %1066 = vmatpush2.bf16.msra.mxu0 %v977
        %1067 = vmatprep.subr.bf16.mxu0 0
        %1068 = vmatpush2.bf16.msra.mxu0 %v976
        %1069 = vmatprep.subr.bf16.mxu0 0
        %1070 = vmatpush2.bf16.msra.mxu0 %v975
        %1071 = vmatprep.mubr.bf16.mxu0 %v992
        %1072 = vmatmul.mubr.bf16.gmra.mxu0 %v833
        %v1073 = vpop.f32.mrf.mxu0
        %v1074 = vadd.f32 0.0, %v1073
        %v1075 = vpop.f32.mrf.mxu0
        %v1076 = vpop.f32.mrf.mxu0
        %v1077 = vadd.f32 0.0, %v1076
        %v1078 = vpop.f32.mrf.mxu0
        %1079 = vmatprep.mubr.bf16.mxu0 %v995
        %1080 = vmatmul.mubr.bf16.gmra.mxu0 %v837
        %v1081 = vpop.f32.mrf.mxu0
        %v1082 = vadd.f32 0.0, %v1081
        %v1083 = vpop.f32.mrf.mxu0
        %v1084 = vpop.f32.mrf.mxu0
        %v1085 = vadd.f32 0.0, %v1084
        %v1086 = vpop.f32.mrf.mxu0
        %1087 = vmatprep.mubr.bf16.mxu0 %v998
        %1088 = vmatmul.mubr.bf16.gmra.mxu0 %v841
        %v1089 = vpop.f32.mrf.mxu0
        %v1090 = vadd.f32 0.0, %v1089
        %v1091 = vpop.f32.mrf.mxu0
        %v1092 = vpop.f32.mrf.mxu0
        %v1093 = vadd.f32 0.0, %v1092
        %v1094 = vpop.f32.mrf.mxu0
        %1095 = vmatprep.mubr.bf16.mxu0 %v1001
        %1096 = vmatmul.mubr.bf16.gmra.mxu0 %v845
        %v1097 = vpop.f32.mrf.mxu0
        %v1098 = vadd.f32 0.0, %v1097
        %v1099 = vpop.f32.mrf.mxu0
        %v1100 = vpop.f32.mrf.mxu0
        %v1101 = vadd.f32 0.0, %v1100
        %v1102 = vpop.f32.mrf.mxu0
        %1103 = vmatprep.mubr.bf16.mxu0 %v1004
        %1104 = vmatmul.mubr.bf16.gmra.mxu0 %v849
        %v1105 = vpop.f32.mrf.mxu0
        %v1106 = vadd.f32 0.0, %v1105
        %v1107 = vpop.f32.mrf.mxu0
        %v1108 = vpop.f32.mrf.mxu0
        %v1109 = vadd.f32 0.0, %v1108
        %v1110 = vpop.f32.mrf.mxu0
        %1111 = vmatprep.mubr.bf16.mxu0 %v1007
        %1112 = vmatmul.mubr.bf16.gmra.mxu0 %v853
        %v1113 = vpop.f32.mrf.mxu0
        %v1114 = vadd.f32 0.0, %v1113
        %v1115 = vpop.f32.mrf.mxu0
        %v1116 = vpop.f32.mrf.mxu0
        %v1117 = vadd.f32 0.0, %v1116
        %v1118 = vpop.f32.mrf.mxu0
        %1119 = vmatprep.mubr.bf16.mxu0 %v1010
        %1120 = vmatmul.mubr.bf16.gmra.mxu0 %v857
        %v1121 = vpop.f32.mrf.mxu0
        %v1122 = vadd.f32 0.0, %v1121
        %v1123 = vpop.f32.mrf.mxu0
        %v1124 = vpop.f32.mrf.mxu0
        %v1125 = vadd.f32 0.0, %v1124
        %v1126 = vpop.f32.mrf.mxu0
        %1127 = vmatprep.mubr.bf16.mxu0 %v1013
        %1128 = vmatmul.mubr.bf16.gmra.mxu0 %v861
        %v1129 = vpop.f32.mrf.mxu0
        %v1130 = vadd.f32 0.0, %v1129
        %v1131 = vpop.f32.mrf.mxu0
        %v1132 = vpop.f32.mrf.mxu0
        %v1133 = vadd.f32 0.0, %v1132
        %v1134 = vpop.f32.mrf.mxu0
        %1135 = vmatprep.mubr.bf16.mxu0 %v1016
        %1136 = vmatmul.mubr.bf16.gmra.mxu0 %v865
        %v1137 = vpop.f32.mrf.mxu0
        %v1138 = vadd.f32 0.0, %v1137
        %v1139 = vpop.f32.mrf.mxu0
        %v1140 = vpop.f32.mrf.mxu0
        %v1141 = vadd.f32 0.0, %v1140
        %v1142 = vpop.f32.mrf.mxu0
        %1143 = vmatprep.mubr.bf16.mxu0 %v1019
        %1144 = vmatmul.mubr.bf16.gmra.mxu0 %v869
        %v1145 = vpop.f32.mrf.mxu0
        %v1146 = vadd.f32 0.0, %v1145
        %v1147 = vpop.f32.mrf.mxu0
        %v1148 = vpop.f32.mrf.mxu0
        %v1149 = vadd.f32 0.0, %v1148
        %v1150 = vpop.f32.mrf.mxu0
        %1151 = vmatprep.mubr.bf16.mxu0 %v1022
        %1152 = vmatmul.mubr.bf16.gmra.mxu0 %v873
        %v1153 = vpop.f32.mrf.mxu0
        %v1154 = vadd.f32 0.0, %v1153
        %v1155 = vpop.f32.mrf.mxu0
        %v1156 = vpop.f32.mrf.mxu0
        %v1157 = vadd.f32 0.0, %v1156
        %v1158 = vpop.f32.mrf.mxu0
        %1159 = vmatprep.mubr.bf16.mxu0 %v1025
        %1160 = vmatmul.mubr.bf16.gmra.mxu0 %v877
        %v1161 = vpop.f32.mrf.mxu0
        %v1162 = vadd.f32 0.0, %v1161
        %v1163 = vpop.f32.mrf.mxu0
        %v1164 = vpop.f32.mrf.mxu0
        %v1165 = vadd.f32 0.0, %v1164
        %v1166 = vpop.f32.mrf.mxu0
        %1167 = vmatprep.mubr.bf16.mxu0 %v1028
        %1168 = vmatmul.mubr.bf16.gmra.mxu0 %v881
        %v1169 = vpop.f32.mrf.mxu0
        %v1170 = vadd.f32 0.0, %v1169
        %v1171 = vpop.f32.mrf.mxu0
        %v1172 = vpop.f32.mrf.mxu0
        %v1173 = vadd.f32 0.0, %v1172
        %v1174 = vpop.f32.mrf.mxu0
        %1175 = vmatprep.mubr.bf16.mxu0 %v1031
        %1176 = vmatmul.mubr.bf16.gmra.mxu0 %v885
        %v1177 = vpop.f32.mrf.mxu0
        %v1178 = vadd.f32 0.0, %v1177
        %v1179 = vpop.f32.mrf.mxu0
        %v1180 = vpop.f32.mrf.mxu0
        %v1181 = vadd.f32 0.0, %v1180
        %v1182 = vpop.f32.mrf.mxu0
        %1183 = vmatprep.mubr.bf16.mxu0 %v1034
        %1184 = vmatmul.mubr.bf16.gmra.mxu0 %v889
        %v1185 = vpop.f32.mrf.mxu0
        %v1186 = vadd.f32 0.0, %v1185
        %v1187 = vpop.f32.mrf.mxu0
        %v1188 = vpop.f32.mrf.mxu0
        %v1189 = vadd.f32 0.0, %v1188
        %v1190 = vpop.f32.mrf.mxu0
        %1191 = vmatprep.mubr.bf16.mxu0 %v1037
        %1192 = vmatmul.mubr.bf16.gmra.mxu0 %v893
        %v1193 = vpop.f32.mrf.mxu0
        %v1194 = vpop.f32.mrf.mxu0
        %v1195 = vpop.f32.mrf.mxu0
        %v1196 = vpop.f32.mrf.mxu0
        %1197 = vdwg.mxu0
        %v1198 = vld [vmem:[%s2 + $0x60] sm:$0xf]
        %v1199 = vld [vmem:[%s2 + $0x64] sm:$0xf]
        %v1200 = vld [vmem:[%s2 + $0x68] sm:$0xf]
        %v1201 = vld [vmem:[%s2 + $0x6c] sm:$0xf]
        %v1202 = vld [vmem:[%s2 + $0x70] sm:$0xf]
        %v1203 = vld [vmem:[%s2 + $0x74] sm:$0xf]
        %v1204 = vld [vmem:[%s2 + $0x78] sm:$0xf]
        %v1205 = vld [vmem:[%s2 + $0x7c] sm:$0xf]
        %v1206 = vld [vmem:[%s2 + $0x80] sm:$0xf]
        %v1207 = vld [vmem:[%s2 + $0x84] sm:$0xf]
        %v1208 = vld [vmem:[%s2 + $0x88] sm:$0xf]
        %v1209 = vld [vmem:[%s2 + $0x8c] sm:$0xf]
        %v1210 = vld [vmem:[%s2 + $0x90] sm:$0xf]
        %v1211 = vld [vmem:[%s2 + $0x94] sm:$0xf]
        %v1212 = vld [vmem:[%s2 + $0x98] sm:$0xf]
        %v1213 = vld [vmem:[%s2 + $0x9c] sm:$0xf]
        %v1214 = vld [vmem:[%s2 + $0xa0] sm:$0xf]
        %v1215 = vld [vmem:[%s2 + $0xa4] sm:$0xf]
        %v1216 = vld [vmem:[%s2 + $0xa8] sm:$0xf]
        %v1217 = vld [vmem:[%s2 + $0xac] sm:$0xf]
        %v1218 = vld [vmem:[%s2 + $0xb0] sm:$0xf]
        %v1219 = vld [vmem:[%s2 + $0xb4] sm:$0xf]
        %v1220 = vld [vmem:[%s2 + $0xb8] sm:$0xf]
        %v1221 = vld [vmem:[%s2 + $0xbc] sm:$0xf]
        %v1246 = vunpack.c.l.b16 %v1198
        %v1247 = vunpack.c.l.b16 %v1199
        %v1248 = vunpack.c.l.b16 %v1200
        %v1249 = vunpack.c.l.b16 %v1201
        %v1250 = vunpack.c.l.b16 %v1202
        %v1251 = vunpack.c.l.b16 %v1203
        %v1252 = vunpack.c.l.b16 %v1204
        %v1253 = vunpack.c.l.b16 %v1205
        %v1254 = vunpack.c.l.b16 %v1206
        %v1255 = vunpack.c.l.b16 %v1207
        %v1256 = vunpack.c.l.b16 %v1208
        %v1257 = vunpack.c.l.b16 %v1209
        %v1258 = vunpack.c.l.b16 %v1210
        %v1259 = vunpack.c.l.b16 %v1211
        %v1260 = vunpack.c.l.b16 %v1212
        %v1261 = vunpack.c.l.b16 %v1213
        %v1262 = vunpack.c.l.b16 %v1214
        %v1263 = vunpack.c.l.b16 %v1215
        %v1264 = vunpack.c.l.b16 %v1216
        %v1265 = vunpack.c.l.b16 %v1217
        %v1266 = vunpack.c.l.b16 %v1218
        %v1267 = vunpack.c.l.b16 %v1219
        %v1268 = vunpack.c.l.b16 %v1220
        %v1269 = vunpack.c.l.b16 %v1221
        %v1270 = vpack.c.b16 %v1247, %v1246
        %v1271 = vpack.c.b16 %v1249, %v1248
        %v1272 = vpack.c.b16 %v1251, %v1250
        %v1273 = vpack.c.b16 %v1253, %v1252
        %v1274 = vpack.c.b16 %v1255, %v1254
        %v1275 = vpack.c.b16 %v1257, %v1256
        %v1276 = vpack.c.b16 %v1259, %v1258
        %v1277 = vpack.c.b16 %v1261, %v1260
        %v1278 = vpack.c.b16 %v1263, %v1262
        %v1279 = vpack.c.b16 %v1265, %v1264
        %v1280 = vpack.c.b16 %v1267, %v1266
        %v1281 = vpack.c.b16 %v1269, %v1268
        %1294 = vmatprep.subr.bf16.mxu0 0
        %1295 = vmatpush1.bf16.msra.mxu0 %v1277
        %1296 = vmatprep.subr.bf16.mxu0 0
        %1297 = vmatpush1.bf16.msra.mxu0 %v1276
        %1298 = vmatprep.subr.bf16.mxu0 0
        %1299 = vmatpush1.bf16.msra.mxu0 %v1275
        %1300 = vmatprep.subr.bf16.mxu0 0
        %1301 = vmatpush1.bf16.msra.mxu0 %v1274
        %1302 = vmatprep.subr.bf16.mxu0 0
        %1303 = vmatpush1.bf16.msra.mxu0 %v1273
        %1304 = vmatprep.subr.bf16.mxu0 0
        %1305 = vmatpush1.bf16.msra.mxu0 %v1272
        %1306 = vmatprep.subr.bf16.mxu0 0
        %1307 = vmatpush1.bf16.msra.mxu0 %v1271
        %1308 = vmatprep.subr.bf16.mxu0 0
        %1309 = vmatpush1.bf16.msra.mxu0 %v1270
        %1310 = vmatprep.subr.bf16.mxu0 0
        %1311 = vmatpush2.bf16.msra.mxu0 0
        %1312 = vmatprep.subr.bf16.mxu0 0
        %1313 = vmatpush2.bf16.msra.mxu0 0
        %1314 = vmatprep.subr.bf16.mxu0 0
        %1315 = vmatpush2.bf16.msra.mxu0 0
        %1316 = vmatprep.subr.bf16.mxu0 0
        %1317 = vmatpush2.bf16.msra.mxu0 0
        %1318 = vmatprep.subr.bf16.mxu0 0
        %1319 = vmatpush2.bf16.msra.mxu0 %v1281
        %1320 = vmatprep.subr.bf16.mxu0 0
        %1321 = vmatpush2.bf16.msra.mxu0 %v1280
        %1322 = vmatprep.subr.bf16.mxu0 0
        %1323 = vmatpush2.bf16.msra.mxu0 %v1279
        %1324 = vmatprep.subr.bf16.mxu0 0
        %1325 = vmatpush2.bf16.msra.mxu0 %v1278
        %1326 = vmatprep.mubr.bf16.mxu0 %v992
        %1327 = vmatmul.mubr.bf16.gmra.mxu0 %v833
        %v1328 = vpop.f32.mrf.mxu0
        %v1329 = vadd.f32 0.0, %v1328
        %v1330 = vpop.f32.mrf.mxu0
        %v1331 = vpop.f32.mrf.mxu0
        %v1332 = vadd.f32 0.0, %v1331
        %v1333 = vpop.f32.mrf.mxu0
        %1334 = vmatprep.mubr.bf16.mxu0 %v995
        %1335 = vmatmul.mubr.bf16.gmra.mxu0 %v837
        %v1336 = vpop.f32.mrf.mxu0
        %v1337 = vadd.f32 0.0, %v1336
        %v1338 = vpop.f32.mrf.mxu0
        %v1339 = vpop.f32.mrf.mxu0
        %v1340 = vadd.f32 0.0, %v1339
        %v1341 = vpop.f32.mrf.mxu0
        %1342 = vmatprep.mubr.bf16.mxu0 %v998
        %1343 = vmatmul.mubr.bf16.gmra.mxu0 %v841
        %v1344 = vpop.f32.mrf.mxu0
        %v1345 = vadd.f32 0.0, %v1344
        %v1346 = vpop.f32.mrf.mxu0
        %v1347 = vpop.f32.mrf.mxu0
        %v1348 = vadd.f32 0.0, %v1347
        %v1349 = vpop.f32.mrf.mxu0
        %1350 = vmatprep.mubr.bf16.mxu0 %v1001
        %1351 = vmatmul.mubr.bf16.gmra.mxu0 %v845
        %v1352 = vpop.f32.mrf.mxu0
        %v1353 = vadd.f32 0.0, %v1352
        %v1354 = vpop.f32.mrf.mxu0
        %v1355 = vpop.f32.mrf.mxu0
        %v1356 = vadd.f32 0.0, %v1355
        %v1357 = vpop.f32.mrf.mxu0
        %1358 = vmatprep.mubr.bf16.mxu0 %v1004
        %1359 = vmatmul.mubr.bf16.gmra.mxu0 %v849
        %v1360 = vpop.f32.mrf.mxu0
        %v1361 = vadd.f32 0.0, %v1360
        %v1362 = vpop.f32.mrf.mxu0
        %v1363 = vpop.f32.mrf.mxu0
        %v1364 = vadd.f32 0.0, %v1363
        %v1365 = vpop.f32.mrf.mxu0
        %1366 = vmatprep.mubr.bf16.mxu0 %v1007
        %1367 = vmatmul.mubr.bf16.gmra.mxu0 %v853
        %v1368 = vpop.f32.mrf.mxu0
        %v1369 = vadd.f32 0.0, %v1368
        %v1370 = vpop.f32.mrf.mxu0
        %v1371 = vpop.f32.mrf.mxu0
        %v1372 = vadd.f32 0.0, %v1371
        %v1373 = vpop.f32.mrf.mxu0
        %1374 = vmatprep.mubr.bf16.mxu0 %v1010
        %1375 = vmatmul.mubr.bf16.gmra.mxu0 %v857
        %v1376 = vpop.f32.mrf.mxu0
        %v1377 = vadd.f32 0.0, %v1376
        %v1378 = vpop.f32.mrf.mxu0
        %v1379 = vpop.f32.mrf.mxu0
        %v1380 = vadd.f32 0.0, %v1379
        %v1381 = vpop.f32.mrf.mxu0
        %1382 = vmatprep.mubr.bf16.mxu0 %v1013
        %1383 = vmatmul.mubr.bf16.gmra.mxu0 %v861
        %v1384 = vpop.f32.mrf.mxu0
        %v1385 = vadd.f32 0.0, %v1384
        %v1386 = vpop.f32.mrf.mxu0
        %v1387 = vpop.f32.mrf.mxu0
        %v1388 = vadd.f32 0.0, %v1387
        %v1389 = vpop.f32.mrf.mxu0
        %1390 = vmatprep.mubr.bf16.mxu0 %v1016
        %1391 = vmatmul.mubr.bf16.gmra.mxu0 %v865
        %v1392 = vpop.f32.mrf.mxu0
        %v1393 = vadd.f32 0.0, %v1392
        %v1394 = vpop.f32.mrf.mxu0
        %v1395 = vpop.f32.mrf.mxu0
        %v1396 = vadd.f32 0.0, %v1395
        %v1397 = vpop.f32.mrf.mxu0
        %1398 = vmatprep.mubr.bf16.mxu0 %v1019
        %1399 = vmatmul.mubr.bf16.gmra.mxu0 %v869
        %v1400 = vpop.f32.mrf.mxu0
        %v1401 = vadd.f32 0.0, %v1400
        %v1402 = vpop.f32.mrf.mxu0
        %v1403 = vpop.f32.mrf.mxu0
        %v1404 = vadd.f32 0.0, %v1403
        %v1405 = vpop.f32.mrf.mxu0
        %1406 = vmatprep.mubr.bf16.mxu0 %v1022
        %1407 = vmatmul.mubr.bf16.gmra.mxu0 %v873
        %v1408 = vpop.f32.mrf.mxu0
        %v1409 = vadd.f32 0.0, %v1408
        %v1410 = vpop.f32.mrf.mxu0
        %v1411 = vpop.f32.mrf.mxu0
        %v1412 = vadd.f32 0.0, %v1411
        %v1413 = vpop.f32.mrf.mxu0
        %1414 = vmatprep.mubr.bf16.mxu0 %v1025
        %1415 = vmatmul.mubr.bf16.gmra.mxu0 %v877
        %v1416 = vpop.f32.mrf.mxu0
        %v1417 = vadd.f32 0.0, %v1416
        %v1418 = vpop.f32.mrf.mxu0
        %v1419 = vpop.f32.mrf.mxu0
        %v1420 = vadd.f32 0.0, %v1419
        %v1421 = vpop.f32.mrf.mxu0
        %1422 = vmatprep.mubr.bf16.mxu0 %v1028
        %1423 = vmatmul.mubr.bf16.gmra.mxu0 %v881
        %v1424 = vpop.f32.mrf.mxu0
        %v1425 = vadd.f32 0.0, %v1424
        %v1426 = vpop.f32.mrf.mxu0
        %v1427 = vpop.f32.mrf.mxu0
        %v1428 = vadd.f32 0.0, %v1427
        %v1429 = vpop.f32.mrf.mxu0
        %1430 = vmatprep.mubr.bf16.mxu0 %v1031
        %1431 = vmatmul.mubr.bf16.gmra.mxu0 %v885
        %v1432 = vpop.f32.mrf.mxu0
        %v1433 = vadd.f32 0.0, %v1432
        %v1434 = vpop.f32.mrf.mxu0
        %v1435 = vpop.f32.mrf.mxu0
        %v1436 = vadd.f32 0.0, %v1435
        %v1437 = vpop.f32.mrf.mxu0
        %1438 = vmatprep.mubr.bf16.mxu0 %v1034
        %1439 = vmatmul.mubr.bf16.gmra.mxu0 %v889
        %v1440 = vpop.f32.mrf.mxu0
        %v1441 = vadd.f32 0.0, %v1440
        %v1442 = vpop.f32.mrf.mxu0
        %v1443 = vpop.f32.mrf.mxu0
        %v1444 = vadd.f32 0.0, %v1443
        %v1445 = vpop.f32.mrf.mxu0
        %1446 = vmatprep.mubr.bf16.mxu0 %v1037
        %1447 = vmatmul.mubr.bf16.gmra.mxu0 %v893
        %v1448 = vpop.f32.mrf.mxu0
        %v1449 = vadd.f32 0.0, %v1448
        %v1450 = vpop.f32.mrf.mxu0
        %v1451 = vpop.f32.mrf.mxu0
        %v1452 = vadd.f32 0.0, %v1451
        %v1453 = vpop.f32.mrf.mxu0
        %1454 = vdwg.mxu0
        %v1455 = vadd.f32 %v1329, 0.0
        %v1456 = vadd.f32 %v1332, 0.0
        %v1457 = vadd.f32 %v1074, %v1337
        %v1458 = vadd.f32 %v1077, %v1340
        %v1459 = vadd.f32 %v1082, %v1345
        %v1460 = vadd.f32 %v1085, %v1348
        %v1461 = vadd.f32 %v1090, %v1353
        %v1462 = vadd.f32 %v1093, %v1356
        %v1463 = vadd.f32 %v1098, %v1361
        %v1464 = vadd.f32 %v1101, %v1364
        %v1465 = vadd.f32 %v1106, %v1369
        %v1466 = vadd.f32 %v1109, %v1372
        %v1467 = vadd.f32 %v1114, %v1377
        %v1468 = vadd.f32 %v1117, %v1380
        %v1469 = vadd.f32 %v1122, %v1385
        %v1470 = vadd.f32 %v1125, %v1388
        %v1471 = vadd.f32 %v1130, %v1393
        %v1472 = vadd.f32 %v1133, %v1396
        %v1473 = vadd.f32 %v1138, %v1401
        %v1474 = vadd.f32 %v1141, %v1404
        %v1475 = vadd.f32 %v1146, %v1409
        %v1476 = vadd.f32 %v1149, %v1412
        %v1477 = vadd.f32 %v1154, %v1417
        %v1478 = vadd.f32 %v1157, %v1420
        %v1479 = vadd.f32 %v1162, %v1425
        %v1480 = vadd.f32 %v1165, %v1428
        %v1481 = vadd.f32 %v1170, %v1433
        %v1482 = vadd.f32 %v1173, %v1436
        %v1483 = vadd.f32 %v1178, %v1441
        %v1484 = vadd.f32 %v1181, %v1444
        %v1485 = vadd.f32 %v1186, %v1449
        %v1486 = vadd.f32 %v1189, %v1452
        %v1487 = vld [vmem:[%s2 + $0xc0] sm:$0xf]
        %v1488 = vld [vmem:[%s2 + $0xc4] sm:$0xf]
        %v1489 = vld [vmem:[%s2 + $0xc8] sm:$0xf]
        %v1490 = vld [vmem:[%s2 + $0xcc] sm:$0xf]
        %v1491 = vld [vmem:[%s2 + $0xd0] sm:$0xf]
        %v1492 = vld [vmem:[%s2 + $0xd4] sm:$0xf]
        %v1493 = vld [vmem:[%s2 + $0xd8] sm:$0xf]
        %v1494 = vld [vmem:[%s2 + $0xdc] sm:$0xf]
        %v1495 = vld [vmem:[%s2 + $0xe0] sm:$0xf]
        %v1496 = vld [vmem:[%s2 + $0xe4] sm:$0xf]
        %v1497 = vld [vmem:[%s2 + $0xe8] sm:$0xf]
        %v1498 = vld [vmem:[%s2 + $0xec] sm:$0xf]
        %v1499 = vld [vmem:[%s2 + $0xf0] sm:$0xf]
        %v1500 = vld [vmem:[%s2 + $0xf4] sm:$0xf]
        %v1501 = vld [vmem:[%s2 + $0xf8] sm:$0xf]
        %v1502 = vld [vmem:[%s2 + $0xfc] sm:$0xf]
        %v1503 = vld [vmem:[%s2 + $0x100] sm:$0xf]
        %v1504 = vld [vmem:[%s2 + $0x104] sm:$0xf]
        %v1505 = vld [vmem:[%s2 + $0x108] sm:$0xf]
        %v1506 = vld [vmem:[%s2 + $0x10c] sm:$0xf]
        %v1507 = vld [vmem:[%s2 + $0x110] sm:$0xf]
        %v1508 = vld [vmem:[%s2 + $0x114] sm:$0xf]
        %v1509 = vld [vmem:[%s2 + $0x118] sm:$0xf]
        %v1510 = vld [vmem:[%s2 + $0x11c] sm:$0xf]
        %v1535 = vunpack.c.l.b16 %v1487
        %v1536 = vunpack.c.l.b16 %v1488
        %v1537 = vunpack.c.l.b16 %v1489
        %v1538 = vunpack.c.l.b16 %v1490
        %v1539 = vunpack.c.l.b16 %v1491
        %v1540 = vunpack.c.l.b16 %v1492
        %v1541 = vunpack.c.l.b16 %v1493
        %v1542 = vunpack.c.l.b16 %v1494
        %v1543 = vunpack.c.l.b16 %v1495
        %v1544 = vunpack.c.l.b16 %v1496
        %v1545 = vunpack.c.l.b16 %v1497
        %v1546 = vunpack.c.l.b16 %v1498
        %v1547 = vunpack.c.l.b16 %v1499
        %v1548 = vunpack.c.l.b16 %v1500
        %v1549 = vunpack.c.l.b16 %v1501
        %v1550 = vunpack.c.l.b16 %v1502
        %v1551 = vunpack.c.l.b16 %v1503
        %v1552 = vunpack.c.l.b16 %v1504
        %v1553 = vunpack.c.l.b16 %v1505
        %v1554 = vunpack.c.l.b16 %v1506
        %v1555 = vunpack.c.l.b16 %v1507
        %v1556 = vunpack.c.l.b16 %v1508
        %v1557 = vunpack.c.l.b16 %v1509
        %v1558 = vunpack.c.l.b16 %v1510
        %v1559 = vpack.c.b16 %v1536, %v1535
        %v1560 = vpack.c.b16 %v1538, %v1537
        %v1561 = vpack.c.b16 %v1540, %v1539
        %v1562 = vpack.c.b16 %v1542, %v1541
        %v1563 = vpack.c.b16 %v1544, %v1543
        %v1564 = vpack.c.b16 %v1546, %v1545
        %v1565 = vpack.c.b16 %v1548, %v1547
        %v1566 = vpack.c.b16 %v1550, %v1549
        %v1567 = vpack.c.b16 %v1552, %v1551
        %v1568 = vpack.c.b16 %v1554, %v1553
        %v1569 = vpack.c.b16 %v1556, %v1555
        %v1570 = vpack.c.b16 %v1558, %v1557
        %1583 = vmatprep.subr.bf16.mxu0 0
        %1584 = vmatpush1.bf16.msra.mxu0 %v1566
        %1585 = vmatprep.subr.bf16.mxu0 0
        %1586 = vmatpush1.bf16.msra.mxu0 %v1565
        %1587 = vmatprep.subr.bf16.mxu0 0
        %1588 = vmatpush1.bf16.msra.mxu0 %v1564
        %1589 = vmatprep.subr.bf16.mxu0 0
        %1590 = vmatpush1.bf16.msra.mxu0 %v1563
        %1591 = vmatprep.subr.bf16.mxu0 0
        %1592 = vmatpush1.bf16.msra.mxu0 %v1562
        %1593 = vmatprep.subr.bf16.mxu0 0
        %1594 = vmatpush1.bf16.msra.mxu0 %v1561
        %1595 = vmatprep.subr.bf16.mxu0 0
        %1596 = vmatpush1.bf16.msra.mxu0 %v1560
        %1597 = vmatprep.subr.bf16.mxu0 0
        %1598 = vmatpush1.bf16.msra.mxu0 %v1559
        %1599 = vmatprep.subr.bf16.mxu0 0
        %1600 = vmatpush2.bf16.msra.mxu0 0
        %1601 = vmatprep.subr.bf16.mxu0 0
        %1602 = vmatpush2.bf16.msra.mxu0 0
        %1603 = vmatprep.subr.bf16.mxu0 0
        %1604 = vmatpush2.bf16.msra.mxu0 0
        %1605 = vmatprep.subr.bf16.mxu0 0
        %1606 = vmatpush2.bf16.msra.mxu0 0
        %1607 = vmatprep.subr.bf16.mxu0 0
        %1608 = vmatpush2.bf16.msra.mxu0 %v1570
        %1609 = vmatprep.subr.bf16.mxu0 0
        %1610 = vmatpush2.bf16.msra.mxu0 %v1569
        %1611 = vmatprep.subr.bf16.mxu0 0
        %1612 = vmatpush2.bf16.msra.mxu0 %v1568
        %1613 = vmatprep.subr.bf16.mxu0 0
        %1614 = vmatpush2.bf16.msra.mxu0 %v1567
        %1615 = vmatprep.mubr.bf16.mxu0 %v992
        %1616 = vmatmul.mubr.bf16.gmra.mxu0 %v833
        %v1617 = vpop.f32.mrf.mxu0
        %v1618 = vpop.f32.mrf.mxu0
        %v1619 = vpop.f32.mrf.mxu0
        %v1620 = vpop.f32.mrf.mxu0
        %1621 = vmatprep.mubr.bf16.mxu0 %v995
        %1622 = vmatmul.mubr.bf16.gmra.mxu0 %v837
        %v1623 = vpop.f32.mrf.mxu0
        %v1624 = vadd.f32 0.0, %v1623
        %v1625 = vpop.f32.mrf.mxu0
        %v1626 = vpop.f32.mrf.mxu0
        %v1627 = vadd.f32 0.0, %v1626
        %v1628 = vpop.f32.mrf.mxu0
        %1629 = vmatprep.mubr.bf16.mxu0 %v998
        %1630 = vmatmul.mubr.bf16.gmra.mxu0 %v841
        %v1631 = vpop.f32.mrf.mxu0
        %v1632 = vadd.f32 0.0, %v1631
        %v1633 = vpop.f32.mrf.mxu0
        %v1634 = vpop.f32.mrf.mxu0
        %v1635 = vadd.f32 0.0, %v1634
        %v1636 = vpop.f32.mrf.mxu0
        %1637 = vmatprep.mubr.bf16.mxu0 %v1001
        %1638 = vmatmul.mubr.bf16.gmra.mxu0 %v845
        %v1639 = vpop.f32.mrf.mxu0
        %v1640 = vadd.f32 0.0, %v1639
        %v1641 = vpop.f32.mrf.mxu0
        %v1642 = vpop.f32.mrf.mxu0
        %v1643 = vadd.f32 0.0, %v1642
        %v1644 = vpop.f32.mrf.mxu0
        %1645 = vmatprep.mubr.bf16.mxu0 %v1004
        %1646 = vmatmul.mubr.bf16.gmra.mxu0 %v849
        %v1647 = vpop.f32.mrf.mxu0
        %v1648 = vadd.f32 0.0, %v1647
        %v1649 = vpop.f32.mrf.mxu0
        %v1650 = vpop.f32.mrf.mxu0
        %v1651 = vadd.f32 0.0, %v1650
        %v1652 = vpop.f32.mrf.mxu0
        %1653 = vmatprep.mubr.bf16.mxu0 %v1007
        %1654 = vmatmul.mubr.bf16.gmra.mxu0 %v853
        %v1655 = vpop.f32.mrf.mxu0
        %v1656 = vadd.f32 0.0, %v1655
        %v1657 = vpop.f32.mrf.mxu0
        %v1658 = vpop.f32.mrf.mxu0
        %v1659 = vadd.f32 0.0, %v1658
        %v1660 = vpop.f32.mrf.mxu0
        %1661 = vmatprep.mubr.bf16.mxu0 %v1010
        %1662 = vmatmul.mubr.bf16.gmra.mxu0 %v857
        %v1663 = vpop.f32.mrf.mxu0
        %v1664 = vadd.f32 0.0, %v1663
        %v1665 = vpop.f32.mrf.mxu0
        %v1666 = vpop.f32.mrf.mxu0
        %v1667 = vadd.f32 0.0, %v1666
        %v1668 = vpop.f32.mrf.mxu0
        %1669 = vmatprep.mubr.bf16.mxu0 %v1013
        %1670 = vmatmul.mubr.bf16.gmra.mxu0 %v861
        %v1671 = vpop.f32.mrf.mxu0
        %v1672 = vadd.f32 0.0, %v1671
        %v1673 = vpop.f32.mrf.mxu0
        %v1674 = vpop.f32.mrf.mxu0
        %v1675 = vadd.f32 0.0, %v1674
        %v1676 = vpop.f32.mrf.mxu0
        %1677 = vmatprep.mubr.bf16.mxu0 %v1016
        %1678 = vmatmul.mubr.bf16.gmra.mxu0 %v865
        %v1679 = vpop.f32.mrf.mxu0
        %v1680 = vadd.f32 0.0, %v1679
        %v1681 = vpop.f32.mrf.mxu0
        %v1682 = vpop.f32.mrf.mxu0
        %v1683 = vadd.f32 0.0, %v1682
        %v1684 = vpop.f32.mrf.mxu0
        %1685 = vmatprep.mubr.bf16.mxu0 %v1019
        %1686 = vmatmul.mubr.bf16.gmra.mxu0 %v869
        %v1687 = vpop.f32.mrf.mxu0
        %v1688 = vadd.f32 0.0, %v1687
        %v1689 = vpop.f32.mrf.mxu0
        %v1690 = vpop.f32.mrf.mxu0
        %v1691 = vadd.f32 0.0, %v1690
        %v1692 = vpop.f32.mrf.mxu0
        %1693 = vmatprep.mubr.bf16.mxu0 %v1022
        %1694 = vmatmul.mubr.bf16.gmra.mxu0 %v873
        %v1695 = vpop.f32.mrf.mxu0
        %v1696 = vadd.f32 0.0, %v1695
        %v1697 = vpop.f32.mrf.mxu0
        %v1698 = vpop.f32.mrf.mxu0
        %v1699 = vadd.f32 0.0, %v1698
        %v1700 = vpop.f32.mrf.mxu0
        %1701 = vmatprep.mubr.bf16.mxu0 %v1025
        %1702 = vmatmul.mubr.bf16.gmra.mxu0 %v877
        %v1703 = vpop.f32.mrf.mxu0
        %v1704 = vadd.f32 0.0, %v1703
        %v1705 = vpop.f32.mrf.mxu0
        %v1706 = vpop.f32.mrf.mxu0
        %v1707 = vadd.f32 0.0, %v1706
        %v1708 = vpop.f32.mrf.mxu0
        %1709 = vmatprep.mubr.bf16.mxu0 %v1028
        %1710 = vmatmul.mubr.bf16.gmra.mxu0 %v881
        %v1711 = vpop.f32.mrf.mxu0
        %v1712 = vadd.f32 0.0, %v1711
        %v1713 = vpop.f32.mrf.mxu0
        %v1714 = vpop.f32.mrf.mxu0
        %v1715 = vadd.f32 0.0, %v1714
        %v1716 = vpop.f32.mrf.mxu0
        %1717 = vmatprep.mubr.bf16.mxu0 %v1031
        %1718 = vmatmul.mubr.bf16.gmra.mxu0 %v885
        %v1719 = vpop.f32.mrf.mxu0
        %v1720 = vadd.f32 0.0, %v1719
        %v1721 = vpop.f32.mrf.mxu0
        %v1722 = vpop.f32.mrf.mxu0
        %v1723 = vadd.f32 0.0, %v1722
        %v1724 = vpop.f32.mrf.mxu0
        %1725 = vmatprep.mubr.bf16.mxu0 %v1034
        %1726 = vmatmul.mubr.bf16.gmra.mxu0 %v889
        %v1727 = vpop.f32.mrf.mxu0
        %v1728 = vadd.f32 0.0, %v1727
        %v1729 = vpop.f32.mrf.mxu0
        %v1730 = vpop.f32.mrf.mxu0
        %v1731 = vadd.f32 0.0, %v1730
        %v1732 = vpop.f32.mrf.mxu0
        %1733 = vmatprep.mubr.bf16.mxu0 %v1037
        %1734 = vmatmul.mubr.bf16.gmra.mxu0 %v893
        %v1735 = vpop.f32.mrf.mxu0
        %v1736 = vadd.f32 0.0, %v1735
        %v1737 = vpop.f32.mrf.mxu0
        %v1738 = vpop.f32.mrf.mxu0
        %v1739 = vadd.f32 0.0, %v1738
        %v1740 = vpop.f32.mrf.mxu0
        %1741 = vdwg.mxu0
        %v1742 = vadd.f32 %v1455, %v1624
        %v1743 = vadd.f32 %v1456, %v1627
        %v1744 = vadd.f32 %v1457, %v1632
        %v1745 = vadd.f32 %v1458, %v1635
        %v1746 = vadd.f32 %v1459, %v1640
        %v1747 = vadd.f32 %v1460, %v1643
        %v1748 = vadd.f32 %v1461, %v1648
        %v1749 = vadd.f32 %v1462, %v1651
        %v1750 = vadd.f32 %v1463, %v1656
        %v1751 = vadd.f32 %v1464, %v1659
        %v1752 = vadd.f32 %v1465, %v1664
        %v1753 = vadd.f32 %v1466, %v1667
        %v1754 = vadd.f32 %v1467, %v1672
        %v1755 = vadd.f32 %v1468, %v1675
        %v1756 = vadd.f32 %v1469, %v1680
        %v1757 = vadd.f32 %v1470, %v1683
        %v1758 = vadd.f32 %v1471, %v1688
        %v1759 = vadd.f32 %v1472, %v1691
        %v1760 = vadd.f32 %v1473, %v1696
        %v1761 = vadd.f32 %v1474, %v1699
        %v1762 = vadd.f32 %v1475, %v1704
        %v1763 = vadd.f32 %v1476, %v1707
        %v1764 = vadd.f32 %v1477, %v1712
        %v1765 = vadd.f32 %v1478, %v1715
        %v1766 = vadd.f32 %v1479, %v1720
        %v1767 = vadd.f32 %v1480, %v1723
        %v1768 = vadd.f32 %v1481, %v1728
        %v1769 = vadd.f32 %v1482, %v1731
        %v1770 = vadd.f32 %v1483, %v1736
        %v1771 = vadd.f32 %v1484, %v1739
        %v1772 = vadd.f32 %v1485, 0.0
        %v1773 = vadd.f32 %v1486, 0.0
        %v1775 = vlaneseq
        %v1776 = vshrl.u32 %v1775, 7
        %v1777 = vsub.s32 0, %v1776
        %v1778 = vrot.slane %v551, %v1777
        %v1780 = vadd.f32 %v1742, %v1778
        %v1781 = vadd.f32 %v1743, %v1778
        %v1782 = vadd.f32 %v1744, %v1778
        %v1783 = vadd.f32 %v1745, %v1778
        %v1784 = vadd.f32 %v1746, %v1778
        %v1785 = vadd.f32 %v1747, %v1778
        %v1786 = vadd.f32 %v1748, %v1778
        %v1787 = vadd.f32 %v1749, %v1778
        %v1788 = vadd.f32 %v1750, %v1778
        %v1789 = vadd.f32 %v1751, %v1778
        %v1790 = vadd.f32 %v1752, %v1778
        %v1791 = vadd.f32 %v1753, %v1778
        %v1792 = vadd.f32 %v1754, %v1778
        %v1793 = vadd.f32 %v1755, %v1778
        %v1794 = vadd.f32 %v1756, %v1778
        %v1795 = vadd.f32 %v1757, %v1778
        %v1796 = vadd.f32 %v1758, %v1778
        %v1797 = vadd.f32 %v1759, %v1778
        %v1798 = vadd.f32 %v1760, %v1778
        %v1799 = vadd.f32 %v1761, %v1778
        %v1800 = vadd.f32 %v1762, %v1778
        %v1801 = vadd.f32 %v1763, %v1778
        %v1802 = vadd.f32 %v1764, %v1778
        %v1803 = vadd.f32 %v1765, %v1778
        %v1804 = vadd.f32 %v1766, %v1778
        %v1805 = vadd.f32 %v1767, %v1778
        %v1806 = vadd.f32 %v1768, %v1778
        %v1807 = vadd.f32 %v1769, %v1778
        %v1808 = vadd.f32 %v1770, %v1778
        %v1809 = vadd.f32 %v1771, %v1778
        %v1810 = vadd.f32 %v1772, %v1778
        %v1811 = vadd.f32 %v1773, %v1778
        %v1812 = vmax.f32 %v1780, 0.0
        %v1813 = vmax.f32 %v1781, 0.0
        %v1814 = vmax.f32 %v1782, 0.0
        %v1815 = vmax.f32 %v1783, 0.0
        %v1816 = vmax.f32 %v1784, 0.0
        %v1817 = vmax.f32 %v1785, 0.0
        %v1818 = vmax.f32 %v1786, 0.0
        %v1819 = vmax.f32 %v1787, 0.0
        %v1820 = vmax.f32 %v1788, 0.0
        %v1821 = vmax.f32 %v1789, 0.0
        %v1822 = vmax.f32 %v1790, 0.0
        %v1823 = vmax.f32 %v1791, 0.0
        %v1824 = vmax.f32 %v1792, 0.0
        %v1825 = vmax.f32 %v1793, 0.0
        %v1826 = vmax.f32 %v1794, 0.0
        %v1827 = vmax.f32 %v1795, 0.0
        %v1828 = vmax.f32 %v1796, 0.0
        %v1829 = vmax.f32 %v1797, 0.0
        %v1830 = vmax.f32 %v1798, 0.0
        %v1831 = vmax.f32 %v1799, 0.0
        %v1832 = vmax.f32 %v1800, 0.0
        %v1833 = vmax.f32 %v1801, 0.0
        %v1834 = vmax.f32 %v1802, 0.0
        %v1835 = vmax.f32 %v1803, 0.0
        %v1836 = vmax.f32 %v1804, 0.0
        %v1837 = vmax.f32 %v1805, 0.0
        %v1838 = vmax.f32 %v1806, 0.0
        %v1839 = vmax.f32 %v1807, 0.0
        %v1840 = vmax.f32 %v1808, 0.0
        %v1841 = vmax.f32 %v1809, 0.0
        %v1842 = vmax.f32 %v1810, 0.0
        %v1843 = vmax.f32 %v1811, 0.0
        %s1844 = scalar_lea.vmem %s3, 1
        %v1845 = vld [vmem:[%s1844] sm:$0x1]
        %v1846 = vpack.c.bf16 %v1813, %v1812
        %v1847 = vpack.c.bf16 %v1815, %v1814
        %v1848 = vpack.c.bf16 %v1817, %v1816
        %v1849 = vpack.c.bf16 %v1819, %v1818
        %v1850 = vpack.c.bf16 %v1821, %v1820
        %v1851 = vpack.c.bf16 %v1823, %v1822
        %v1852 = vpack.c.bf16 %v1825, %v1824
        %v1853 = vpack.c.bf16 %v1827, %v1826
        %v1854 = vpack.c.bf16 %v1829, %v1828
        %v1855 = vpack.c.bf16 %v1831, %v1830
        %v1856 = vpack.c.bf16 %v1833, %v1832
        %v1857 = vpack.c.bf16 %v1835, %v1834
        %v1858 = vpack.c.bf16 %v1837, %v1836
        %v1859 = vpack.c.bf16 %v1839, %v1838
        %v1860 = vpack.c.bf16 %v1841, %v1840
        %v1861 = vpack.c.bf16 %v1843, %v1842
        %v1863 = vshrl.u32 %v1846, 16
        %v1865 = vrot.slane %v1863, 7
        %v1866 = vshll.u32 %v1846, 16
        %v1868 = vor.u32 %v1865, %v1866
        %v1870 = vshrl.u32 %v1847, 16
        %v1872 = vrot.slane %v1870, 7
        %v1873 = vshll.u32 %v1847, 16
        %v1875 = vor.u32 %v1872, %v1873
        %v1877 = vshrl.u32 %v1848, 16
        %v1879 = vrot.slane %v1877, 7
        %v1880 = vshll.u32 %v1848, 16
        %v1882 = vor.u32 %v1879, %v1880
        %v1884 = vshrl.u32 %v1849, 16
        %v1886 = vrot.slane %v1884, 7
        %v1887 = vshll.u32 %v1849, 16
        %v1889 = vor.u32 %v1886, %v1887
        %v1891 = vshrl.u32 %v1850, 16
        %v1893 = vrot.slane %v1891, 7
        %v1894 = vshll.u32 %v1850, 16
        %v1896 = vor.u32 %v1893, %v1894
        %v1898 = vshrl.u32 %v1851, 16
        %v1900 = vrot.slane %v1898, 7
        %v1901 = vshll.u32 %v1851, 16
        %v1903 = vor.u32 %v1900, %v1901
        %v1905 = vshrl.u32 %v1852, 16
        %v1907 = vrot.slane %v1905, 7
        %v1908 = vshll.u32 %v1852, 16
        %v1910 = vor.u32 %v1907, %v1908
        %v1912 = vshrl.u32 %v1853, 16
        %v1914 = vrot.slane %v1912, 7
        %v1915 = vshll.u32 %v1853, 16
        %v1917 = vor.u32 %v1914, %v1915
        %v1919 = vshrl.u32 %v1854, 16
        %v1921 = vrot.slane %v1919, 7
        %v1922 = vshll.u32 %v1854, 16
        %v1924 = vor.u32 %v1921, %v1922
        %v1926 = vshrl.u32 %v1855, 16
        %v1928 = vrot.slane %v1926, 7
        %v1929 = vshll.u32 %v1855, 16
        %v1931 = vor.u32 %v1928, %v1929
        %v1933 = vshrl.u32 %v1856, 16
        %v1935 = vrot.slane %v1933, 7
        %v1936 = vshll.u32 %v1856, 16
        %v1938 = vor.u32 %v1935, %v1936
        %v1940 = vshrl.u32 %v1857, 16
        %v1942 = vrot.slane %v1940, 7
        %v1943 = vshll.u32 %v1857, 16
        %v1945 = vor.u32 %v1942, %v1943
        %v1947 = vshrl.u32 %v1858, 16
        %v1949 = vrot.slane %v1947, 7
        %v1950 = vshll.u32 %v1858, 16
        %v1952 = vor.u32 %v1949, %v1950
        %v1954 = vshrl.u32 %v1859, 16
        %v1956 = vrot.slane %v1954, 7
        %v1957 = vshll.u32 %v1859, 16
        %v1959 = vor.u32 %v1956, %v1957
        %v1961 = vshrl.u32 %v1860, 16
        %v1963 = vrot.slane %v1961, 7
        %v1964 = vshll.u32 %v1860, 16
        %v1966 = vor.u32 %v1963, %v1964
        %v1968 = vshrl.u32 %v1861, 16
        %v1970 = vrot.slane %v1968, 7
        %v1971 = vshll.u32 %v1861, 16
        %v1973 = vor.u32 %v1970, %v1971
        %v1990 = vsel %vm698, 0, %v1868
        %v1991 = vsel %vm698, 0, %v1875
        %v1992 = vsel %vm698, 0, %v1882
        %v1993 = vsel %vm698, 0, %v1889
        %v1994 = vsel %vm698, 0, %v1896
        %v1995 = vsel %vm698, 0, %v1903
        %v1996 = vsel %vm698, 0, %v1910
        %v1997 = vsel %vm698, 0, %v1917
        %v1998 = vsel %vm698, 0, %v1924
        %v1999 = vsel %vm698, 0, %v1931
        %v2000 = vsel %vm698, 0, %v1938
        %v2001 = vsel %vm698, 0, %v1945
        %v2002 = vsel %vm698, 0, %v1952
        %v2003 = vsel %vm698, 0, %v1959
        %v2004 = vsel %vm698, 0, %v1966
        %v2005 = vsel %vm698, 0, %v1973
        %v2006 = vrot.slane %v1866, 1
        %v2007 = vor.u32 %v1863, %v2006
        %v2008 = vrot.slane %v1873, 1
        %v2009 = vor.u32 %v1870, %v2008
        %v2010 = vrot.slane %v1880, 1
        %v2011 = vor.u32 %v1877, %v2010
        %v2012 = vrot.slane %v1887, 1
        %v2013 = vor.u32 %v1884, %v2012
        %v2014 = vrot.slane %v1894, 1
        %v2015 = vor.u32 %v1891, %v2014
        %v2016 = vrot.slane %v1901, 1
        %v2017 = vor.u32 %v1898, %v2016
        %v2018 = vrot.slane %v1908, 1
        %v2019 = vor.u32 %v1905, %v2018
        %v2020 = vrot.slane %v1915, 1
        %v2021 = vor.u32 %v1912, %v2020
        %v2022 = vrot.slane %v1922, 1
        %v2023 = vor.u32 %v1919, %v2022
        %v2024 = vrot.slane %v1929, 1
        %v2025 = vor.u32 %v1926, %v2024
        %v2026 = vrot.slane %v1936, 1
        %v2027 = vor.u32 %v1933, %v2026
        %v2028 = vrot.slane %v1943, 1
        %v2029 = vor.u32 %v1940, %v2028
        %v2030 = vrot.slane %v1950, 1
        %v2031 = vor.u32 %v1947, %v2030
        %v2032 = vrot.slane %v1957, 1
        %v2033 = vor.u32 %v1954, %v2032
        %v2034 = vrot.slane %v1964, 1
        %v2035 = vor.u32 %v1961, %v2034
        %v2036 = vrot.slane %v1971, 1
        %v2037 = vor.u32 %v1968, %v2036
        %v2054 = vsel %vm765, %v2007, 0
        %v2055 = vsel %vm765, %v2009, 0
        %v2056 = vsel %vm765, %v2011, 0
        %v2057 = vsel %vm765, %v2013, 0
        %v2058 = vsel %vm765, %v2015, 0
        %v2059 = vsel %vm765, %v2017, 0
        %v2060 = vsel %vm765, %v2019, 0
        %v2061 = vsel %vm765, %v2021, 0
        %v2062 = vsel %vm765, %v2023, 0
        %v2063 = vsel %vm765, %v2025, 0
        %v2064 = vsel %vm765, %v2027, 0
        %v2065 = vsel %vm765, %v2029, 0
        %v2066 = vsel %vm765, %v2031, 0
        %v2067 = vsel %vm765, %v2033, 0
        %v2068 = vsel %vm765, %v2035, 0
        %v2069 = vsel %vm765, %v2037, 0
        %2086 = vrot.lane.b32.xlu0 %v1846, 64
        %v2087 = vpop.permute.xlu0 %2086
        %2088 = vrot.lane.b32.xlu0 %v1847, 64
        %v2089 = vpop.permute.xlu0 %2088
        %2090 = vrot.lane.b32.xlu0 %v1848, 64
        %v2091 = vpop.permute.xlu0 %2090
        %2092 = vrot.lane.b32.xlu0 %v1849, 64
        %v2093 = vpop.permute.xlu0 %2092
        %2094 = vrot.lane.b32.xlu0 %v1850, 64
        %v2095 = vpop.permute.xlu0 %2094
        %2096 = vrot.lane.b32.xlu0 %v1851, 64
        %v2097 = vpop.permute.xlu0 %2096
        %2098 = vrot.lane.b32.xlu0 %v1852, 64
        %v2099 = vpop.permute.xlu0 %2098
        %2100 = vrot.lane.b32.xlu0 %v1853, 64
        %v2101 = vpop.permute.xlu0 %2100
        %2102 = vrot.lane.b32.xlu0 %v1854, 64
        %v2103 = vpop.permute.xlu0 %2102
        %2104 = vrot.lane.b32.xlu0 %v1855, 64
        %v2105 = vpop.permute.xlu0 %2104
        %2106 = vrot.lane.b32.xlu0 %v1856, 64
        %v2107 = vpop.permute.xlu0 %2106
        %2108 = vrot.lane.b32.xlu0 %v1857, 64
        %v2109 = vpop.permute.xlu0 %2108
        %2110 = vrot.lane.b32.xlu0 %v1858, 64
        %v2111 = vpop.permute.xlu0 %2110
        %2112 = vrot.lane.b32.xlu0 %v1859, 64
        %v2113 = vpop.permute.xlu0 %2112
        %2114 = vrot.lane.b32.xlu0 %v1860, 64
        %v2115 = vpop.permute.xlu0 %2114
        %2116 = vrot.lane.b32.xlu0 %v1861, 64
        %v2117 = vpop.permute.xlu0 %2116
        %v2120 = vsel %vm830, %v1990, %v2087
        %v2124 = vsel %vm830, %v1991, %v2089
        %v2128 = vsel %vm830, %v1992, %v2091
        %v2132 = vsel %vm830, %v1993, %v2093
        %v2136 = vsel %vm830, %v1994, %v2095
        %v2140 = vsel %vm830, %v1995, %v2097
        %v2144 = vsel %vm830, %v1996, %v2099
        %v2148 = vsel %vm830, %v1997, %v2101
        %v2152 = vsel %vm830, %v1998, %v2103
        %v2156 = vsel %vm830, %v1999, %v2105
        %v2160 = vsel %vm830, %v2000, %v2107
        %v2164 = vsel %vm830, %v2001, %v2109
        %v2168 = vsel %vm830, %v2002, %v2111
        %v2172 = vsel %vm830, %v2003, %v2113
        %v2176 = vsel %vm830, %v2004, %v2115
        %v2180 = vsel %vm830, %v2005, %v2117
        %s2182 = scalar_lea.vmem %s2, 288
        %v2183 = vld [vmem:[%s2182] sm:$0xf]
        %v2184 = vld [vmem:[%s2182 + $0x4] sm:$0xf]
        %v2185 = vld [vmem:[%s2182 + $0x8] sm:$0xf]
        %v2186 = vld [vmem:[%s2182 + $0xc] sm:$0xf]
        %v2187 = vld [vmem:[%s2182 + $0x10] sm:$0xf]
        %v2188 = vld [vmem:[%s2182 + $0x14] sm:$0xf]
        %v2189 = vld [vmem:[%s2182 + $0x18] sm:$0xf]
        %v2190 = vld [vmem:[%s2182 + $0x1c] sm:$0xf]
        %v2191 = vld [vmem:[%s2182 + $0x20] sm:$0xf]
        %v2192 = vld [vmem:[%s2182 + $0x24] sm:$0xf]
        %v2193 = vld [vmem:[%s2182 + $0x28] sm:$0xf]
        %v2194 = vld [vmem:[%s2182 + $0x2c] sm:$0xf]
        %v2195 = vld [vmem:[%s2182 + $0x30] sm:$0xf]
        %v2196 = vld [vmem:[%s2182 + $0x34] sm:$0xf]
        %v2197 = vld [vmem:[%s2182 + $0x38] sm:$0xf]
        %v2198 = vld [vmem:[%s2182 + $0x3c] sm:$0xf]
        %v2199 = vld [vmem:[%s2182 + $0x40] sm:$0xf]
        %v2200 = vld [vmem:[%s2182 + $0x44] sm:$0xf]
        %v2201 = vld [vmem:[%s2182 + $0x48] sm:$0xf]
        %v2202 = vld [vmem:[%s2182 + $0x4c] sm:$0xf]
        %v2203 = vld [vmem:[%s2182 + $0x50] sm:$0xf]
        %v2204 = vld [vmem:[%s2182 + $0x54] sm:$0xf]
        %v2205 = vld [vmem:[%s2182 + $0x58] sm:$0xf]
        %v2206 = vld [vmem:[%s2182 + $0x5c] sm:$0xf]
        %v2231 = vunpack.c.l.b16 %v2183
        %v2232 = vunpack.c.l.b16 %v2184
        %v2233 = vunpack.c.l.b16 %v2185
        %v2234 = vunpack.c.l.b16 %v2186
        %v2235 = vunpack.c.l.b16 %v2187
        %v2236 = vunpack.c.l.b16 %v2188
        %v2237 = vunpack.c.l.b16 %v2189
        %v2238 = vunpack.c.l.b16 %v2190
        %v2239 = vunpack.c.l.b16 %v2191
        %v2240 = vunpack.c.l.b16 %v2192
        %v2241 = vunpack.c.l.b16 %v2193
        %v2242 = vunpack.c.l.b16 %v2194
        %v2243 = vunpack.c.l.b16 %v2195
        %v2244 = vunpack.c.l.b16 %v2196
        %v2245 = vunpack.c.l.b16 %v2197
        %v2246 = vunpack.c.l.b16 %v2198
        %v2247 = vunpack.c.l.b16 %v2199
        %v2248 = vunpack.c.l.b16 %v2200
        %v2249 = vunpack.c.l.b16 %v2201
        %v2250 = vunpack.c.l.b16 %v2202
        %v2251 = vunpack.c.l.b16 %v2203
        %v2252 = vunpack.c.l.b16 %v2204
        %v2253 = vunpack.c.l.b16 %v2205
        %v2254 = vunpack.c.l.b16 %v2206
        %v2255 = vpack.c.b16 %v2232, %v2231
        %v2256 = vpack.c.b16 %v2234, %v2233
        %v2257 = vpack.c.b16 %v2236, %v2235
        %v2258 = vpack.c.b16 %v2238, %v2237
        %v2259 = vpack.c.b16 %v2240, %v2239
        %v2260 = vpack.c.b16 %v2242, %v2241
        %v2261 = vpack.c.b16 %v2244, %v2243
        %v2262 = vpack.c.b16 %v2246, %v2245
        %v2263 = vpack.c.b16 %v2248, %v2247
        %v2264 = vpack.c.b16 %v2250, %v2249
        %v2265 = vpack.c.b16 %v2252, %v2251
        %v2266 = vpack.c.b16 %v2254, %v2253
        %v2280 = vsel %vm830, %v2054, 0
        %v2283 = vsel %vm830, %v2055, 0
        %v2286 = vsel %vm830, %v2056, 0
        %v2289 = vsel %vm830, %v2057, 0
        %v2292 = vsel %vm830, %v2058, 0
        %v2295 = vsel %vm830, %v2059, 0
        %v2298 = vsel %vm830, %v2060, 0
        %v2301 = vsel %vm830, %v2061, 0
        %v2304 = vsel %vm830, %v2062, 0
        %v2307 = vsel %vm830, %v2063, 0
        %v2310 = vsel %vm830, %v2064, 0
        %v2313 = vsel %vm830, %v2065, 0
        %v2316 = vsel %vm830, %v2066, 0
        %v2319 = vsel %vm830, %v2067, 0
        %v2322 = vsel %vm830, %v2068, 0
        %v2325 = vsel %vm830, %v2069, 0
        %2327 = vmatprep.subr.bf16.mxu0 0
        %2328 = vmatpush1.bf16.msra.mxu0 %v2262
        %2329 = vmatprep.subr.bf16.mxu0 0
        %2330 = vmatpush1.bf16.msra.mxu0 %v2261
        %2331 = vmatprep.subr.bf16.mxu0 0
        %2332 = vmatpush1.bf16.msra.mxu0 %v2260
        %2333 = vmatprep.subr.bf16.mxu0 0
        %2334 = vmatpush1.bf16.msra.mxu0 %v2259
        %2335 = vmatprep.subr.bf16.mxu0 0
        %2336 = vmatpush1.bf16.msra.mxu0 %v2258
        %2337 = vmatprep.subr.bf16.mxu0 0
        %2338 = vmatpush1.bf16.msra.mxu0 %v2257
        %2339 = vmatprep.subr.bf16.mxu0 0
        %2340 = vmatpush1.bf16.msra.mxu0 %v2256
        %2341 = vmatprep.subr.bf16.mxu0 0
        %2342 = vmatpush1.bf16.msra.mxu0 %v2255
        %2343 = vmatprep.subr.bf16.mxu0 0
        %2344 = vmatpush2.bf16.msra.mxu0 0
        %2345 = vmatprep.subr.bf16.mxu0 0
        %2346 = vmatpush2.bf16.msra.mxu0 0
        %2347 = vmatprep.subr.bf16.mxu0 0
        %2348 = vmatpush2.bf16.msra.mxu0 0
        %2349 = vmatprep.subr.bf16.mxu0 0
        %2350 = vmatpush2.bf16.msra.mxu0 0
        %2351 = vmatprep.subr.bf16.mxu0 0
        %2352 = vmatpush2.bf16.msra.mxu0 %v2266
        %2353 = vmatprep.subr.bf16.mxu0 0
        %2354 = vmatpush2.bf16.msra.mxu0 %v2265
        %2355 = vmatprep.subr.bf16.mxu0 0
        %2356 = vmatpush2.bf16.msra.mxu0 %v2264
        %2357 = vmatprep.subr.bf16.mxu0 0
        %2358 = vmatpush2.bf16.msra.mxu0 %v2263
        %2359 = vmatprep.mubr.bf16.mxu0 %v2280
        %2360 = vmatmul.mubr.bf16.gmra.mxu0 %v2120
        %v2361 = vpop.f32.mrf.mxu0
        %v2362 = vadd.f32 0.0, %v2361
        %v2363 = vpop.f32.mrf.mxu0
        %v2364 = vpop.f32.mrf.mxu0
        %v2365 = vadd.f32 0.0, %v2364
        %v2366 = vpop.f32.mrf.mxu0
        %2367 = vmatprep.mubr.bf16.mxu0 %v2283
        %2368 = vmatmul.mubr.bf16.gmra.mxu0 %v2124
        %v2369 = vpop.f32.mrf.mxu0
        %v2370 = vadd.f32 0.0, %v2369
        %v2371 = vpop.f32.mrf.mxu0
        %v2372 = vpop.f32.mrf.mxu0
        %v2373 = vadd.f32 0.0, %v2372
        %v2374 = vpop.f32.mrf.mxu0
        %2375 = vmatprep.mubr.bf16.mxu0 %v2286
        %2376 = vmatmul.mubr.bf16.gmra.mxu0 %v2128
        %v2377 = vpop.f32.mrf.mxu0
        %v2378 = vadd.f32 0.0, %v2377
        %v2379 = vpop.f32.mrf.mxu0
        %v2380 = vpop.f32.mrf.mxu0
        %v2381 = vadd.f32 0.0, %v2380
        %v2382 = vpop.f32.mrf.mxu0
        %2383 = vmatprep.mubr.bf16.mxu0 %v2289
        %2384 = vmatmul.mubr.bf16.gmra.mxu0 %v2132
        %v2385 = vpop.f32.mrf.mxu0
        %v2386 = vadd.f32 0.0, %v2385
        %v2387 = vpop.f32.mrf.mxu0
        %v2388 = vpop.f32.mrf.mxu0
        %v2389 = vadd.f32 0.0, %v2388
        %v2390 = vpop.f32.mrf.mxu0
        %2391 = vmatprep.mubr.bf16.mxu0 %v2292
        %2392 = vmatmul.mubr.bf16.gmra.mxu0 %v2136
        %v2393 = vpop.f32.mrf.mxu0
        %v2394 = vadd.f32 0.0, %v2393
        %v2395 = vpop.f32.mrf.mxu0
        %v2396 = vpop.f32.mrf.mxu0
        %v2397 = vadd.f32 0.0, %v2396
        %v2398 = vpop.f32.mrf.mxu0
        %2399 = vmatprep.mubr.bf16.mxu0 %v2295
        %2400 = vmatmul.mubr.bf16.gmra.mxu0 %v2140
        %v2401 = vpop.f32.mrf.mxu0
        %v2402 = vadd.f32 0.0, %v2401
        %v2403 = vpop.f32.mrf.mxu0
        %v2404 = vpop.f32.mrf.mxu0
        %v2405 = vadd.f32 0.0, %v2404
        %v2406 = vpop.f32.mrf.mxu0
        %2407 = vmatprep.mubr.bf16.mxu0 %v2298
        %2408 = vmatmul.mubr.bf16.gmra.mxu0 %v2144
        %v2409 = vpop.f32.mrf.mxu0
        %v2410 = vadd.f32 0.0, %v2409
        %v2411 = vpop.f32.mrf.mxu0
        %v2412 = vpop.f32.mrf.mxu0
        %v2413 = vadd.f32 0.0, %v2412
        %v2414 = vpop.f32.mrf.mxu0
        %2415 = vmatprep.mubr.bf16.mxu0 %v2301
        %2416 = vmatmul.mubr.bf16.gmra.mxu0 %v2148
        %v2417 = vpop.f32.mrf.mxu0
        %v2418 = vadd.f32 0.0, %v2417
        %v2419 = vpop.f32.mrf.mxu0
        %v2420 = vpop.f32.mrf.mxu0
        %v2421 = vadd.f32 0.0, %v2420
        %v2422 = vpop.f32.mrf.mxu0
        %2423 = vmatprep.mubr.bf16.mxu0 %v2304
        %2424 = vmatmul.mubr.bf16.gmra.mxu0 %v2152
        %v2425 = vpop.f32.mrf.mxu0
        %v2426 = vadd.f32 0.0, %v2425
        %v2427 = vpop.f32.mrf.mxu0
        %v2428 = vpop.f32.mrf.mxu0
        %v2429 = vadd.f32 0.0, %v2428
        %v2430 = vpop.f32.mrf.mxu0
        %2431 = vmatprep.mubr.bf16.mxu0 %v2307
        %2432 = vmatmul.mubr.bf16.gmra.mxu0 %v2156
        %v2433 = vpop.f32.mrf.mxu0
        %v2434 = vadd.f32 0.0, %v2433
        %v2435 = vpop.f32.mrf.mxu0
        %v2436 = vpop.f32.mrf.mxu0
        %v2437 = vadd.f32 0.0, %v2436
        %v2438 = vpop.f32.mrf.mxu0
        %2439 = vmatprep.mubr.bf16.mxu0 %v2310
        %2440 = vmatmul.mubr.bf16.gmra.mxu0 %v2160
        %v2441 = vpop.f32.mrf.mxu0
        %v2442 = vadd.f32 0.0, %v2441
        %v2443 = vpop.f32.mrf.mxu0
        %v2444 = vpop.f32.mrf.mxu0
        %v2445 = vadd.f32 0.0, %v2444
        %v2446 = vpop.f32.mrf.mxu0
        %2447 = vmatprep.mubr.bf16.mxu0 %v2313
        %2448 = vmatmul.mubr.bf16.gmra.mxu0 %v2164
        %v2449 = vpop.f32.mrf.mxu0
        %v2450 = vadd.f32 0.0, %v2449
        %v2451 = vpop.f32.mrf.mxu0
        %v2452 = vpop.f32.mrf.mxu0
        %v2453 = vadd.f32 0.0, %v2452
        %v2454 = vpop.f32.mrf.mxu0
        %2455 = vmatprep.mubr.bf16.mxu0 %v2316
        %2456 = vmatmul.mubr.bf16.gmra.mxu0 %v2168
        %v2457 = vpop.f32.mrf.mxu0
        %v2458 = vadd.f32 0.0, %v2457
        %v2459 = vpop.f32.mrf.mxu0
        %v2460 = vpop.f32.mrf.mxu0
        %v2461 = vadd.f32 0.0, %v2460
        %v2462 = vpop.f32.mrf.mxu0
        %2463 = vmatprep.mubr.bf16.mxu0 %v2319
        %2464 = vmatmul.mubr.bf16.gmra.mxu0 %v2172
        %v2465 = vpop.f32.mrf.mxu0
        %v2466 = vadd.f32 0.0, %v2465
        %v2467 = vpop.f32.mrf.mxu0
        %v2468 = vpop.f32.mrf.mxu0
        %v2469 = vadd.f32 0.0, %v2468
        %v2470 = vpop.f32.mrf.mxu0
        %2471 = vmatprep.mubr.bf16.mxu0 %v2322
        %2472 = vmatmul.mubr.bf16.gmra.mxu0 %v2176
        %v2473 = vpop.f32.mrf.mxu0
        %v2474 = vadd.f32 0.0, %v2473
        %v2475 = vpop.f32.mrf.mxu0
        %v2476 = vpop.f32.mrf.mxu0
        %v2477 = vadd.f32 0.0, %v2476
        %v2478 = vpop.f32.mrf.mxu0
        %2479 = vmatprep.mubr.bf16.mxu0 %v2325
        %2480 = vmatmul.mubr.bf16.gmra.mxu0 %v2180
        %v2481 = vpop.f32.mrf.mxu0
        %v2482 = vpop.f32.mrf.mxu0
        %v2483 = vpop.f32.mrf.mxu0
        %v2484 = vpop.f32.mrf.mxu0
        %2485 = vdwg.mxu0
        %v2486 = vld [vmem:[%s2182 + $0x60] sm:$0xf]
        %v2487 = vld [vmem:[%s2182 + $0x64] sm:$0xf]
        %v2488 = vld [vmem:[%s2182 + $0x68] sm:$0xf]
        %v2489 = vld [vmem:[%s2182 + $0x6c] sm:$0xf]
        %v2490 = vld [vmem:[%s2182 + $0x70] sm:$0xf]
        %v2491 = vld [vmem:[%s2182 + $0x74] sm:$0xf]
        %v2492 = vld [vmem:[%s2182 + $0x78] sm:$0xf]
        %v2493 = vld [vmem:[%s2182 + $0x7c] sm:$0xf]
        %v2494 = vld [vmem:[%s2182 + $0x80] sm:$0xf]
        %v2495 = vld [vmem:[%s2182 + $0x84] sm:$0xf]
        %v2496 = vld [vmem:[%s2182 + $0x88] sm:$0xf]
        %v2497 = vld [vmem:[%s2182 + $0x8c] sm:$0xf]
        %v2498 = vld [vmem:[%s2182 + $0x90] sm:$0xf]
        %v2499 = vld [vmem:[%s2182 + $0x94] sm:$0xf]
        %v2500 = vld [vmem:[%s2182 + $0x98] sm:$0xf]
        %v2501 = vld [vmem:[%s2182 + $0x9c] sm:$0xf]
        %v2502 = vld [vmem:[%s2182 + $0xa0] sm:$0xf]
        %v2503 = vld [vmem:[%s2182 + $0xa4] sm:$0xf]
        %v2504 = vld [vmem:[%s2182 + $0xa8] sm:$0xf]
        %v2505 = vld [vmem:[%s2182 + $0xac] sm:$0xf]
        %v2506 = vld [vmem:[%s2182 + $0xb0] sm:$0xf]
        %v2507 = vld [vmem:[%s2182 + $0xb4] sm:$0xf]
        %v2508 = vld [vmem:[%s2182 + $0xb8] sm:$0xf]
        %v2509 = vld [vmem:[%s2182 + $0xbc] sm:$0xf]
        %v2534 = vunpack.c.l.b16 %v2486
        %v2535 = vunpack.c.l.b16 %v2487
        %v2536 = vunpack.c.l.b16 %v2488
        %v2537 = vunpack.c.l.b16 %v2489
        %v2538 = vunpack.c.l.b16 %v2490
        %v2539 = vunpack.c.l.b16 %v2491
        %v2540 = vunpack.c.l.b16 %v2492
        %v2541 = vunpack.c.l.b16 %v2493
        %v2542 = vunpack.c.l.b16 %v2494
        %v2543 = vunpack.c.l.b16 %v2495
        %v2544 = vunpack.c.l.b16 %v2496
        %v2545 = vunpack.c.l.b16 %v2497
        %v2546 = vunpack.c.l.b16 %v2498
        %v2547 = vunpack.c.l.b16 %v2499
        %v2548 = vunpack.c.l.b16 %v2500
        %v2549 = vunpack.c.l.b16 %v2501
        %v2550 = vunpack.c.l.b16 %v2502
        %v2551 = vunpack.c.l.b16 %v2503
        %v2552 = vunpack.c.l.b16 %v2504
        %v2553 = vunpack.c.l.b16 %v2505
        %v2554 = vunpack.c.l.b16 %v2506
        %v2555 = vunpack.c.l.b16 %v2507
        %v2556 = vunpack.c.l.b16 %v2508
        %v2557 = vunpack.c.l.b16 %v2509
        %v2558 = vpack.c.b16 %v2535, %v2534
        %v2559 = vpack.c.b16 %v2537, %v2536
        %v2560 = vpack.c.b16 %v2539, %v2538
        %v2561 = vpack.c.b16 %v2541, %v2540
        %v2562 = vpack.c.b16 %v2543, %v2542
        %v2563 = vpack.c.b16 %v2545, %v2544
        %v2564 = vpack.c.b16 %v2547, %v2546
        %v2565 = vpack.c.b16 %v2549, %v2548
        %v2566 = vpack.c.b16 %v2551, %v2550
        %v2567 = vpack.c.b16 %v2553, %v2552
        %v2568 = vpack.c.b16 %v2555, %v2554
        %v2569 = vpack.c.b16 %v2557, %v2556
        %2582 = vmatprep.subr.bf16.mxu0 0
        %2583 = vmatpush1.bf16.msra.mxu0 %v2565
        %2584 = vmatprep.subr.bf16.mxu0 0
        %2585 = vmatpush1.bf16.msra.mxu0 %v2564
        %2586 = vmatprep.subr.bf16.mxu0 0
        %2587 = vmatpush1.bf16.msra.mxu0 %v2563
        %2588 = vmatprep.subr.bf16.mxu0 0
        %2589 = vmatpush1.bf16.msra.mxu0 %v2562
        %2590 = vmatprep.subr.bf16.mxu0 0
        %2591 = vmatpush1.bf16.msra.mxu0 %v2561
        %2592 = vmatprep.subr.bf16.mxu0 0
        %2593 = vmatpush1.bf16.msra.mxu0 %v2560
        %2594 = vmatprep.subr.bf16.mxu0 0
        %2595 = vmatpush1.bf16.msra.mxu0 %v2559
        %2596 = vmatprep.subr.bf16.mxu0 0
        %2597 = vmatpush1.bf16.msra.mxu0 %v2558
        %2598 = vmatprep.subr.bf16.mxu0 0
        %2599 = vmatpush2.bf16.msra.mxu0 0
        %2600 = vmatprep.subr.bf16.mxu0 0
        %2601 = vmatpush2.bf16.msra.mxu0 0
        %2602 = vmatprep.subr.bf16.mxu0 0
        %2603 = vmatpush2.bf16.msra.mxu0 0
        %2604 = vmatprep.subr.bf16.mxu0 0
        %2605 = vmatpush2.bf16.msra.mxu0 0
        %2606 = vmatprep.subr.bf16.mxu0 0
        %2607 = vmatpush2.bf16.msra.mxu0 %v2569
        %2608 = vmatprep.subr.bf16.mxu0 0
        %2609 = vmatpush2.bf16.msra.mxu0 %v2568
        %2610 = vmatprep.subr.bf16.mxu0 0
        %2611 = vmatpush2.bf16.msra.mxu0 %v2567
        %2612 = vmatprep.subr.bf16.mxu0 0
        %2613 = vmatpush2.bf16.msra.mxu0 %v2566
        %2614 = vmatprep.mubr.bf16.mxu0 %v2280
        %2615 = vmatmul.mubr.bf16.gmra.mxu0 %v2120
        %v2616 = vpop.f32.mrf.mxu0
        %v2617 = vadd.f32 0.0, %v2616
        %v2618 = vpop.f32.mrf.mxu0
        %v2619 = vpop.f32.mrf.mxu0
        %v2620 = vadd.f32 0.0, %v2619
        %v2621 = vpop.f32.mrf.mxu0
        %2622 = vmatprep.mubr.bf16.mxu0 %v2283
        %2623 = vmatmul.mubr.bf16.gmra.mxu0 %v2124
        %v2624 = vpop.f32.mrf.mxu0
        %v2625 = vadd.f32 0.0, %v2624
        %v2626 = vpop.f32.mrf.mxu0
        %v2627 = vpop.f32.mrf.mxu0
        %v2628 = vadd.f32 0.0, %v2627
        %v2629 = vpop.f32.mrf.mxu0
        %2630 = vmatprep.mubr.bf16.mxu0 %v2286
        %2631 = vmatmul.mubr.bf16.gmra.mxu0 %v2128
        %v2632 = vpop.f32.mrf.mxu0
        %v2633 = vadd.f32 0.0, %v2632
        %v2634 = vpop.f32.mrf.mxu0
        %v2635 = vpop.f32.mrf.mxu0
        %v2636 = vadd.f32 0.0, %v2635
        %v2637 = vpop.f32.mrf.mxu0
        %2638 = vmatprep.mubr.bf16.mxu0 %v2289
        %2639 = vmatmul.mubr.bf16.gmra.mxu0 %v2132
        %v2640 = vpop.f32.mrf.mxu0
        %v2641 = vadd.f32 0.0, %v2640
        %v2642 = vpop.f32.mrf.mxu0
        %v2643 = vpop.f32.mrf.mxu0
        %v2644 = vadd.f32 0.0, %v2643
        %v2645 = vpop.f32.mrf.mxu0
        %2646 = vmatprep.mubr.bf16.mxu0 %v2292
        %2647 = vmatmul.mubr.bf16.gmra.mxu0 %v2136
        %v2648 = vpop.f32.mrf.mxu0
        %v2649 = vadd.f32 0.0, %v2648
        %v2650 = vpop.f32.mrf.mxu0
        %v2651 = vpop.f32.mrf.mxu0
        %v2652 = vadd.f32 0.0, %v2651
        %v2653 = vpop.f32.mrf.mxu0
        %2654 = vmatprep.mubr.bf16.mxu0 %v2295
        %2655 = vmatmul.mubr.bf16.gmra.mxu0 %v2140
        %v2656 = vpop.f32.mrf.mxu0
        %v2657 = vadd.f32 0.0, %v2656
        %v2658 = vpop.f32.mrf.mxu0
        %v2659 = vpop.f32.mrf.mxu0
        %v2660 = vadd.f32 0.0, %v2659
        %v2661 = vpop.f32.mrf.mxu0
        %2662 = vmatprep.mubr.bf16.mxu0 %v2298
        %2663 = vmatmul.mubr.bf16.gmra.mxu0 %v2144
        %v2664 = vpop.f32.mrf.mxu0
        %v2665 = vadd.f32 0.0, %v2664
        %v2666 = vpop.f32.mrf.mxu0
        %v2667 = vpop.f32.mrf.mxu0
        %v2668 = vadd.f32 0.0, %v2667
        %v2669 = vpop.f32.mrf.mxu0
        %2670 = vmatprep.mubr.bf16.mxu0 %v2301
        %2671 = vmatmul.mubr.bf16.gmra.mxu0 %v2148
        %v2672 = vpop.f32.mrf.mxu0
        %v2673 = vadd.f32 0.0, %v2672
        %v2674 = vpop.f32.mrf.mxu0
        %v2675 = vpop.f32.mrf.mxu0
        %v2676 = vadd.f32 0.0, %v2675
        %v2677 = vpop.f32.mrf.mxu0
        %2678 = vmatprep.mubr.bf16.mxu0 %v2304
        %2679 = vmatmul.mubr.bf16.gmra.mxu0 %v2152
        %v2680 = vpop.f32.mrf.mxu0
        %v2681 = vadd.f32 0.0, %v2680
        %v2682 = vpop.f32.mrf.mxu0
        %v2683 = vpop.f32.mrf.mxu0
        %v2684 = vadd.f32 0.0, %v2683
        %v2685 = vpop.f32.mrf.mxu0
        %2686 = vmatprep.mubr.bf16.mxu0 %v2307
        %2687 = vmatmul.mubr.bf16.gmra.mxu0 %v2156
        %v2688 = vpop.f32.mrf.mxu0
        %v2689 = vadd.f32 0.0, %v2688
        %v2690 = vpop.f32.mrf.mxu0
        %v2691 = vpop.f32.mrf.mxu0
        %v2692 = vadd.f32 0.0, %v2691
        %v2693 = vpop.f32.mrf.mxu0
        %2694 = vmatprep.mubr.bf16.mxu0 %v2310
        %2695 = vmatmul.mubr.bf16.gmra.mxu0 %v2160
        %v2696 = vpop.f32.mrf.mxu0
        %v2697 = vadd.f32 0.0, %v2696
        %v2698 = vpop.f32.mrf.mxu0
        %v2699 = vpop.f32.mrf.mxu0
        %v2700 = vadd.f32 0.0, %v2699
        %v2701 = vpop.f32.mrf.mxu0
        %2702 = vmatprep.mubr.bf16.mxu0 %v2313
        %2703 = vmatmul.mubr.bf16.gmra.mxu0 %v2164
        %v2704 = vpop.f32.mrf.mxu0
        %v2705 = vadd.f32 0.0, %v2704
        %v2706 = vpop.f32.mrf.mxu0
        %v2707 = vpop.f32.mrf.mxu0
        %v2708 = vadd.f32 0.0, %v2707
        %v2709 = vpop.f32.mrf.mxu0
        %2710 = vmatprep.mubr.bf16.mxu0 %v2316
        %2711 = vmatmul.mubr.bf16.gmra.mxu0 %v2168
        %v2712 = vpop.f32.mrf.mxu0
        %v2713 = vadd.f32 0.0, %v2712
        %v2714 = vpop.f32.mrf.mxu0
        %v2715 = vpop.f32.mrf.mxu0
        %v2716 = vadd.f32 0.0, %v2715
        %v2717 = vpop.f32.mrf.mxu0
        %2718 = vmatprep.mubr.bf16.mxu0 %v2319
        %2719 = vmatmul.mubr.bf16.gmra.mxu0 %v2172
        %v2720 = vpop.f32.mrf.mxu0
        %v2721 = vadd.f32 0.0, %v2720
        %v2722 = vpop.f32.mrf.mxu0
        %v2723 = vpop.f32.mrf.mxu0
        %v2724 = vadd.f32 0.0, %v2723
        %v2725 = vpop.f32.mrf.mxu0
        %2726 = vmatprep.mubr.bf16.mxu0 %v2322
        %2727 = vmatmul.mubr.bf16.gmra.mxu0 %v2176
        %v2728 = vpop.f32.mrf.mxu0
        %v2729 = vadd.f32 0.0, %v2728
        %v2730 = vpop.f32.mrf.mxu0
        %v2731 = vpop.f32.mrf.mxu0
        %v2732 = vadd.f32 0.0, %v2731
        %v2733 = vpop.f32.mrf.mxu0
        %2734 = vmatprep.mubr.bf16.mxu0 %v2325
        %2735 = vmatmul.mubr.bf16.gmra.mxu0 %v2180
        %v2736 = vpop.f32.mrf.mxu0
        %v2737 = vadd.f32 0.0, %v2736
        %v2738 = vpop.f32.mrf.mxu0
        %v2739 = vpop.f32.mrf.mxu0
        %v2740 = vadd.f32 0.0, %v2739
        %v2741 = vpop.f32.mrf.mxu0
        %2742 = vdwg.mxu0
        %v2743 = vadd.f32 %v2617, 0.0
        %v2744 = vadd.f32 %v2620, 0.0
        %v2745 = vadd.f32 %v2362, %v2625
        %v2746 = vadd.f32 %v2365, %v2628
        %v2747 = vadd.f32 %v2370, %v2633
        %v2748 = vadd.f32 %v2373, %v2636
        %v2749 = vadd.f32 %v2378, %v2641
        %v2750 = vadd.f32 %v2381, %v2644
        %v2751 = vadd.f32 %v2386, %v2649
        %v2752 = vadd.f32 %v2389, %v2652
        %v2753 = vadd.f32 %v2394, %v2657
        %v2754 = vadd.f32 %v2397, %v2660
        %v2755 = vadd.f32 %v2402, %v2665
        %v2756 = vadd.f32 %v2405, %v2668
        %v2757 = vadd.f32 %v2410, %v2673
        %v2758 = vadd.f32 %v2413, %v2676
        %v2759 = vadd.f32 %v2418, %v2681
        %v2760 = vadd.f32 %v2421, %v2684
        %v2761 = vadd.f32 %v2426, %v2689
        %v2762 = vadd.f32 %v2429, %v2692
        %v2763 = vadd.f32 %v2434, %v2697
        %v2764 = vadd.f32 %v2437, %v2700
        %v2765 = vadd.f32 %v2442, %v2705
        %v2766 = vadd.f32 %v2445, %v2708
        %v2767 = vadd.f32 %v2450, %v2713
        %v2768 = vadd.f32 %v2453, %v2716
        %v2769 = vadd.f32 %v2458, %v2721
        %v2770 = vadd.f32 %v2461, %v2724
        %v2771 = vadd.f32 %v2466, %v2729
        %v2772 = vadd.f32 %v2469, %v2732
        %v2773 = vadd.f32 %v2474, %v2737
        %v2774 = vadd.f32 %v2477, %v2740
        %v2775 = vld [vmem:[%s2182 + $0xc0] sm:$0xf]
        %v2776 = vld [vmem:[%s2182 + $0xc4] sm:$0xf]
        %v2777 = vld [vmem:[%s2182 + $0xc8] sm:$0xf]
        %v2778 = vld [vmem:[%s2182 + $0xcc] sm:$0xf]
        %v2779 = vld [vmem:[%s2182 + $0xd0] sm:$0xf]
        %v2780 = vld [vmem:[%s2182 + $0xd4] sm:$0xf]
        %v2781 = vld [vmem:[%s2182 + $0xd8] sm:$0xf]
        %v2782 = vld [vmem:[%s2182 + $0xdc] sm:$0xf]
        %v2783 = vld [vmem:[%s2182 + $0xe0] sm:$0xf]
        %v2784 = vld [vmem:[%s2182 + $0xe4] sm:$0xf]
        %v2785 = vld [vmem:[%s2182 + $0xe8] sm:$0xf]
        %v2786 = vld [vmem:[%s2182 + $0xec] sm:$0xf]
        %v2787 = vld [vmem:[%s2182 + $0xf0] sm:$0xf]
        %v2788 = vld [vmem:[%s2182 + $0xf4] sm:$0xf]
        %v2789 = vld [vmem:[%s2182 + $0xf8] sm:$0xf]
        %v2790 = vld [vmem:[%s2182 + $0xfc] sm:$0xf]
        %v2791 = vld [vmem:[%s2182 + $0x100] sm:$0xf]
        %v2792 = vld [vmem:[%s2182 + $0x104] sm:$0xf]
        %v2793 = vld [vmem:[%s2182 + $0x108] sm:$0xf]
        %v2794 = vld [vmem:[%s2182 + $0x10c] sm:$0xf]
        %v2795 = vld [vmem:[%s2182 + $0x110] sm:$0xf]
        %v2796 = vld [vmem:[%s2182 + $0x114] sm:$0xf]
        %v2797 = vld [vmem:[%s2182 + $0x118] sm:$0xf]
        %v2798 = vld [vmem:[%s2182 + $0x11c] sm:$0xf]
        %v2823 = vunpack.c.l.b16 %v2775
        %v2824 = vunpack.c.l.b16 %v2776
        %v2825 = vunpack.c.l.b16 %v2777
        %v2826 = vunpack.c.l.b16 %v2778
        %v2827 = vunpack.c.l.b16 %v2779
        %v2828 = vunpack.c.l.b16 %v2780
        %v2829 = vunpack.c.l.b16 %v2781
        %v2830 = vunpack.c.l.b16 %v2782
        %v2831 = vunpack.c.l.b16 %v2783
        %v2832 = vunpack.c.l.b16 %v2784
        %v2833 = vunpack.c.l.b16 %v2785
        %v2834 = vunpack.c.l.b16 %v2786
        %v2835 = vunpack.c.l.b16 %v2787
        %v2836 = vunpack.c.l.b16 %v2788
        %v2837 = vunpack.c.l.b16 %v2789
        %v2838 = vunpack.c.l.b16 %v2790
        %v2839 = vunpack.c.l.b16 %v2791
        %v2840 = vunpack.c.l.b16 %v2792
        %v2841 = vunpack.c.l.b16 %v2793
        %v2842 = vunpack.c.l.b16 %v2794
        %v2843 = vunpack.c.l.b16 %v2795
        %v2844 = vunpack.c.l.b16 %v2796
        %v2845 = vunpack.c.l.b16 %v2797
        %v2846 = vunpack.c.l.b16 %v2798
        %v2847 = vpack.c.b16 %v2824, %v2823
        %v2848 = vpack.c.b16 %v2826, %v2825
        %v2849 = vpack.c.b16 %v2828, %v2827
        %v2850 = vpack.c.b16 %v2830, %v2829
        %v2851 = vpack.c.b16 %v2832, %v2831
        %v2852 = vpack.c.b16 %v2834, %v2833
        %v2853 = vpack.c.b16 %v2836, %v2835
        %v2854 = vpack.c.b16 %v2838, %v2837
        %v2855 = vpack.c.b16 %v2840, %v2839
        %v2856 = vpack.c.b16 %v2842, %v2841
        %v2857 = vpack.c.b16 %v2844, %v2843
        %v2858 = vpack.c.b16 %v2846, %v2845
        %2871 = vmatprep.subr.bf16.mxu0 0
        %2872 = vmatpush1.bf16.msra.mxu0 %v2854
        %2873 = vmatprep.subr.bf16.mxu0 0
        %2874 = vmatpush1.bf16.msra.mxu0 %v2853
        %2875 = vmatprep.subr.bf16.mxu0 0
        %2876 = vmatpush1.bf16.msra.mxu0 %v2852
        %2877 = vmatprep.subr.bf16.mxu0 0
        %2878 = vmatpush1.bf16.msra.mxu0 %v2851
        %2879 = vmatprep.subr.bf16.mxu0 0
        %2880 = vmatpush1.bf16.msra.mxu0 %v2850
        %2881 = vmatprep.subr.bf16.mxu0 0
        %2882 = vmatpush1.bf16.msra.mxu0 %v2849
        %2883 = vmatprep.subr.bf16.mxu0 0
        %2884 = vmatpush1.bf16.msra.mxu0 %v2848
        %2885 = vmatprep.subr.bf16.mxu0 0
        %2886 = vmatpush1.bf16.msra.mxu0 %v2847
        %2887 = vmatprep.subr.bf16.mxu0 0
        %2888 = vmatpush2.bf16.msra.mxu0 0
        %2889 = vmatprep.subr.bf16.mxu0 0
        %2890 = vmatpush2.bf16.msra.mxu0 0
        %2891 = vmatprep.subr.bf16.mxu0 0
        %2892 = vmatpush2.bf16.msra.mxu0 0
        %2893 = vmatprep.subr.bf16.mxu0 0
        %2894 = vmatpush2.bf16.msra.mxu0 0
        %2895 = vmatprep.subr.bf16.mxu0 0
        %2896 = vmatpush2.bf16.msra.mxu0 %v2858
        %2897 = vmatprep.subr.bf16.mxu0 0
        %2898 = vmatpush2.bf16.msra.mxu0 %v2857
        %2899 = vmatprep.subr.bf16.mxu0 0
        %2900 = vmatpush2.bf16.msra.mxu0 %v2856
        %2901 = vmatprep.subr.bf16.mxu0 0
        %2902 = vmatpush2.bf16.msra.mxu0 %v2855
        %2903 = vmatprep.mubr.bf16.mxu0 %v2280
        %2904 = vmatmul.mubr.bf16.gmra.mxu0 %v2120
        %v2905 = vpop.f32.mrf.mxu0
        %v2906 = vpop.f32.mrf.mxu0
        %v2907 = vpop.f32.mrf.mxu0
        %v2908 = vpop.f32.mrf.mxu0
        %2909 = vmatprep.mubr.bf16.mxu0 %v2283
        %2910 = vmatmul.mubr.bf16.gmra.mxu0 %v2124
        %v2911 = vpop.f32.mrf.mxu0
        %v2912 = vadd.f32 0.0, %v2911
        %v2913 = vpop.f32.mrf.mxu0
        %v2914 = vpop.f32.mrf.mxu0
        %v2915 = vadd.f32 0.0, %v2914
        %v2916 = vpop.f32.mrf.mxu0
        %2917 = vmatprep.mubr.bf16.mxu0 %v2286
        %2918 = vmatmul.mubr.bf16.gmra.mxu0 %v2128
        %v2919 = vpop.f32.mrf.mxu0
        %v2920 = vadd.f32 0.0, %v2919
        %v2921 = vpop.f32.mrf.mxu0
        %v2922 = vpop.f32.mrf.mxu0
        %v2923 = vadd.f32 0.0, %v2922
        %v2924 = vpop.f32.mrf.mxu0
        %2925 = vmatprep.mubr.bf16.mxu0 %v2289
        %2926 = vmatmul.mubr.bf16.gmra.mxu0 %v2132
        %v2927 = vpop.f32.mrf.mxu0
        %v2928 = vadd.f32 0.0, %v2927
        %v2929 = vpop.f32.mrf.mxu0
        %v2930 = vpop.f32.mrf.mxu0
        %v2931 = vadd.f32 0.0, %v2930
        %v2932 = vpop.f32.mrf.mxu0
        %2933 = vmatprep.mubr.bf16.mxu0 %v2292
        %2934 = vmatmul.mubr.bf16.gmra.mxu0 %v2136
        %v2935 = vpop.f32.mrf.mxu0
        %v2936 = vadd.f32 0.0, %v2935
        %v2937 = vpop.f32.mrf.mxu0
        %v2938 = vpop.f32.mrf.mxu0
        %v2939 = vadd.f32 0.0, %v2938
        %v2940 = vpop.f32.mrf.mxu0
        %2941 = vmatprep.mubr.bf16.mxu0 %v2295
        %2942 = vmatmul.mubr.bf16.gmra.mxu0 %v2140
        %v2943 = vpop.f32.mrf.mxu0
        %v2944 = vadd.f32 0.0, %v2943
        %v2945 = vpop.f32.mrf.mxu0
        %v2946 = vpop.f32.mrf.mxu0
        %v2947 = vadd.f32 0.0, %v2946
        %v2948 = vpop.f32.mrf.mxu0
        %2949 = vmatprep.mubr.bf16.mxu0 %v2298
        %2950 = vmatmul.mubr.bf16.gmra.mxu0 %v2144
        %v2951 = vpop.f32.mrf.mxu0
        %v2952 = vadd.f32 0.0, %v2951
        %v2953 = vpop.f32.mrf.mxu0
        %v2954 = vpop.f32.mrf.mxu0
        %v2955 = vadd.f32 0.0, %v2954
        %v2956 = vpop.f32.mrf.mxu0
        %2957 = vmatprep.mubr.bf16.mxu0 %v2301
        %2958 = vmatmul.mubr.bf16.gmra.mxu0 %v2148
        %v2959 = vpop.f32.mrf.mxu0
        %v2960 = vadd.f32 0.0, %v2959
        %v2961 = vpop.f32.mrf.mxu0
        %v2962 = vpop.f32.mrf.mxu0
        %v2963 = vadd.f32 0.0, %v2962
        %v2964 = vpop.f32.mrf.mxu0
        %2965 = vmatprep.mubr.bf16.mxu0 %v2304
        %2966 = vmatmul.mubr.bf16.gmra.mxu0 %v2152
        %v2967 = vpop.f32.mrf.mxu0
        %v2968 = vadd.f32 0.0, %v2967
        %v2969 = vpop.f32.mrf.mxu0
        %v2970 = vpop.f32.mrf.mxu0
        %v2971 = vadd.f32 0.0, %v2970
        %v2972 = vpop.f32.mrf.mxu0
        %2973 = vmatprep.mubr.bf16.mxu0 %v2307
        %2974 = vmatmul.mubr.bf16.gmra.mxu0 %v2156
        %v2975 = vpop.f32.mrf.mxu0
        %v2976 = vadd.f32 0.0, %v2975
        %v2977 = vpop.f32.mrf.mxu0
        %v2978 = vpop.f32.mrf.mxu0
        %v2979 = vadd.f32 0.0, %v2978
        %v2980 = vpop.f32.mrf.mxu0
        %2981 = vmatprep.mubr.bf16.mxu0 %v2310
        %2982 = vmatmul.mubr.bf16.gmra.mxu0 %v2160
        %v2983 = vpop.f32.mrf.mxu0
        %v2984 = vadd.f32 0.0, %v2983
        %v2985 = vpop.f32.mrf.mxu0
        %v2986 = vpop.f32.mrf.mxu0
        %v2987 = vadd.f32 0.0, %v2986
        %v2988 = vpop.f32.mrf.mxu0
        %2989 = vmatprep.mubr.bf16.mxu0 %v2313
        %2990 = vmatmul.mubr.bf16.gmra.mxu0 %v2164
        %v2991 = vpop.f32.mrf.mxu0
        %v2992 = vadd.f32 0.0, %v2991
        %v2993 = vpop.f32.mrf.mxu0
        %v2994 = vpop.f32.mrf.mxu0
        %v2995 = vadd.f32 0.0, %v2994
        %v2996 = vpop.f32.mrf.mxu0
        %2997 = vmatprep.mubr.bf16.mxu0 %v2316
        %2998 = vmatmul.mubr.bf16.gmra.mxu0 %v2168
        %v2999 = vpop.f32.mrf.mxu0
        %v3000 = vadd.f32 0.0, %v2999
        %v3001 = vpop.f32.mrf.mxu0
        %v3002 = vpop.f32.mrf.mxu0
        %v3003 = vadd.f32 0.0, %v3002
        %v3004 = vpop.f32.mrf.mxu0
        %3005 = vmatprep.mubr.bf16.mxu0 %v2319
        %3006 = vmatmul.mubr.bf16.gmra.mxu0 %v2172
        %v3007 = vpop.f32.mrf.mxu0
        %v3008 = vadd.f32 0.0, %v3007
        %v3009 = vpop.f32.mrf.mxu0
        %v3010 = vpop.f32.mrf.mxu0
        %v3011 = vadd.f32 0.0, %v3010
        %v3012 = vpop.f32.mrf.mxu0
        %3013 = vmatprep.mubr.bf16.mxu0 %v2322
        %3014 = vmatmul.mubr.bf16.gmra.mxu0 %v2176
        %v3015 = vpop.f32.mrf.mxu0
        %v3016 = vadd.f32 0.0, %v3015
        %v3017 = vpop.f32.mrf.mxu0
        %v3018 = vpop.f32.mrf.mxu0
        %v3019 = vadd.f32 0.0, %v3018
        %v3020 = vpop.f32.mrf.mxu0
        %3021 = vmatprep.mubr.bf16.mxu0 %v2325
        %3022 = vmatmul.mubr.bf16.gmra.mxu0 %v2180
        %v3023 = vpop.f32.mrf.mxu0
        %v3024 = vadd.f32 0.0, %v3023
        %v3025 = vpop.f32.mrf.mxu0
        %v3026 = vpop.f32.mrf.mxu0
        %v3027 = vadd.f32 0.0, %v3026
        %v3028 = vpop.f32.mrf.mxu0
        %3029 = vdwg.mxu0
        %v3030 = vadd.f32 %v2743, %v2912
        %v3031 = vadd.f32 %v2744, %v2915
        %v3032 = vadd.f32 %v2745, %v2920
        %v3033 = vadd.f32 %v2746, %v2923
        %v3034 = vadd.f32 %v2747, %v2928
        %v3035 = vadd.f32 %v2748, %v2931
        %v3036 = vadd.f32 %v2749, %v2936
        %v3037 = vadd.f32 %v2750, %v2939
        %v3038 = vadd.f32 %v2751, %v2944
        %v3039 = vadd.f32 %v2752, %v2947
        %v3040 = vadd.f32 %v2753, %v2952
        %v3041 = vadd.f32 %v2754, %v2955
        %v3042 = vadd.f32 %v2755, %v2960
        %v3043 = vadd.f32 %v2756, %v2963
        %v3044 = vadd.f32 %v2757, %v2968
        %v3045 = vadd.f32 %v2758, %v2971
        %v3046 = vadd.f32 %v2759, %v2976
        %v3047 = vadd.f32 %v2760, %v2979
        %v3048 = vadd.f32 %v2761, %v2984
        %v3049 = vadd.f32 %v2762, %v2987
        %v3050 = vadd.f32 %v2763, %v2992
        %v3051 = vadd.f32 %v2764, %v2995
        %v3052 = vadd.f32 %v2765, %v3000
        %v3053 = vadd.f32 %v2766, %v3003
        %v3054 = vadd.f32 %v2767, %v3008
        %v3055 = vadd.f32 %v2768, %v3011
        %v3056 = vadd.f32 %v2769, %v3016
        %v3057 = vadd.f32 %v2770, %v3019
        %v3058 = vadd.f32 %v2771, %v3024
        %v3059 = vadd.f32 %v2772, %v3027
        %v3060 = vadd.f32 %v2773, 0.0
        %v3061 = vadd.f32 %v2774, 0.0
        %v3063 = vlaneseq
        %v3064 = vshrl.u32 %v3063, 7
        %v3065 = vsub.s32 0, %v3064
        %v3066 = vrot.slane %v1845, %v3065
        %v3068 = vadd.f32 %v3030, %v3066
        %v3069 = vadd.f32 %v3031, %v3066
        %v3070 = vadd.f32 %v3032, %v3066
        %v3071 = vadd.f32 %v3033, %v3066
        %v3072 = vadd.f32 %v3034, %v3066
        %v3073 = vadd.f32 %v3035, %v3066
        %v3074 = vadd.f32 %v3036, %v3066
        %v3075 = vadd.f32 %v3037, %v3066
        %v3076 = vadd.f32 %v3038, %v3066
        %v3077 = vadd.f32 %v3039, %v3066
        %v3078 = vadd.f32 %v3040, %v3066
        %v3079 = vadd.f32 %v3041, %v3066
        %v3080 = vadd.f32 %v3042, %v3066
        %v3081 = vadd.f32 %v3043, %v3066
        %v3082 = vadd.f32 %v3044, %v3066
        %v3083 = vadd.f32 %v3045, %v3066
        %v3084 = vadd.f32 %v3046, %v3066
        %v3085 = vadd.f32 %v3047, %v3066
        %v3086 = vadd.f32 %v3048, %v3066
        %v3087 = vadd.f32 %v3049, %v3066
        %v3088 = vadd.f32 %v3050, %v3066
        %v3089 = vadd.f32 %v3051, %v3066
        %v3090 = vadd.f32 %v3052, %v3066
        %v3091 = vadd.f32 %v3053, %v3066
        %v3092 = vadd.f32 %v3054, %v3066
        %v3093 = vadd.f32 %v3055, %v3066
        %v3094 = vadd.f32 %v3056, %v3066
        %v3095 = vadd.f32 %v3057, %v3066
        %v3096 = vadd.f32 %v3058, %v3066
        %v3097 = vadd.f32 %v3059, %v3066
        %v3098 = vadd.f32 %v3060, %v3066
        %v3099 = vadd.f32 %v3061, %v3066
        %v3100 = vmax.f32 %v3068, 0.0
        %v3101 = vmax.f32 %v3069, 0.0
        %v3102 = vmax.f32 %v3070, 0.0
        %v3103 = vmax.f32 %v3071, 0.0
        %v3104 = vmax.f32 %v3072, 0.0
        %v3105 = vmax.f32 %v3073, 0.0
        %v3106 = vmax.f32 %v3074, 0.0
        %v3107 = vmax.f32 %v3075, 0.0
        %v3108 = vmax.f32 %v3076, 0.0
        %v3109 = vmax.f32 %v3077, 0.0
        %v3110 = vmax.f32 %v3078, 0.0
        %v3111 = vmax.f32 %v3079, 0.0
        %v3112 = vmax.f32 %v3080, 0.0
        %v3113 = vmax.f32 %v3081, 0.0
        %v3114 = vmax.f32 %v3082, 0.0
        %v3115 = vmax.f32 %v3083, 0.0
        %v3116 = vmax.f32 %v3084, 0.0
        %v3117 = vmax.f32 %v3085, 0.0
        %v3118 = vmax.f32 %v3086, 0.0
        %v3119 = vmax.f32 %v3087, 0.0
        %v3120 = vmax.f32 %v3088, 0.0
        %v3121 = vmax.f32 %v3089, 0.0
        %v3122 = vmax.f32 %v3090, 0.0
        %v3123 = vmax.f32 %v3091, 0.0
        %v3124 = vmax.f32 %v3092, 0.0
        %v3125 = vmax.f32 %v3093, 0.0
        %v3126 = vmax.f32 %v3094, 0.0
        %v3127 = vmax.f32 %v3095, 0.0
        %v3128 = vmax.f32 %v3096, 0.0
        %v3129 = vmax.f32 %v3097, 0.0
        %v3130 = vmax.f32 %v3098, 0.0
        %v3131 = vmax.f32 %v3099, 0.0
        %v3132 = vld [vmem:[%s5] sm:$0x1]
        %v3133 = vpack.c.bf16 %v3101, %v3100
        %v3134 = vpack.c.bf16 %v3103, %v3102
        %v3135 = vpack.c.bf16 %v3105, %v3104
        %v3136 = vpack.c.bf16 %v3107, %v3106
        %v3137 = vpack.c.bf16 %v3109, %v3108
        %v3138 = vpack.c.bf16 %v3111, %v3110
        %v3139 = vpack.c.bf16 %v3113, %v3112
        %v3140 = vpack.c.bf16 %v3115, %v3114
        %v3141 = vpack.c.bf16 %v3117, %v3116
        %v3142 = vpack.c.bf16 %v3119, %v3118
        %v3143 = vpack.c.bf16 %v3121, %v3120
        %v3144 = vpack.c.bf16 %v3123, %v3122
        %v3145 = vpack.c.bf16 %v3125, %v3124
        %v3146 = vpack.c.bf16 %v3127, %v3126
        %v3147 = vpack.c.bf16 %v3129, %v3128
        %v3148 = vpack.c.bf16 %v3131, %v3130
        %v3150 = vshrl.u32 %v3133, 16
        %v3152 = vrot.slane %v3150, 7
        %v3153 = vshll.u32 %v3133, 16
        %v3155 = vor.u32 %v3152, %v3153
        %v3157 = vshrl.u32 %v3134, 16
        %v3159 = vrot.slane %v3157, 7
        %v3160 = vshll.u32 %v3134, 16
        %v3162 = vor.u32 %v3159, %v3160
        %v3164 = vshrl.u32 %v3135, 16
        %v3166 = vrot.slane %v3164, 7
        %v3167 = vshll.u32 %v3135, 16
        %v3169 = vor.u32 %v3166, %v3167
        %v3171 = vshrl.u32 %v3136, 16
        %v3173 = vrot.slane %v3171, 7
        %v3174 = vshll.u32 %v3136, 16
        %v3176 = vor.u32 %v3173, %v3174
        %v3178 = vshrl.u32 %v3137, 16
        %v3180 = vrot.slane %v3178, 7
        %v3181 = vshll.u32 %v3137, 16
        %v3183 = vor.u32 %v3180, %v3181
        %v3185 = vshrl.u32 %v3138, 16
        %v3187 = vrot.slane %v3185, 7
        %v3188 = vshll.u32 %v3138, 16
        %v3190 = vor.u32 %v3187, %v3188
        %v3192 = vshrl.u32 %v3139, 16
        %v3194 = vrot.slane %v3192, 7
        %v3195 = vshll.u32 %v3139, 16
        %v3197 = vor.u32 %v3194, %v3195
        %v3199 = vshrl.u32 %v3140, 16
        %v3201 = vrot.slane %v3199, 7
        %v3202 = vshll.u32 %v3140, 16
        %v3204 = vor.u32 %v3201, %v3202
        %v3206 = vshrl.u32 %v3141, 16
        %v3208 = vrot.slane %v3206, 7
        %v3209 = vshll.u32 %v3141, 16
        %v3211 = vor.u32 %v3208, %v3209
        %v3213 = vshrl.u32 %v3142, 16
        %v3215 = vrot.slane %v3213, 7
        %v3216 = vshll.u32 %v3142, 16
        %v3218 = vor.u32 %v3215, %v3216
        %v3220 = vshrl.u32 %v3143, 16
        %v3222 = vrot.slane %v3220, 7
        %v3223 = vshll.u32 %v3143, 16
        %v3225 = vor.u32 %v3222, %v3223
        %v3227 = vshrl.u32 %v3144, 16
        %v3229 = vrot.slane %v3227, 7
        %v3230 = vshll.u32 %v3144, 16
        %v3232 = vor.u32 %v3229, %v3230
        %v3234 = vshrl.u32 %v3145, 16
        %v3236 = vrot.slane %v3234, 7
        %v3237 = vshll.u32 %v3145, 16
        %v3239 = vor.u32 %v3236, %v3237
        %v3241 = vshrl.u32 %v3146, 16
        %v3243 = vrot.slane %v3241, 7
        %v3244 = vshll.u32 %v3146, 16
        %v3246 = vor.u32 %v3243, %v3244
        %v3248 = vshrl.u32 %v3147, 16
        %v3250 = vrot.slane %v3248, 7
        %v3251 = vshll.u32 %v3147, 16
        %v3253 = vor.u32 %v3250, %v3251
        %v3255 = vshrl.u32 %v3148, 16
        %v3257 = vrot.slane %v3255, 7
        %v3258 = vshll.u32 %v3148, 16
        %v3260 = vor.u32 %v3257, %v3258
        %v3277 = vsel %vm698, 0, %v3155
        %v3278 = vsel %vm698, 0, %v3162
        %v3279 = vsel %vm698, 0, %v3169
        %v3280 = vsel %vm698, 0, %v3176
        %v3281 = vsel %vm698, 0, %v3183
        %v3282 = vsel %vm698, 0, %v3190
        %v3283 = vsel %vm698, 0, %v3197
        %v3284 = vsel %vm698, 0, %v3204
        %v3285 = vsel %vm698, 0, %v3211
        %v3286 = vsel %vm698, 0, %v3218
        %v3287 = vsel %vm698, 0, %v3225
        %v3288 = vsel %vm698, 0, %v3232
        %v3289 = vsel %vm698, 0, %v3239
        %v3290 = vsel %vm698, 0, %v3246
        %v3291 = vsel %vm698, 0, %v3253
        %v3292 = vsel %vm698, 0, %v3260
        %v3293 = vrot.slane %v3153, 1
        %v3294 = vor.u32 %v3150, %v3293
        %v3295 = vrot.slane %v3160, 1
        %v3296 = vor.u32 %v3157, %v3295
        %v3297 = vrot.slane %v3167, 1
        %v3298 = vor.u32 %v3164, %v3297
        %v3299 = vrot.slane %v3174, 1
        %v3300 = vor.u32 %v3171, %v3299
        %v3301 = vrot.slane %v3181, 1
        %v3302 = vor.u32 %v3178, %v3301
        %v3303 = vrot.slane %v3188, 1
        %v3304 = vor.u32 %v3185, %v3303
        %v3305 = vrot.slane %v3195, 1
        %v3306 = vor.u32 %v3192, %v3305
        %v3307 = vrot.slane %v3202, 1
        %v3308 = vor.u32 %v3199, %v3307
        %v3309 = vrot.slane %v3209, 1
        %v3310 = vor.u32 %v3206, %v3309
        %v3311 = vrot.slane %v3216, 1
        %v3312 = vor.u32 %v3213, %v3311
        %v3313 = vrot.slane %v3223, 1
        %v3314 = vor.u32 %v3220, %v3313
        %v3315 = vrot.slane %v3230, 1
        %v3316 = vor.u32 %v3227, %v3315
        %v3317 = vrot.slane %v3237, 1
        %v3318 = vor.u32 %v3234, %v3317
        %v3319 = vrot.slane %v3244, 1
        %v3320 = vor.u32 %v3241, %v3319
        %v3321 = vrot.slane %v3251, 1
        %v3322 = vor.u32 %v3248, %v3321
        %v3323 = vrot.slane %v3258, 1
        %v3324 = vor.u32 %v3255, %v3323
        %v3341 = vsel %vm765, %v3294, 0
        %v3342 = vsel %vm765, %v3296, 0
        %v3343 = vsel %vm765, %v3298, 0
        %v3344 = vsel %vm765, %v3300, 0
        %v3345 = vsel %vm765, %v3302, 0
        %v3346 = vsel %vm765, %v3304, 0
        %v3347 = vsel %vm765, %v3306, 0
        %v3348 = vsel %vm765, %v3308, 0
        %v3349 = vsel %vm765, %v3310, 0
        %v3350 = vsel %vm765, %v3312, 0
        %v3351 = vsel %vm765, %v3314, 0
        %v3352 = vsel %vm765, %v3316, 0
        %v3353 = vsel %vm765, %v3318, 0
        %v3354 = vsel %vm765, %v3320, 0
        %v3355 = vsel %vm765, %v3322, 0
        %v3356 = vsel %vm765, %v3324, 0
        %3373 = vrot.lane.b32.xlu0 %v3133, 64
        %v3374 = vpop.permute.xlu0 %3373
        %3375 = vrot.lane.b32.xlu0 %v3134, 64
        %v3376 = vpop.permute.xlu0 %3375
        %3377 = vrot.lane.b32.xlu0 %v3135, 64
        %v3378 = vpop.permute.xlu0 %3377
        %3379 = vrot.lane.b32.xlu0 %v3136, 64
        %v3380 = vpop.permute.xlu0 %3379
        %3381 = vrot.lane.b32.xlu0 %v3137, 64
        %v3382 = vpop.permute.xlu0 %3381
        %3383 = vrot.lane.b32.xlu0 %v3138, 64
        %v3384 = vpop.permute.xlu0 %3383
        %3385 = vrot.lane.b32.xlu0 %v3139, 64
        %v3386 = vpop.permute.xlu0 %3385
        %3387 = vrot.lane.b32.xlu0 %v3140, 64
        %v3388 = vpop.permute.xlu0 %3387
        %3389 = vrot.lane.b32.xlu0 %v3141, 64
        %v3390 = vpop.permute.xlu0 %3389
        %3391 = vrot.lane.b32.xlu0 %v3142, 64
        %v3392 = vpop.permute.xlu0 %3391
        %3393 = vrot.lane.b32.xlu0 %v3143, 64
        %v3394 = vpop.permute.xlu0 %3393
        %3395 = vrot.lane.b32.xlu0 %v3144, 64
        %v3396 = vpop.permute.xlu0 %3395
        %3397 = vrot.lane.b32.xlu0 %v3145, 64
        %v3398 = vpop.permute.xlu0 %3397
        %3399 = vrot.lane.b32.xlu0 %v3146, 64
        %v3400 = vpop.permute.xlu0 %3399
        %3401 = vrot.lane.b32.xlu0 %v3147, 64
        %v3402 = vpop.permute.xlu0 %3401
        %3403 = vrot.lane.b32.xlu0 %v3148, 64
        %v3404 = vpop.permute.xlu0 %3403
        %v3407 = vsel %vm830, %v3277, %v3374
        %v3411 = vsel %vm830, %v3278, %v3376
        %v3415 = vsel %vm830, %v3279, %v3378
        %v3419 = vsel %vm830, %v3280, %v3380
        %v3423 = vsel %vm830, %v3281, %v3382
        %v3427 = vsel %vm830, %v3282, %v3384
        %v3431 = vsel %vm830, %v3283, %v3386
        %v3435 = vsel %vm830, %v3284, %v3388
        %v3439 = vsel %vm830, %v3285, %v3390
        %v3443 = vsel %vm830, %v3286, %v3392
        %v3447 = vsel %vm830, %v3287, %v3394
        %v3451 = vsel %vm830, %v3288, %v3396
        %v3455 = vsel %vm830, %v3289, %v3398
        %v3459 = vsel %vm830, %v3290, %v3400
        %v3463 = vsel %vm830, %v3291, %v3402
        %v3467 = vsel %vm830, %v3292, %v3404
        %v3469 = vld [vmem:[%s4] sm:$0xf]
        %v3470 = vld [vmem:[%s4 + $0x4] sm:$0xf]
        %v3471 = vld [vmem:[%s4 + $0x8] sm:$0xf]
        %v3472 = vld [vmem:[%s4 + $0xc] sm:$0xf]
        %v3473 = vld [vmem:[%s4 + $0x10] sm:$0xf]
        %v3474 = vld [vmem:[%s4 + $0x14] sm:$0xf]
        %v3475 = vld [vmem:[%s4 + $0x18] sm:$0xf]
        %v3476 = vld [vmem:[%s4 + $0x1c] sm:$0xf]
        %v3477 = vld [vmem:[%s4 + $0x20] sm:$0xf]
        %v3478 = vld [vmem:[%s4 + $0x24] sm:$0xf]
        %v3479 = vld [vmem:[%s4 + $0x28] sm:$0xf]
        %v3480 = vld [vmem:[%s4 + $0x2c] sm:$0xf]
        %v3481 = vld [vmem:[%s4 + $0x30] sm:$0xf]
        %v3482 = vld [vmem:[%s4 + $0x34] sm:$0xf]
        %v3483 = vld [vmem:[%s4 + $0x38] sm:$0xf]
        %v3484 = vld [vmem:[%s4 + $0x3c] sm:$0xf]
        %v3485 = vld [vmem:[%s4 + $0x40] sm:$0xf]
        %v3486 = vld [vmem:[%s4 + $0x44] sm:$0xf]
        %v3487 = vld [vmem:[%s4 + $0x48] sm:$0xf]
        %v3488 = vld [vmem:[%s4 + $0x4c] sm:$0xf]
        %v3489 = vld [vmem:[%s4 + $0x50] sm:$0xf]
        %v3490 = vld [vmem:[%s4 + $0x54] sm:$0xf]
        %v3491 = vld [vmem:[%s4 + $0x58] sm:$0xf]
        %v3492 = vld [vmem:[%s4 + $0x5c] sm:$0xf]
        %v3517 = vunpack.c.l.b16 %v3469
        %v3518 = vunpack.c.l.b16 %v3470
        %v3519 = vunpack.c.l.b16 %v3471
        %v3520 = vunpack.c.l.b16 %v3472
        %v3521 = vunpack.c.l.b16 %v3473
        %v3522 = vunpack.c.l.b16 %v3474
        %v3523 = vunpack.c.l.b16 %v3475
        %v3524 = vunpack.c.l.b16 %v3476
        %v3525 = vunpack.c.l.b16 %v3477
        %v3526 = vunpack.c.l.b16 %v3478
        %v3527 = vunpack.c.l.b16 %v3479
        %v3528 = vunpack.c.l.b16 %v3480
        %v3529 = vunpack.c.l.b16 %v3481
        %v3530 = vunpack.c.l.b16 %v3482
        %v3531 = vunpack.c.l.b16 %v3483
        %v3532 = vunpack.c.l.b16 %v3484
        %v3533 = vunpack.c.l.b16 %v3485
        %v3534 = vunpack.c.l.b16 %v3486
        %v3535 = vunpack.c.l.b16 %v3487
        %v3536 = vunpack.c.l.b16 %v3488
        %v3537 = vunpack.c.l.b16 %v3489
        %v3538 = vunpack.c.l.b16 %v3490
        %v3539 = vunpack.c.l.b16 %v3491
        %v3540 = vunpack.c.l.b16 %v3492
        %v3541 = vpack.c.b16 %v3518, %v3517
        %v3542 = vpack.c.b16 %v3520, %v3519
        %v3543 = vpack.c.b16 %v3522, %v3521
        %v3544 = vpack.c.b16 %v3524, %v3523
        %v3545 = vpack.c.b16 %v3526, %v3525
        %v3546 = vpack.c.b16 %v3528, %v3527
        %v3547 = vpack.c.b16 %v3530, %v3529
        %v3548 = vpack.c.b16 %v3532, %v3531
        %v3549 = vpack.c.b16 %v3534, %v3533
        %v3550 = vpack.c.b16 %v3536, %v3535
        %v3551 = vpack.c.b16 %v3538, %v3537
        %v3552 = vpack.c.b16 %v3540, %v3539
        %v3566 = vsel %vm830, %v3341, 0
        %v3569 = vsel %vm830, %v3342, 0
        %v3572 = vsel %vm830, %v3343, 0
        %v3575 = vsel %vm830, %v3344, 0
        %v3578 = vsel %vm830, %v3345, 0
        %v3581 = vsel %vm830, %v3346, 0
        %v3584 = vsel %vm830, %v3347, 0
        %v3587 = vsel %vm830, %v3348, 0
        %v3590 = vsel %vm830, %v3349, 0
        %v3593 = vsel %vm830, %v3350, 0
        %v3596 = vsel %vm830, %v3351, 0
        %v3599 = vsel %vm830, %v3352, 0
        %v3602 = vsel %vm830, %v3353, 0
        %v3605 = vsel %vm830, %v3354, 0
        %v3608 = vsel %vm830, %v3355, 0
        %v3611 = vsel %vm830, %v3356, 0
        %3613 = vmatprep.subr.bf16.mxu0 0
        %3614 = vmatpush1.bf16.msra.mxu0 %v3548
        %3615 = vmatprep.subr.bf16.mxu0 0
        %3616 = vmatpush1.bf16.msra.mxu0 %v3547
        %3617 = vmatprep.subr.bf16.mxu0 0
        %3618 = vmatpush1.bf16.msra.mxu0 %v3546
        %3619 = vmatprep.subr.bf16.mxu0 0
        %3620 = vmatpush1.bf16.msra.mxu0 %v3545
        %3621 = vmatprep.subr.bf16.mxu0 0
        %3622 = vmatpush1.bf16.msra.mxu0 %v3544
        %3623 = vmatprep.subr.bf16.mxu0 0
        %3624 = vmatpush1.bf16.msra.mxu0 %v3543
        %3625 = vmatprep.subr.bf16.mxu0 0
        %3626 = vmatpush1.bf16.msra.mxu0 %v3542
        %3627 = vmatprep.subr.bf16.mxu0 0
        %3628 = vmatpush1.bf16.msra.mxu0 %v3541
        %3629 = vmatprep.subr.bf16.mxu0 0
        %3630 = vmatpush2.bf16.msra.mxu0 0
        %3631 = vmatprep.subr.bf16.mxu0 0
        %3632 = vmatpush2.bf16.msra.mxu0 0
        %3633 = vmatprep.subr.bf16.mxu0 0
        %3634 = vmatpush2.bf16.msra.mxu0 0
        %3635 = vmatprep.subr.bf16.mxu0 0
        %3636 = vmatpush2.bf16.msra.mxu0 0
        %3637 = vmatprep.subr.bf16.mxu0 0
        %3638 = vmatpush2.bf16.msra.mxu0 %v3552
        %3639 = vmatprep.subr.bf16.mxu0 0
        %3640 = vmatpush2.bf16.msra.mxu0 %v3551
        %3641 = vmatprep.subr.bf16.mxu0 0
        %3642 = vmatpush2.bf16.msra.mxu0 %v3550
        %3643 = vmatprep.subr.bf16.mxu0 0
        %3644 = vmatpush2.bf16.msra.mxu0 %v3549
        %3645 = vmatprep.mubr.bf16.mxu0 %v3566
        %3646 = vmatmul.mubr.bf16.gmra.mxu0 %v3407
        %v3647 = vpop.f32.mrf.mxu0
        %v3648 = vadd.f32 0.0, %v3647
        %v3649 = vpop.f32.mrf.mxu0
        %v3650 = vpop.f32.mrf.mxu0
        %v3651 = vadd.f32 0.0, %v3650
        %v3652 = vpop.f32.mrf.mxu0
        %3653 = vmatprep.mubr.bf16.mxu0 %v3569
        %3654 = vmatmul.mubr.bf16.gmra.mxu0 %v3411
        %v3655 = vpop.f32.mrf.mxu0
        %v3656 = vadd.f32 0.0, %v3655
        %v3657 = vpop.f32.mrf.mxu0
        %v3658 = vpop.f32.mrf.mxu0
        %v3659 = vadd.f32 0.0, %v3658
        %v3660 = vpop.f32.mrf.mxu0
        %3661 = vmatprep.mubr.bf16.mxu0 %v3572
        %3662 = vmatmul.mubr.bf16.gmra.mxu0 %v3415
        %v3663 = vpop.f32.mrf.mxu0
        %v3664 = vadd.f32 0.0, %v3663
        %v3665 = vpop.f32.mrf.mxu0
        %v3666 = vpop.f32.mrf.mxu0
        %v3667 = vadd.f32 0.0, %v3666
        %v3668 = vpop.f32.mrf.mxu0
        %3669 = vmatprep.mubr.bf16.mxu0 %v3575
        %3670 = vmatmul.mubr.bf16.gmra.mxu0 %v3419
        %v3671 = vpop.f32.mrf.mxu0
        %v3672 = vadd.f32 0.0, %v3671
        %v3673 = vpop.f32.mrf.mxu0
        %v3674 = vpop.f32.mrf.mxu0
        %v3675 = vadd.f32 0.0, %v3674
        %v3676 = vpop.f32.mrf.mxu0
        %3677 = vmatprep.mubr.bf16.mxu0 %v3578
        %3678 = vmatmul.mubr.bf16.gmra.mxu0 %v3423
        %v3679 = vpop.f32.mrf.mxu0
        %v3680 = vadd.f32 0.0, %v3679
        %v3681 = vpop.f32.mrf.mxu0
        %v3682 = vpop.f32.mrf.mxu0
        %v3683 = vadd.f32 0.0, %v3682
        %v3684 = vpop.f32.mrf.mxu0
        %3685 = vmatprep.mubr.bf16.mxu0 %v3581
        %3686 = vmatmul.mubr.bf16.gmra.mxu0 %v3427
        %v3687 = vpop.f32.mrf.mxu0
        %v3688 = vadd.f32 0.0, %v3687
        %v3689 = vpop.f32.mrf.mxu0
        %v3690 = vpop.f32.mrf.mxu0
        %v3691 = vadd.f32 0.0, %v3690
        %v3692 = vpop.f32.mrf.mxu0
        %3693 = vmatprep.mubr.bf16.mxu0 %v3584
        %3694 = vmatmul.mubr.bf16.gmra.mxu0 %v3431
        %v3695 = vpop.f32.mrf.mxu0
        %v3696 = vadd.f32 0.0, %v3695
        %v3697 = vpop.f32.mrf.mxu0
        %v3698 = vpop.f32.mrf.mxu0
        %v3699 = vadd.f32 0.0, %v3698
        %v3700 = vpop.f32.mrf.mxu0
        %3701 = vmatprep.mubr.bf16.mxu0 %v3587
        %3702 = vmatmul.mubr.bf16.gmra.mxu0 %v3435
        %v3703 = vpop.f32.mrf.mxu0
        %v3704 = vadd.f32 0.0, %v3703
        %v3705 = vpop.f32.mrf.mxu0
        %v3706 = vpop.f32.mrf.mxu0
        %v3707 = vadd.f32 0.0, %v3706
        %v3708 = vpop.f32.mrf.mxu0
        %3709 = vmatprep.mubr.bf16.mxu0 %v3590
        %3710 = vmatmul.mubr.bf16.gmra.mxu0 %v3439
        %v3711 = vpop.f32.mrf.mxu0
        %v3712 = vadd.f32 0.0, %v3711
        %v3713 = vpop.f32.mrf.mxu0
        %v3714 = vpop.f32.mrf.mxu0
        %v3715 = vadd.f32 0.0, %v3714
        %v3716 = vpop.f32.mrf.mxu0
        %3717 = vmatprep.mubr.bf16.mxu0 %v3593
        %3718 = vmatmul.mubr.bf16.gmra.mxu0 %v3443
        %v3719 = vpop.f32.mrf.mxu0
        %v3720 = vadd.f32 0.0, %v3719
        %v3721 = vpop.f32.mrf.mxu0
        %v3722 = vpop.f32.mrf.mxu0
        %v3723 = vadd.f32 0.0, %v3722
        %v3724 = vpop.f32.mrf.mxu0
        %3725 = vmatprep.mubr.bf16.mxu0 %v3596
        %3726 = vmatmul.mubr.bf16.gmra.mxu0 %v3447
        %v3727 = vpop.f32.mrf.mxu0
        %v3728 = vadd.f32 0.0, %v3727
        %v3729 = vpop.f32.mrf.mxu0
        %v3730 = vpop.f32.mrf.mxu0
        %v3731 = vadd.f32 0.0, %v3730
        %v3732 = vpop.f32.mrf.mxu0
        %3733 = vmatprep.mubr.bf16.mxu0 %v3599
        %3734 = vmatmul.mubr.bf16.gmra.mxu0 %v3451
        %v3735 = vpop.f32.mrf.mxu0
        %v3736 = vadd.f32 0.0, %v3735
        %v3737 = vpop.f32.mrf.mxu0
        %v3738 = vpop.f32.mrf.mxu0
        %v3739 = vadd.f32 0.0, %v3738
        %v3740 = vpop.f32.mrf.mxu0
        %3741 = vmatprep.mubr.bf16.mxu0 %v3602
        %3742 = vmatmul.mubr.bf16.gmra.mxu0 %v3455
        %v3743 = vpop.f32.mrf.mxu0
        %v3744 = vadd.f32 0.0, %v3743
        %v3745 = vpop.f32.mrf.mxu0
        %v3746 = vpop.f32.mrf.mxu0
        %v3747 = vadd.f32 0.0, %v3746
        %v3748 = vpop.f32.mrf.mxu0
        %3749 = vmatprep.mubr.bf16.mxu0 %v3605
        %3750 = vmatmul.mubr.bf16.gmra.mxu0 %v3459
        %v3751 = vpop.f32.mrf.mxu0
        %v3752 = vadd.f32 0.0, %v3751
        %v3753 = vpop.f32.mrf.mxu0
        %v3754 = vpop.f32.mrf.mxu0
        %v3755 = vadd.f32 0.0, %v3754
        %v3756 = vpop.f32.mrf.mxu0
        %3757 = vmatprep.mubr.bf16.mxu0 %v3608
        %3758 = vmatmul.mubr.bf16.gmra.mxu0 %v3463
        %v3759 = vpop.f32.mrf.mxu0
        %v3760 = vadd.f32 0.0, %v3759
        %v3761 = vpop.f32.mrf.mxu0
        %v3762 = vpop.f32.mrf.mxu0
        %v3763 = vadd.f32 0.0, %v3762
        %v3764 = vpop.f32.mrf.mxu0
        %3765 = vmatprep.mubr.bf16.mxu0 %v3611
        %3766 = vmatmul.mubr.bf16.gmra.mxu0 %v3467
        %v3767 = vpop.f32.mrf.mxu0
        %v3768 = vpop.f32.mrf.mxu0
        %v3769 = vpop.f32.mrf.mxu0
        %v3770 = vpop.f32.mrf.mxu0
        %3771 = vdwg.mxu0
        %v3772 = vld [vmem:[%s4 + $0x60] sm:$0xf]
        %v3773 = vld [vmem:[%s4 + $0x64] sm:$0xf]
        %v3774 = vld [vmem:[%s4 + $0x68] sm:$0xf]
        %v3775 = vld [vmem:[%s4 + $0x6c] sm:$0xf]
        %v3776 = vld [vmem:[%s4 + $0x70] sm:$0xf]
        %v3777 = vld [vmem:[%s4 + $0x74] sm:$0xf]
        %v3778 = vld [vmem:[%s4 + $0x78] sm:$0xf]
        %v3779 = vld [vmem:[%s4 + $0x7c] sm:$0xf]
        %v3780 = vld [vmem:[%s4 + $0x80] sm:$0xf]
        %v3781 = vld [vmem:[%s4 + $0x84] sm:$0xf]
        %v3782 = vld [vmem:[%s4 + $0x88] sm:$0xf]
        %v3783 = vld [vmem:[%s4 + $0x8c] sm:$0xf]
        %v3784 = vld [vmem:[%s4 + $0x90] sm:$0xf]
        %v3785 = vld [vmem:[%s4 + $0x94] sm:$0xf]
        %v3786 = vld [vmem:[%s4 + $0x98] sm:$0xf]
        %v3787 = vld [vmem:[%s4 + $0x9c] sm:$0xf]
        %v3788 = vld [vmem:[%s4 + $0xa0] sm:$0xf]
        %v3789 = vld [vmem:[%s4 + $0xa4] sm:$0xf]
        %v3790 = vld [vmem:[%s4 + $0xa8] sm:$0xf]
        %v3791 = vld [vmem:[%s4 + $0xac] sm:$0xf]
        %v3792 = vld [vmem:[%s4 + $0xb0] sm:$0xf]
        %v3793 = vld [vmem:[%s4 + $0xb4] sm:$0xf]
        %v3794 = vld [vmem:[%s4 + $0xb8] sm:$0xf]
        %v3795 = vld [vmem:[%s4 + $0xbc] sm:$0xf]
        %v3820 = vunpack.c.l.b16 %v3772
        %v3821 = vunpack.c.l.b16 %v3773
        %v3822 = vunpack.c.l.b16 %v3774
        %v3823 = vunpack.c.l.b16 %v3775
        %v3824 = vunpack.c.l.b16 %v3776
        %v3825 = vunpack.c.l.b16 %v3777
        %v3826 = vunpack.c.l.b16 %v3778
        %v3827 = vunpack.c.l.b16 %v3779
        %v3828 = vunpack.c.l.b16 %v3780
        %v3829 = vunpack.c.l.b16 %v3781
        %v3830 = vunpack.c.l.b16 %v3782
        %v3831 = vunpack.c.l.b16 %v3783
        %v3832 = vunpack.c.l.b16 %v3784
        %v3833 = vunpack.c.l.b16 %v3785
        %v3834 = vunpack.c.l.b16 %v3786
        %v3835 = vunpack.c.l.b16 %v3787
        %v3836 = vunpack.c.l.b16 %v3788
        %v3837 = vunpack.c.l.b16 %v3789
        %v3838 = vunpack.c.l.b16 %v3790
        %v3839 = vunpack.c.l.b16 %v3791
        %v3840 = vunpack.c.l.b16 %v3792
        %v3841 = vunpack.c.l.b16 %v3793
        %v3842 = vunpack.c.l.b16 %v3794
        %v3843 = vunpack.c.l.b16 %v3795
        %v3844 = vpack.c.b16 %v3821, %v3820
        %v3845 = vpack.c.b16 %v3823, %v3822
        %v3846 = vpack.c.b16 %v3825, %v3824
        %v3847 = vpack.c.b16 %v3827, %v3826
        %v3848 = vpack.c.b16 %v3829, %v3828
        %v3849 = vpack.c.b16 %v3831, %v3830
        %v3850 = vpack.c.b16 %v3833, %v3832
        %v3851 = vpack.c.b16 %v3835, %v3834
        %v3852 = vpack.c.b16 %v3837, %v3836
        %v3853 = vpack.c.b16 %v3839, %v3838
        %v3854 = vpack.c.b16 %v3841, %v3840
        %v3855 = vpack.c.b16 %v3843, %v3842
        %3868 = vmatprep.subr.bf16.mxu0 0
        %3869 = vmatpush1.bf16.msra.mxu0 %v3851
        %3870 = vmatprep.subr.bf16.mxu0 0
        %3871 = vmatpush1.bf16.msra.mxu0 %v3850
        %3872 = vmatprep.subr.bf16.mxu0 0
        %3873 = vmatpush1.bf16.msra.mxu0 %v3849
        %3874 = vmatprep.subr.bf16.mxu0 0
        %3875 = vmatpush1.bf16.msra.mxu0 %v3848
        %3876 = vmatprep.subr.bf16.mxu0 0
        %3877 = vmatpush1.bf16.msra.mxu0 %v3847
        %3878 = vmatprep.subr.bf16.mxu0 0
        %3879 = vmatpush1.bf16.msra.mxu0 %v3846
        %3880 = vmatprep.subr.bf16.mxu0 0
        %3881 = vmatpush1.bf16.msra.mxu0 %v3845
        %3882 = vmatprep.subr.bf16.mxu0 0
        %3883 = vmatpush1.bf16.msra.mxu0 %v3844
        %3884 = vmatprep.subr.bf16.mxu0 0
        %3885 = vmatpush2.bf16.msra.mxu0 0
        %3886 = vmatprep.subr.bf16.mxu0 0
        %3887 = vmatpush2.bf16.msra.mxu0 0
        %3888 = vmatprep.subr.bf16.mxu0 0
        %3889 = vmatpush2.bf16.msra.mxu0 0
        %3890 = vmatprep.subr.bf16.mxu0 0
        %3891 = vmatpush2.bf16.msra.mxu0 0
        %3892 = vmatprep.subr.bf16.mxu0 0
        %3893 = vmatpush2.bf16.msra.mxu0 %v3855
        %3894 = vmatprep.subr.bf16.mxu0 0
        %3895 = vmatpush2.bf16.msra.mxu0 %v3854
        %3896 = vmatprep.subr.bf16.mxu0 0
        %3897 = vmatpush2.bf16.msra.mxu0 %v3853
        %3898 = vmatprep.subr.bf16.mxu0 0
        %3899 = vmatpush2.bf16.msra.mxu0 %v3852
        %3900 = vmatprep.mubr.bf16.mxu0 %v3566
        %3901 = vmatmul.mubr.bf16.gmra.mxu0 %v3407
        %v3902 = vpop.f32.mrf.mxu0
        %v3903 = vadd.f32 0.0, %v3902
        %v3904 = vpop.f32.mrf.mxu0
        %v3905 = vpop.f32.mrf.mxu0
        %v3906 = vadd.f32 0.0, %v3905
        %v3907 = vpop.f32.mrf.mxu0
        %3908 = vmatprep.mubr.bf16.mxu0 %v3569
        %3909 = vmatmul.mubr.bf16.gmra.mxu0 %v3411
        %v3910 = vpop.f32.mrf.mxu0
        %v3911 = vadd.f32 0.0, %v3910
        %v3912 = vpop.f32.mrf.mxu0
        %v3913 = vpop.f32.mrf.mxu0
        %v3914 = vadd.f32 0.0, %v3913
        %v3915 = vpop.f32.mrf.mxu0
        %3916 = vmatprep.mubr.bf16.mxu0 %v3572
        %3917 = vmatmul.mubr.bf16.gmra.mxu0 %v3415
        %v3918 = vpop.f32.mrf.mxu0
        %v3919 = vadd.f32 0.0, %v3918
        %v3920 = vpop.f32.mrf.mxu0
        %v3921 = vpop.f32.mrf.mxu0
        %v3922 = vadd.f32 0.0, %v3921
        %v3923 = vpop.f32.mrf.mxu0
        %3924 = vmatprep.mubr.bf16.mxu0 %v3575
        %3925 = vmatmul.mubr.bf16.gmra.mxu0 %v3419
        %v3926 = vpop.f32.mrf.mxu0
        %v3927 = vadd.f32 0.0, %v3926
        %v3928 = vpop.f32.mrf.mxu0
        %v3929 = vpop.f32.mrf.mxu0
        %v3930 = vadd.f32 0.0, %v3929
        %v3931 = vpop.f32.mrf.mxu0
        %3932 = vmatprep.mubr.bf16.mxu0 %v3578
        %3933 = vmatmul.mubr.bf16.gmra.mxu0 %v3423
        %v3934 = vpop.f32.mrf.mxu0
        %v3935 = vadd.f32 0.0, %v3934
        %v3936 = vpop.f32.mrf.mxu0
        %v3937 = vpop.f32.mrf.mxu0
        %v3938 = vadd.f32 0.0, %v3937
        %v3939 = vpop.f32.mrf.mxu0
        %3940 = vmatprep.mubr.bf16.mxu0 %v3581
        %3941 = vmatmul.mubr.bf16.gmra.mxu0 %v3427
        %v3942 = vpop.f32.mrf.mxu0
        %v3943 = vadd.f32 0.0, %v3942
        %v3944 = vpop.f32.mrf.mxu0
        %v3945 = vpop.f32.mrf.mxu0
        %v3946 = vadd.f32 0.0, %v3945
        %v3947 = vpop.f32.mrf.mxu0
        %3948 = vmatprep.mubr.bf16.mxu0 %v3584
        %3949 = vmatmul.mubr.bf16.gmra.mxu0 %v3431
        %v3950 = vpop.f32.mrf.mxu0
        %v3951 = vadd.f32 0.0, %v3950
        %v3952 = vpop.f32.mrf.mxu0
        %v3953 = vpop.f32.mrf.mxu0
        %v3954 = vadd.f32 0.0, %v3953
        %v3955 = vpop.f32.mrf.mxu0
        %3956 = vmatprep.mubr.bf16.mxu0 %v3587
        %3957 = vmatmul.mubr.bf16.gmra.mxu0 %v3435
        %v3958 = vpop.f32.mrf.mxu0
        %v3959 = vadd.f32 0.0, %v3958
        %v3960 = vpop.f32.mrf.mxu0
        %v3961 = vpop.f32.mrf.mxu0
        %v3962 = vadd.f32 0.0, %v3961
        %v3963 = vpop.f32.mrf.mxu0
        %3964 = vmatprep.mubr.bf16.mxu0 %v3590
        %3965 = vmatmul.mubr.bf16.gmra.mxu0 %v3439
        %v3966 = vpop.f32.mrf.mxu0
        %v3967 = vadd.f32 0.0, %v3966
        %v3968 = vpop.f32.mrf.mxu0
        %v3969 = vpop.f32.mrf.mxu0
        %v3970 = vadd.f32 0.0, %v3969
        %v3971 = vpop.f32.mrf.mxu0
        %3972 = vmatprep.mubr.bf16.mxu0 %v3593
        %3973 = vmatmul.mubr.bf16.gmra.mxu0 %v3443
        %v3974 = vpop.f32.mrf.mxu0
        %v3975 = vadd.f32 0.0, %v3974
        %v3976 = vpop.f32.mrf.mxu0
        %v3977 = vpop.f32.mrf.mxu0
        %v3978 = vadd.f32 0.0, %v3977
        %v3979 = vpop.f32.mrf.mxu0
        %3980 = vmatprep.mubr.bf16.mxu0 %v3596
        %3981 = vmatmul.mubr.bf16.gmra.mxu0 %v3447
        %v3982 = vpop.f32.mrf.mxu0
        %v3983 = vadd.f32 0.0, %v3982
        %v3984 = vpop.f32.mrf.mxu0
        %v3985 = vpop.f32.mrf.mxu0
        %v3986 = vadd.f32 0.0, %v3985
        %v3987 = vpop.f32.mrf.mxu0
        %3988 = vmatprep.mubr.bf16.mxu0 %v3599
        %3989 = vmatmul.mubr.bf16.gmra.mxu0 %v3451
        %v3990 = vpop.f32.mrf.mxu0
        %v3991 = vadd.f32 0.0, %v3990
        %v3992 = vpop.f32.mrf.mxu0
        %v3993 = vpop.f32.mrf.mxu0
        %v3994 = vadd.f32 0.0, %v3993
        %v3995 = vpop.f32.mrf.mxu0
        %3996 = vmatprep.mubr.bf16.mxu0 %v3602
        %3997 = vmatmul.mubr.bf16.gmra.mxu0 %v3455
        %v3998 = vpop.f32.mrf.mxu0
        %v3999 = vadd.f32 0.0, %v3998
        %v4000 = vpop.f32.mrf.mxu0
        %v4001 = vpop.f32.mrf.mxu0
        %v4002 = vadd.f32 0.0, %v4001
        %v4003 = vpop.f32.mrf.mxu0
        %4004 = vmatprep.mubr.bf16.mxu0 %v3605
        %4005 = vmatmul.mubr.bf16.gmra.mxu0 %v3459
        %v4006 = vpop.f32.mrf.mxu0
        %v4007 = vadd.f32 0.0, %v4006
        %v4008 = vpop.f32.mrf.mxu0
        %v4009 = vpop.f32.mrf.mxu0
        %v4010 = vadd.f32 0.0, %v4009
        %v4011 = vpop.f32.mrf.mxu0
        %4012 = vmatprep.mubr.bf16.mxu0 %v3608
        %4013 = vmatmul.mubr.bf16.gmra.mxu0 %v3463
        %v4014 = vpop.f32.mrf.mxu0
        %v4015 = vadd.f32 0.0, %v4014
        %v4016 = vpop.f32.mrf.mxu0
        %v4017 = vpop.f32.mrf.mxu0
        %v4018 = vadd.f32 0.0, %v4017
        %v4019 = vpop.f32.mrf.mxu0
        %4020 = vmatprep.mubr.bf16.mxu0 %v3611
        %4021 = vmatmul.mubr.bf16.gmra.mxu0 %v3467
        %v4022 = vpop.f32.mrf.mxu0
        %v4023 = vadd.f32 0.0, %v4022
        %v4024 = vpop.f32.mrf.mxu0
        %v4025 = vpop.f32.mrf.mxu0
        %v4026 = vadd.f32 0.0, %v4025
        %v4027 = vpop.f32.mrf.mxu0
        %4028 = vdwg.mxu0
        %v4029 = vadd.f32 %v3903, 0.0
        %v4030 = vadd.f32 %v3906, 0.0
        %v4031 = vadd.f32 %v3648, %v3911
        %v4032 = vadd.f32 %v3651, %v3914
        %v4033 = vadd.f32 %v3656, %v3919
        %v4034 = vadd.f32 %v3659, %v3922
        %v4035 = vadd.f32 %v3664, %v3927
        %v4036 = vadd.f32 %v3667, %v3930
        %v4037 = vadd.f32 %v3672, %v3935
        %v4038 = vadd.f32 %v3675, %v3938
        %v4039 = vadd.f32 %v3680, %v3943
        %v4040 = vadd.f32 %v3683, %v3946
        %v4041 = vadd.f32 %v3688, %v3951
        %v4042 = vadd.f32 %v3691, %v3954
        %v4043 = vadd.f32 %v3696, %v3959
        %v4044 = vadd.f32 %v3699, %v3962
        %v4045 = vadd.f32 %v3704, %v3967
        %v4046 = vadd.f32 %v3707, %v3970
        %v4047 = vadd.f32 %v3712, %v3975
        %v4048 = vadd.f32 %v3715, %v3978
        %v4049 = vadd.f32 %v3720, %v3983
        %v4050 = vadd.f32 %v3723, %v3986
        %v4051 = vadd.f32 %v3728, %v3991
        %v4052 = vadd.f32 %v3731, %v3994
        %v4053 = vadd.f32 %v3736, %v3999
        %v4054 = vadd.f32 %v3739, %v4002
        %v4055 = vadd.f32 %v3744, %v4007
        %v4056 = vadd.f32 %v3747, %v4010
        %v4057 = vadd.f32 %v3752, %v4015
        %v4058 = vadd.f32 %v3755, %v4018
        %v4059 = vadd.f32 %v3760, %v4023
        %v4060 = vadd.f32 %v3763, %v4026
        %v4061 = vld [vmem:[%s4 + $0xc0] sm:$0xf]
        %v4062 = vld [vmem:[%s4 + $0xc4] sm:$0xf]
        %v4063 = vld [vmem:[%s4 + $0xc8] sm:$0xf]
        %v4064 = vld [vmem:[%s4 + $0xcc] sm:$0xf]
        %v4065 = vld [vmem:[%s4 + $0xd0] sm:$0xf]
        %v4066 = vld [vmem:[%s4 + $0xd4] sm:$0xf]
        %v4067 = vld [vmem:[%s4 + $0xd8] sm:$0xf]
        %v4068 = vld [vmem:[%s4 + $0xdc] sm:$0xf]
        %v4069 = vld [vmem:[%s4 + $0xe0] sm:$0xf]
        %v4070 = vld [vmem:[%s4 + $0xe4] sm:$0xf]
        %v4071 = vld [vmem:[%s4 + $0xe8] sm:$0xf]
        %v4072 = vld [vmem:[%s4 + $0xec] sm:$0xf]
        %v4073 = vld [vmem:[%s4 + $0xf0] sm:$0xf]
        %v4074 = vld [vmem:[%s4 + $0xf4] sm:$0xf]
        %v4075 = vld [vmem:[%s4 + $0xf8] sm:$0xf]
        %v4076 = vld [vmem:[%s4 + $0xfc] sm:$0xf]
        %v4077 = vld [vmem:[%s4 + $0x100] sm:$0xf]
        %v4078 = vld [vmem:[%s4 + $0x104] sm:$0xf]
        %v4079 = vld [vmem:[%s4 + $0x108] sm:$0xf]
        %v4080 = vld [vmem:[%s4 + $0x10c] sm:$0xf]
        %v4081 = vld [vmem:[%s4 + $0x110] sm:$0xf]
        %v4082 = vld [vmem:[%s4 + $0x114] sm:$0xf]
        %v4083 = vld [vmem:[%s4 + $0x118] sm:$0xf]
        %v4084 = vld [vmem:[%s4 + $0x11c] sm:$0xf]
        %v4109 = vunpack.c.l.b16 %v4061
        %v4110 = vunpack.c.l.b16 %v4062
        %v4111 = vunpack.c.l.b16 %v4063
        %v4112 = vunpack.c.l.b16 %v4064
        %v4113 = vunpack.c.l.b16 %v4065
        %v4114 = vunpack.c.l.b16 %v4066
        %v4115 = vunpack.c.l.b16 %v4067
        %v4116 = vunpack.c.l.b16 %v4068
        %v4117 = vunpack.c.l.b16 %v4069
        %v4118 = vunpack.c.l.b16 %v4070
        %v4119 = vunpack.c.l.b16 %v4071
        %v4120 = vunpack.c.l.b16 %v4072
        %v4121 = vunpack.c.l.b16 %v4073
        %v4122 = vunpack.c.l.b16 %v4074
        %v4123 = vunpack.c.l.b16 %v4075
        %v4124 = vunpack.c.l.b16 %v4076
        %v4125 = vunpack.c.l.b16 %v4077
        %v4126 = vunpack.c.l.b16 %v4078
        %v4127 = vunpack.c.l.b16 %v4079
        %v4128 = vunpack.c.l.b16 %v4080
        %v4129 = vunpack.c.l.b16 %v4081
        %v4130 = vunpack.c.l.b16 %v4082
        %v4131 = vunpack.c.l.b16 %v4083
        %v4132 = vunpack.c.l.b16 %v4084
        %v4133 = vpack.c.b16 %v4110, %v4109
        %v4134 = vpack.c.b16 %v4112, %v4111
        %v4135 = vpack.c.b16 %v4114, %v4113
        %v4136 = vpack.c.b16 %v4116, %v4115
        %v4137 = vpack.c.b16 %v4118, %v4117
        %v4138 = vpack.c.b16 %v4120, %v4119
        %v4139 = vpack.c.b16 %v4122, %v4121
        %v4140 = vpack.c.b16 %v4124, %v4123
        %v4141 = vpack.c.b16 %v4126, %v4125
        %v4142 = vpack.c.b16 %v4128, %v4127
        %v4143 = vpack.c.b16 %v4130, %v4129
        %v4144 = vpack.c.b16 %v4132, %v4131
        %4157 = vmatprep.subr.bf16.mxu0 0
        %4158 = vmatpush1.bf16.msra.mxu0 %v4140
        %4159 = vmatprep.subr.bf16.mxu0 0
        %4160 = vmatpush1.bf16.msra.mxu0 %v4139
        %4161 = vmatprep.subr.bf16.mxu0 0
        %4162 = vmatpush1.bf16.msra.mxu0 %v4138
        %4163 = vmatprep.subr.bf16.mxu0 0
        %4164 = vmatpush1.bf16.msra.mxu0 %v4137
        %4165 = vmatprep.subr.bf16.mxu0 0
        %4166 = vmatpush1.bf16.msra.mxu0 %v4136
        %4167 = vmatprep.subr.bf16.mxu0 0
        %4168 = vmatpush1.bf16.msra.mxu0 %v4135
        %4169 = vmatprep.subr.bf16.mxu0 0
        %4170 = vmatpush1.bf16.msra.mxu0 %v4134
        %4171 = vmatprep.subr.bf16.mxu0 0
        %4172 = vmatpush1.bf16.msra.mxu0 %v4133
        %4173 = vmatprep.subr.bf16.mxu0 0
        %4174 = vmatpush2.bf16.msra.mxu0 0
        %4175 = vmatprep.subr.bf16.mxu0 0
        %4176 = vmatpush2.bf16.msra.mxu0 0
        %4177 = vmatprep.subr.bf16.mxu0 0
        %4178 = vmatpush2.bf16.msra.mxu0 0
        %4179 = vmatprep.subr.bf16.mxu0 0
        %4180 = vmatpush2.bf16.msra.mxu0 0
        %4181 = vmatprep.subr.bf16.mxu0 0
        %4182 = vmatpush2.bf16.msra.mxu0 %v4144
        %4183 = vmatprep.subr.bf16.mxu0 0
        %4184 = vmatpush2.bf16.msra.mxu0 %v4143
        %4185 = vmatprep.subr.bf16.mxu0 0
        %4186 = vmatpush2.bf16.msra.mxu0 %v4142
        %4187 = vmatprep.subr.bf16.mxu0 0
        %4188 = vmatpush2.bf16.msra.mxu0 %v4141
        %4189 = vmatprep.mubr.bf16.mxu0 %v3566
        %4190 = vmatmul.mubr.bf16.gmra.mxu0 %v3407
        %v4191 = vpop.f32.mrf.mxu0
        %v4192 = vpop.f32.mrf.mxu0
        %v4193 = vpop.f32.mrf.mxu0
        %v4194 = vpop.f32.mrf.mxu0
        %4195 = vmatprep.mubr.bf16.mxu0 %v3569
        %4196 = vmatmul.mubr.bf16.gmra.mxu0 %v3411
        %v4197 = vpop.f32.mrf.mxu0
        %v4198 = vadd.f32 0.0, %v4197
        %v4199 = vpop.f32.mrf.mxu0
        %v4200 = vpop.f32.mrf.mxu0
        %v4201 = vadd.f32 0.0, %v4200
        %v4202 = vpop.f32.mrf.mxu0
        %4203 = vmatprep.mubr.bf16.mxu0 %v3572
        %4204 = vmatmul.mubr.bf16.gmra.mxu0 %v3415
        %v4205 = vpop.f32.mrf.mxu0
        %v4206 = vadd.f32 0.0, %v4205
        %v4207 = vpop.f32.mrf.mxu0
        %v4208 = vpop.f32.mrf.mxu0
        %v4209 = vadd.f32 0.0, %v4208
        %v4210 = vpop.f32.mrf.mxu0
        %4211 = vmatprep.mubr.bf16.mxu0 %v3575
        %4212 = vmatmul.mubr.bf16.gmra.mxu0 %v3419
        %v4213 = vpop.f32.mrf.mxu0
        %v4214 = vadd.f32 0.0, %v4213
        %v4215 = vpop.f32.mrf.mxu0
        %v4216 = vpop.f32.mrf.mxu0
        %v4217 = vadd.f32 0.0, %v4216
        %v4218 = vpop.f32.mrf.mxu0
        %4219 = vmatprep.mubr.bf16.mxu0 %v3578
        %4220 = vmatmul.mubr.bf16.gmra.mxu0 %v3423
        %v4221 = vpop.f32.mrf.mxu0
        %v4222 = vadd.f32 0.0, %v4221
        %v4223 = vpop.f32.mrf.mxu0
        %v4224 = vpop.f32.mrf.mxu0
        %v4225 = vadd.f32 0.0, %v4224
        %v4226 = vpop.f32.mrf.mxu0
        %4227 = vmatprep.mubr.bf16.mxu0 %v3581
        %4228 = vmatmul.mubr.bf16.gmra.mxu0 %v3427
        %v4229 = vpop.f32.mrf.mxu0
        %v4230 = vadd.f32 0.0, %v4229
        %v4231 = vpop.f32.mrf.mxu0
        %v4232 = vpop.f32.mrf.mxu0
        %v4233 = vadd.f32 0.0, %v4232
        %v4234 = vpop.f32.mrf.mxu0
        %4235 = vmatprep.mubr.bf16.mxu0 %v3584
        %4236 = vmatmul.mubr.bf16.gmra.mxu0 %v3431
        %v4237 = vpop.f32.mrf.mxu0
        %v4238 = vadd.f32 0.0, %v4237
        %v4239 = vpop.f32.mrf.mxu0
        %v4240 = vpop.f32.mrf.mxu0
        %v4241 = vadd.f32 0.0, %v4240
        %v4242 = vpop.f32.mrf.mxu0
        %4243 = vmatprep.mubr.bf16.mxu0 %v3587
        %4244 = vmatmul.mubr.bf16.gmra.mxu0 %v3435
        %v4245 = vpop.f32.mrf.mxu0
        %v4246 = vadd.f32 0.0, %v4245
        %v4247 = vpop.f32.mrf.mxu0
        %v4248 = vpop.f32.mrf.mxu0
        %v4249 = vadd.f32 0.0, %v4248
        %v4250 = vpop.f32.mrf.mxu0
        %4251 = vmatprep.mubr.bf16.mxu0 %v3590
        %4252 = vmatmul.mubr.bf16.gmra.mxu0 %v3439
        %v4253 = vpop.f32.mrf.mxu0
        %v4254 = vadd.f32 0.0, %v4253
        %v4255 = vpop.f32.mrf.mxu0
        %v4256 = vpop.f32.mrf.mxu0
        %v4257 = vadd.f32 0.0, %v4256
        %v4258 = vpop.f32.mrf.mxu0
        %4259 = vmatprep.mubr.bf16.mxu0 %v3593
        %4260 = vmatmul.mubr.bf16.gmra.mxu0 %v3443
        %v4261 = vpop.f32.mrf.mxu0
        %v4262 = vadd.f32 0.0, %v4261
        %v4263 = vpop.f32.mrf.mxu0
        %v4264 = vpop.f32.mrf.mxu0
        %v4265 = vadd.f32 0.0, %v4264
        %v4266 = vpop.f32.mrf.mxu0
        %4267 = vmatprep.mubr.bf16.mxu0 %v3596
        %4268 = vmatmul.mubr.bf16.gmra.mxu0 %v3447
        %v4269 = vpop.f32.mrf.mxu0
        %v4270 = vadd.f32 0.0, %v4269
        %v4271 = vpop.f32.mrf.mxu0
        %v4272 = vpop.f32.mrf.mxu0
        %v4273 = vadd.f32 0.0, %v4272
        %v4274 = vpop.f32.mrf.mxu0
        %4275 = vmatprep.mubr.bf16.mxu0 %v3599
        %4276 = vmatmul.mubr.bf16.gmra.mxu0 %v3451
        %v4277 = vpop.f32.mrf.mxu0
        %v4278 = vadd.f32 0.0, %v4277
        %v4279 = vpop.f32.mrf.mxu0
        %v4280 = vpop.f32.mrf.mxu0
        %v4281 = vadd.f32 0.0, %v4280
        %v4282 = vpop.f32.mrf.mxu0
        %4283 = vmatprep.mubr.bf16.mxu0 %v3602
        %4284 = vmatmul.mubr.bf16.gmra.mxu0 %v3455
        %v4285 = vpop.f32.mrf.mxu0
        %v4286 = vadd.f32 0.0, %v4285
        %v4287 = vpop.f32.mrf.mxu0
        %v4288 = vpop.f32.mrf.mxu0
        %v4289 = vadd.f32 0.0, %v4288
        %v4290 = vpop.f32.mrf.mxu0
        %4291 = vmatprep.mubr.bf16.mxu0 %v3605
        %4292 = vmatmul.mubr.bf16.gmra.mxu0 %v3459
        %v4293 = vpop.f32.mrf.mxu0
        %v4294 = vadd.f32 0.0, %v4293
        %v4295 = vpop.f32.mrf.mxu0
        %v4296 = vpop.f32.mrf.mxu0
        %v4297 = vadd.f32 0.0, %v4296
        %v4298 = vpop.f32.mrf.mxu0
        %4299 = vmatprep.mubr.bf16.mxu0 %v3608
        %4300 = vmatmul.mubr.bf16.gmra.mxu0 %v3463
        %v4301 = vpop.f32.mrf.mxu0
        %v4302 = vadd.f32 0.0, %v4301
        %v4303 = vpop.f32.mrf.mxu0
        %v4304 = vpop.f32.mrf.mxu0
        %v4305 = vadd.f32 0.0, %v4304
        %v4306 = vpop.f32.mrf.mxu0
        %4307 = vmatprep.mubr.bf16.mxu0 %v3611
        %4308 = vmatmul.mubr.bf16.gmra.mxu0 %v3467
        %v4309 = vpop.f32.mrf.mxu0
        %v4310 = vadd.f32 0.0, %v4309
        %v4311 = vpop.f32.mrf.mxu0
        %v4312 = vpop.f32.mrf.mxu0
        %v4313 = vadd.f32 0.0, %v4312
        %v4314 = vpop.f32.mrf.mxu0
        %4315 = vdwg.mxu0
        %v4316 = vadd.f32 %v4029, %v4198
        %v4317 = vadd.f32 %v4030, %v4201
        %v4318 = vadd.f32 %v4031, %v4206
        %v4319 = vadd.f32 %v4032, %v4209
        %v4320 = vadd.f32 %v4033, %v4214
        %v4321 = vadd.f32 %v4034, %v4217
        %v4322 = vadd.f32 %v4035, %v4222
        %v4323 = vadd.f32 %v4036, %v4225
        %v4324 = vadd.f32 %v4037, %v4230
        %v4325 = vadd.f32 %v4038, %v4233
        %v4326 = vadd.f32 %v4039, %v4238
        %v4327 = vadd.f32 %v4040, %v4241
        %v4328 = vadd.f32 %v4041, %v4246
        %v4329 = vadd.f32 %v4042, %v4249
        %v4330 = vadd.f32 %v4043, %v4254
        %v4331 = vadd.f32 %v4044, %v4257
        %v4332 = vadd.f32 %v4045, %v4262
        %v4333 = vadd.f32 %v4046, %v4265
        %v4334 = vadd.f32 %v4047, %v4270
        %v4335 = vadd.f32 %v4048, %v4273
        %v4336 = vadd.f32 %v4049, %v4278
        %v4337 = vadd.f32 %v4050, %v4281
        %v4338 = vadd.f32 %v4051, %v4286
        %v4339 = vadd.f32 %v4052, %v4289
        %v4340 = vadd.f32 %v4053, %v4294
        %v4341 = vadd.f32 %v4054, %v4297
        %v4342 = vadd.f32 %v4055, %v4302
        %v4343 = vadd.f32 %v4056, %v4305
        %v4344 = vadd.f32 %v4057, %v4310
        %v4345 = vadd.f32 %v4058, %v4313
        %v4346 = vadd.f32 %v4059, 0.0
        %v4347 = vadd.f32 %v4060, 0.0
        %v4349 = vlaneseq
        %v4350 = vshrl.u32 %v4349, 7
        %v4351 = vsub.s32 0, %v4350
        %v4352 = vrot.slane %v3132, %v4351
        %v4354 = vadd.f32 %v4316, %v4352
        %v4355 = vadd.f32 %v4317, %v4352
        %v4356 = vadd.f32 %v4318, %v4352
        %v4357 = vadd.f32 %v4319, %v4352
        %v4358 = vadd.f32 %v4320, %v4352
        %v4359 = vadd.f32 %v4321, %v4352
        %v4360 = vadd.f32 %v4322, %v4352
        %v4361 = vadd.f32 %v4323, %v4352
        %v4362 = vadd.f32 %v4324, %v4352
        %v4363 = vadd.f32 %v4325, %v4352
        %v4364 = vadd.f32 %v4326, %v4352
        %v4365 = vadd.f32 %v4327, %v4352
        %v4366 = vadd.f32 %v4328, %v4352
        %v4367 = vadd.f32 %v4329, %v4352
        %v4368 = vadd.f32 %v4330, %v4352
        %v4369 = vadd.f32 %v4331, %v4352
        %v4370 = vadd.f32 %v4332, %v4352
        %v4371 = vadd.f32 %v4333, %v4352
        %v4372 = vadd.f32 %v4334, %v4352
        %v4373 = vadd.f32 %v4335, %v4352
        %v4374 = vadd.f32 %v4336, %v4352
        %v4375 = vadd.f32 %v4337, %v4352
        %v4376 = vadd.f32 %v4338, %v4352
        %v4377 = vadd.f32 %v4339, %v4352
        %v4378 = vadd.f32 %v4340, %v4352
        %v4379 = vadd.f32 %v4341, %v4352
        %v4380 = vadd.f32 %v4342, %v4352
        %v4381 = vadd.f32 %v4343, %v4352
        %v4382 = vadd.f32 %v4344, %v4352
        %v4383 = vadd.f32 %v4345, %v4352
        %v4384 = vadd.f32 %v4346, %v4352
        %v4385 = vadd.f32 %v4347, %v4352
        %v4386 = vadd.f32 %v4354, %v487
        %v4387 = vadd.f32 %v4355, %v488
        %v4388 = vadd.f32 %v4356, %v489
        %v4389 = vadd.f32 %v4357, %v490
        %v4390 = vadd.f32 %v4358, %v491
        %v4391 = vadd.f32 %v4359, %v492
        %v4392 = vadd.f32 %v4360, %v493
        %v4393 = vadd.f32 %v4361, %v494
        %v4394 = vadd.f32 %v4362, %v495
        %v4395 = vadd.f32 %v4363, %v496
        %v4396 = vadd.f32 %v4364, %v497
        %v4397 = vadd.f32 %v4365, %v498
        %v4398 = vadd.f32 %v4366, %v499
        %v4399 = vadd.f32 %v4367, %v500
        %v4400 = vadd.f32 %v4368, %v501
        %v4401 = vadd.f32 %v4369, %v502
        %v4402 = vadd.f32 %v4370, %v503
        %v4403 = vadd.f32 %v4371, %v504
        %v4404 = vadd.f32 %v4372, %v505
        %v4405 = vadd.f32 %v4373, %v506
        %v4406 = vadd.f32 %v4374, %v507
        %v4407 = vadd.f32 %v4375, %v508
        %v4408 = vadd.f32 %v4376, %v509
        %v4409 = vadd.f32 %v4377, %v510
        %v4410 = vadd.f32 %v4378, %v511
        %v4411 = vadd.f32 %v4379, %v512
        %v4412 = vadd.f32 %v4380, %v513
        %v4413 = vadd.f32 %v4381, %v514
        %v4414 = vadd.f32 %v4382, %v515
        %v4415 = vadd.f32 %v4383, %v516
        %v4416 = vadd.f32 %v4384, %v517
        %v4417 = vadd.f32 %v4385, %v518
        %4418 = vst.msk [vmem:[%s405] sm:$0xff] %vm830, %v4386
        %4419 = vst.msk [vmem:[%s405 + $0x8] sm:$0xff] %vm830, %v4387
        %4420 = vst.msk [vmem:[%s405 + $0x10] sm:$0xff] %vm830, %v4388
        %4421 = vst.msk [vmem:[%s405 + $0x18] sm:$0xff] %vm830, %v4389
        %4422 = vst.msk [vmem:[%s405 + $0x20] sm:$0xff] %vm830, %v4390
        %4423 = vst.msk [vmem:[%s405 + $0x28] sm:$0xff] %vm830, %v4391
        %4424 = vst.msk [vmem:[%s405 + $0x30] sm:$0xff] %vm830, %v4392
        %4425 = vst.msk [vmem:[%s405 + $0x38] sm:$0xff] %vm830, %v4393
        %4426 = vst.msk [vmem:[%s405 + $0x40] sm:$0xff] %vm830, %v4394
        %4427 = vst.msk [vmem:[%s405 + $0x48] sm:$0xff] %vm830, %v4395
        %4428 = vst.msk [vmem:[%s405 + $0x50] sm:$0xff] %vm830, %v4396
        %4429 = vst.msk [vmem:[%s405 + $0x58] sm:$0xff] %vm830, %v4397
        %4430 = vst.msk [vmem:[%s405 + $0x60] sm:$0xff] %vm830, %v4398
        %4431 = vst.msk [vmem:[%s405 + $0x68] sm:$0xff] %vm830, %v4399
        %4432 = vst.msk [vmem:[%s405 + $0x70] sm:$0xff] %vm830, %v4400
        %4433 = vst.msk [vmem:[%s405 + $0x78] sm:$0xff] %vm830, %v4401
        %4434 = vst.msk [vmem:[%s405 + $0x80] sm:$0xff] %vm830, %v4402
        %4435 = vst.msk [vmem:[%s405 + $0x88] sm:$0xff] %vm830, %v4403
        %4436 = vst.msk [vmem:[%s405 + $0x90] sm:$0xff] %vm830, %v4404
        %4437 = vst.msk [vmem:[%s405 + $0x98] sm:$0xff] %vm830, %v4405
        %4438 = vst.msk [vmem:[%s405 + $0xa0] sm:$0xff] %vm830, %v4406
        %4439 = vst.msk [vmem:[%s405 + $0xa8] sm:$0xff] %vm830, %v4407
        %4440 = vst.msk [vmem:[%s405 + $0xb0] sm:$0xff] %vm830, %v4408
        %4441 = vst.msk [vmem:[%s405 + $0xb8] sm:$0xff] %vm830, %v4409
        %4442 = vst.msk [vmem:[%s405 + $0xc0] sm:$0xff] %vm830, %v4410
        %4443 = vst.msk [vmem:[%s405 + $0xc8] sm:$0xff] %vm830, %v4411
        %4444 = vst.msk [vmem:[%s405 + $0xd0] sm:$0xff] %vm830, %v4412
        %4445 = vst.msk [vmem:[%s405 + $0xd8] sm:$0xff] %vm830, %v4413
        %4446 = vst.msk [vmem:[%s405 + $0xe0] sm:$0xff] %vm830, %v4414
        %4447 = vst.msk [vmem:[%s405 + $0xe8] sm:$0xff] %vm830, %v4415
        %4448 = vst.msk [vmem:[%s405 + $0xf0] sm:$0xff] %vm830, %v4416
        %4449 = vst.msk [vmem:[%s405 + $0xf8] sm:$0xff] %vm830, %v4417
        %v4450 = vpack.c.bf16 %v4387, %v4386
        %v4451 = vpack.c.bf16 %v4389, %v4388
        %v4452 = vpack.c.bf16 %v4391, %v4390
        %v4453 = vpack.c.bf16 %v4393, %v4392
        %v4454 = vpack.c.bf16 %v4395, %v4394
        %v4455 = vpack.c.bf16 %v4397, %v4396
        %v4456 = vpack.c.bf16 %v4399, %v4398
        %v4457 = vpack.c.bf16 %v4401, %v4400
        %v4458 = vpack.c.bf16 %v4403, %v4402
        %v4459 = vpack.c.bf16 %v4405, %v4404
        %v4460 = vpack.c.bf16 %v4407, %v4406
        %v4461 = vpack.c.bf16 %v4409, %v4408
        %v4462 = vpack.c.bf16 %v4411, %v4410
        %v4463 = vpack.c.bf16 %v4413, %v4412
        %v4464 = vpack.c.bf16 %v4415, %v4414
        %v4465 = vpack.c.bf16 %v4417, %v4416
        %v4467 = vshrl.u32 %v4450, 16
        %v4469 = vshll.u32 %v4450, 16
        %v4471 = vrot.slane %v4469, 1
        %v4472 = vor.u32 %v4467, %v4471
        %v4474 = vshrl.u32 %v4451, 16
        %v4476 = vshll.u32 %v4451, 16
        %v4478 = vrot.slane %v4476, 1
        %v4479 = vor.u32 %v4474, %v4478
        %v4481 = vshrl.u32 %v4452, 16
        %v4483 = vshll.u32 %v4452, 16
        %v4485 = vrot.slane %v4483, 1
        %v4486 = vor.u32 %v4481, %v4485
        %v4488 = vshrl.u32 %v4453, 16
        %v4490 = vshll.u32 %v4453, 16
        %v4492 = vrot.slane %v4490, 1
        %v4493 = vor.u32 %v4488, %v4492
        %v4495 = vshrl.u32 %v4454, 16
        %v4497 = vshll.u32 %v4454, 16
        %v4499 = vrot.slane %v4497, 1
        %v4500 = vor.u32 %v4495, %v4499
        %v4502 = vshrl.u32 %v4455, 16
        %v4504 = vshll.u32 %v4455, 16
        %v4506 = vrot.slane %v4504, 1
        %v4507 = vor.u32 %v4502, %v4506
        %v4509 = vshrl.u32 %v4456, 16
        %v4511 = vshll.u32 %v4456, 16
        %v4513 = vrot.slane %v4511, 1
        %v4514 = vor.u32 %v4509, %v4513
        %v4516 = vshrl.u32 %v4457, 16
        %v4518 = vshll.u32 %v4457, 16
        %v4520 = vrot.slane %v4518, 1
        %v4521 = vor.u32 %v4516, %v4520
        %v4523 = vshrl.u32 %v4458, 16
        %v4525 = vshll.u32 %v4458, 16
        %v4527 = vrot.slane %v4525, 1
        %v4528 = vor.u32 %v4523, %v4527
        %v4530 = vshrl.u32 %v4459, 16
        %v4532 = vshll.u32 %v4459, 16
        %v4534 = vrot.slane %v4532, 1
        %v4535 = vor.u32 %v4530, %v4534
        %v4537 = vshrl.u32 %v4460, 16
        %v4539 = vshll.u32 %v4460, 16
        %v4541 = vrot.slane %v4539, 1
        %v4542 = vor.u32 %v4537, %v4541
        %v4544 = vshrl.u32 %v4461, 16
        %v4546 = vshll.u32 %v4461, 16
        %v4548 = vrot.slane %v4546, 1
        %v4549 = vor.u32 %v4544, %v4548
        %v4551 = vshrl.u32 %v4462, 16
        %v4553 = vshll.u32 %v4462, 16
        %v4555 = vrot.slane %v4553, 1
        %v4556 = vor.u32 %v4551, %v4555
        %v4558 = vshrl.u32 %v4463, 16
        %v4560 = vshll.u32 %v4463, 16
        %v4562 = vrot.slane %v4560, 1
        %v4563 = vor.u32 %v4558, %v4562
        %v4565 = vshrl.u32 %v4464, 16
        %v4567 = vshll.u32 %v4464, 16
        %v4569 = vrot.slane %v4567, 1
        %v4570 = vor.u32 %v4565, %v4569
        %v4572 = vshrl.u32 %v4465, 16
        %v4574 = vshll.u32 %v4465, 16
        %v4576 = vrot.slane %v4574, 1
        %v4577 = vor.u32 %v4572, %v4576
        %v4594 = vsel %vm765, %v4472, 0
        %v4595 = vsel %vm765, %v4479, 0
        %v4596 = vsel %vm765, %v4486, 0
        %v4597 = vsel %vm765, %v4493, 0
        %v4598 = vsel %vm765, %v4500, 0
        %v4599 = vsel %vm765, %v4507, 0
        %v4600 = vsel %vm765, %v4514, 0
        %v4601 = vsel %vm765, %v4521, 0
        %v4602 = vsel %vm765, %v4528, 0
        %v4603 = vsel %vm765, %v4535, 0
        %v4604 = vsel %vm765, %v4542, 0
        %v4605 = vsel %vm765, %v4549, 0
        %v4606 = vsel %vm765, %v4556, 0
        %v4607 = vsel %vm765, %v4563, 0
        %v4608 = vsel %vm765, %v4570, 0
        %v4609 = vsel %vm765, %v4577, 0
        %v4610 = vld [vmem:[%s8] sm:$0x1]
        %4627 = vrot.lane.b32.xlu0 %v4594, 64
        %v4628 = vpop.permute.xlu0 %4627
        %4629 = vrot.lane.b32.xlu0 %v4595, 64
        %v4630 = vpop.permute.xlu0 %4629
        %4631 = vrot.lane.b32.xlu0 %v4596, 64
        %v4632 = vpop.permute.xlu0 %4631
        %4633 = vrot.lane.b32.xlu0 %v4597, 64
        %v4634 = vpop.permute.xlu0 %4633
        %4635 = vrot.lane.b32.xlu0 %v4598, 64
        %v4636 = vpop.permute.xlu0 %4635
        %4637 = vrot.lane.b32.xlu0 %v4599, 64
        %v4638 = vpop.permute.xlu0 %4637
        %4639 = vrot.lane.b32.xlu0 %v4600, 64
        %v4640 = vpop.permute.xlu0 %4639
        %4641 = vrot.lane.b32.xlu0 %v4601, 64
        %v4642 = vpop.permute.xlu0 %4641
        %4643 = vrot.lane.b32.xlu0 %v4602, 64
        %v4644 = vpop.permute.xlu0 %4643
        %4645 = vrot.lane.b32.xlu0 %v4603, 64
        %v4646 = vpop.permute.xlu0 %4645
        %4647 = vrot.lane.b32.xlu0 %v4604, 64
        %v4648 = vpop.permute.xlu0 %4647
        %4649 = vrot.lane.b32.xlu0 %v4605, 64
        %v4650 = vpop.permute.xlu0 %4649
        %4651 = vrot.lane.b32.xlu0 %v4606, 64
        %v4652 = vpop.permute.xlu0 %4651
        %4653 = vrot.lane.b32.xlu0 %v4607, 64
        %v4654 = vpop.permute.xlu0 %4653
        %4655 = vrot.lane.b32.xlu0 %v4608, 64
        %v4656 = vpop.permute.xlu0 %4655
        %4657 = vrot.lane.b32.xlu0 %v4609, 64
        %v4658 = vpop.permute.xlu0 %4657
        %v4660 = vsel %vm830, %v4450, %v4628
        %v4663 = vsel %vm830, %v4451, %v4630
        %v4666 = vsel %vm830, %v4452, %v4632
        %v4669 = vsel %vm830, %v4453, %v4634
        %v4672 = vsel %vm830, %v4454, %v4636
        %v4675 = vsel %vm830, %v4455, %v4638
        %v4678 = vsel %vm830, %v4456, %v4640
        %v4681 = vsel %vm830, %v4457, %v4642
        %v4684 = vsel %vm830, %v4458, %v4644
        %v4687 = vsel %vm830, %v4459, %v4646
        %v4690 = vsel %vm830, %v4460, %v4648
        %v4693 = vsel %vm830, %v4461, %v4650
        %v4696 = vsel %vm830, %v4462, %v4652
        %v4699 = vsel %vm830, %v4463, %v4654
        %v4702 = vsel %vm830, %v4464, %v4656
        %v4705 = vsel %vm830, %v4465, %v4658
        %v4707 = vld [vmem:[#allocation2] sm:$0xf]
        %v4708 = vld [vmem:[#allocation2 + $0x4] sm:$0xf]
        %v4709 = vld [vmem:[#allocation2 + $0x8] sm:$0xf]
        %v4710 = vld [vmem:[#allocation2 + $0xc] sm:$0xf]
        %v4711 = vld [vmem:[#allocation2 + $0x10] sm:$0xf]
        %v4712 = vld [vmem:[#allocation2 + $0x14] sm:$0xf]
        %v4713 = vld [vmem:[#allocation2 + $0x18] sm:$0xf]
        %v4714 = vld [vmem:[#allocation2 + $0x1c] sm:$0xf]
        %v4715 = vld [vmem:[#allocation2 + $0x20] sm:$0xf]
        %v4716 = vld [vmem:[#allocation2 + $0x24] sm:$0xf]
        %v4717 = vld [vmem:[#allocation2 + $0x28] sm:$0xf]
        %v4718 = vld [vmem:[#allocation2 + $0x2c] sm:$0xf]
        %v4719 = vld [vmem:[#allocation2 + $0x30] sm:$0xf]
        %v4720 = vld [vmem:[#allocation2 + $0x34] sm:$0xf]
        %v4721 = vld [vmem:[#allocation2 + $0x38] sm:$0xf]
        %v4722 = vld [vmem:[#allocation2 + $0x3c] sm:$0xf]
        %v4739 = vunpack.c.l.b16 %v4707
        %v4740 = vunpack.c.l.b16 %v4708
        %v4741 = vunpack.c.l.b16 %v4709
        %v4742 = vunpack.c.l.b16 %v4710
        %v4743 = vunpack.c.l.b16 %v4711
        %v4744 = vunpack.c.l.b16 %v4712
        %v4745 = vunpack.c.l.b16 %v4713
        %v4746 = vunpack.c.l.b16 %v4714
        %v4747 = vunpack.c.l.b16 %v4715
        %v4748 = vunpack.c.l.b16 %v4716
        %v4749 = vunpack.c.l.b16 %v4717
        %v4750 = vunpack.c.l.b16 %v4718
        %v4751 = vunpack.c.l.b16 %v4719
        %v4752 = vunpack.c.l.b16 %v4720
        %v4753 = vunpack.c.l.b16 %v4721
        %v4754 = vunpack.c.l.b16 %v4722
        %v4755 = vpack.c.b16 %v4740, %v4739
        %v4756 = vpack.c.b16 %v4742, %v4741
        %v4757 = vpack.c.b16 %v4744, %v4743
        %v4758 = vpack.c.b16 %v4746, %v4745
        %v4759 = vpack.c.b16 %v4748, %v4747
        %v4760 = vpack.c.b16 %v4750, %v4749
        %v4761 = vpack.c.b16 %v4752, %v4751
        %v4762 = vpack.c.b16 %v4754, %v4753
        %4771 = vmatprep.subr.bf16.mxu0 0
        %4772 = vmatpush1.bf16.msra.mxu0 %v4762
        %4773 = vmatprep.subr.bf16.mxu0 0
        %4774 = vmatpush1.bf16.msra.mxu0 %v4761
        %4775 = vmatprep.subr.bf16.mxu0 0
        %4776 = vmatpush1.bf16.msra.mxu0 %v4760
        %4777 = vmatprep.subr.bf16.mxu0 0
        %4778 = vmatpush1.bf16.msra.mxu0 %v4759
        %4779 = vmatprep.subr.bf16.mxu0 0
        %4780 = vmatpush1.bf16.msra.mxu0 %v4758
        %4781 = vmatprep.subr.bf16.mxu0 0
        %4782 = vmatpush1.bf16.msra.mxu0 %v4757
        %4783 = vmatprep.subr.bf16.mxu0 0
        %4784 = vmatpush1.bf16.msra.mxu0 %v4756
        %4785 = vmatprep.subr.bf16.mxu0 0
        %4786 = vmatpush1.bf16.msra.mxu0 %v4755
        %4787 = vmatprep.subr.bf16.mxu0 0
        %4788 = vmatpush2.bf16.msra.mxu0 0
        %4789 = vmatprep.subr.bf16.mxu0 0
        %4790 = vmatpush2.bf16.msra.mxu0 0
        %4791 = vmatprep.subr.bf16.mxu0 0
        %4792 = vmatpush2.bf16.msra.mxu0 0
        %4793 = vmatprep.subr.bf16.mxu0 0
        %4794 = vmatpush2.bf16.msra.mxu0 0
        %4795 = vmatprep.subr.bf16.mxu0 0
        %4796 = vmatpush2.bf16.msra.mxu0 0
        %4797 = vmatprep.subr.bf16.mxu0 0
        %4798 = vmatpush2.bf16.msra.mxu0 0
        %4799 = vmatprep.subr.bf16.mxu0 0
        %4800 = vmatpush2.bf16.msra.mxu0 0
        %4801 = vmatprep.subr.bf16.mxu0 0
        %4802 = vmatpush2.bf16.msra.mxu0 0
        %4803 = vmatprep.mubr.bf16.mxu0 0
        %4804 = vmatmul.mubr.bf16.gmra.mxu0 %v4660
        %v4805 = vpop.f32.mrf.mxu0
        %v4806 = vadd.f32 0.0, %v4805
        %v4807 = vpop.f32.mrf.mxu0
        %v4808 = vpop.f32.mrf.mxu0
        %v4809 = vadd.f32 0.0, %v4808
        %v4810 = vpop.f32.mrf.mxu0
        %4811 = vmatprep.mubr.bf16.mxu0 0
        %4812 = vmatmul.mubr.bf16.gmra.mxu0 %v4663
        %v4813 = vpop.f32.mrf.mxu0
        %v4814 = vadd.f32 0.0, %v4813
        %v4815 = vpop.f32.mrf.mxu0
        %v4816 = vpop.f32.mrf.mxu0
        %v4817 = vadd.f32 0.0, %v4816
        %v4818 = vpop.f32.mrf.mxu0
        %4819 = vmatprep.mubr.bf16.mxu0 0
        %4820 = vmatmul.mubr.bf16.gmra.mxu0 %v4666
        %v4821 = vpop.f32.mrf.mxu0
        %v4822 = vadd.f32 0.0, %v4821
        %v4823 = vpop.f32.mrf.mxu0
        %v4824 = vpop.f32.mrf.mxu0
        %v4825 = vadd.f32 0.0, %v4824
        %v4826 = vpop.f32.mrf.mxu0
        %4827 = vmatprep.mubr.bf16.mxu0 0
        %4828 = vmatmul.mubr.bf16.gmra.mxu0 %v4669
        %v4829 = vpop.f32.mrf.mxu0
        %v4830 = vadd.f32 0.0, %v4829
        %v4831 = vpop.f32.mrf.mxu0
        %v4832 = vpop.f32.mrf.mxu0
        %v4833 = vadd.f32 0.0, %v4832
        %v4834 = vpop.f32.mrf.mxu0
        %4835 = vmatprep.mubr.bf16.mxu0 0
        %4836 = vmatmul.mubr.bf16.gmra.mxu0 %v4672
        %v4837 = vpop.f32.mrf.mxu0
        %v4838 = vadd.f32 0.0, %v4837
        %v4839 = vpop.f32.mrf.mxu0
        %v4840 = vpop.f32.mrf.mxu0
        %v4841 = vadd.f32 0.0, %v4840
        %v4842 = vpop.f32.mrf.mxu0
        %4843 = vmatprep.mubr.bf16.mxu0 0
        %4844 = vmatmul.mubr.bf16.gmra.mxu0 %v4675
        %v4845 = vpop.f32.mrf.mxu0
        %v4846 = vadd.f32 0.0, %v4845
        %v4847 = vpop.f32.mrf.mxu0
        %v4848 = vpop.f32.mrf.mxu0
        %v4849 = vadd.f32 0.0, %v4848
        %v4850 = vpop.f32.mrf.mxu0
        %4851 = vmatprep.mubr.bf16.mxu0 0
        %4852 = vmatmul.mubr.bf16.gmra.mxu0 %v4678
        %v4853 = vpop.f32.mrf.mxu0
        %v4854 = vadd.f32 0.0, %v4853
        %v4855 = vpop.f32.mrf.mxu0
        %v4856 = vpop.f32.mrf.mxu0
        %v4857 = vadd.f32 0.0, %v4856
        %v4858 = vpop.f32.mrf.mxu0
        %4859 = vmatprep.mubr.bf16.mxu0 0
        %4860 = vmatmul.mubr.bf16.gmra.mxu0 %v4681
        %v4861 = vpop.f32.mrf.mxu0
        %v4862 = vadd.f32 0.0, %v4861
        %v4863 = vpop.f32.mrf.mxu0
        %v4864 = vpop.f32.mrf.mxu0
        %v4865 = vadd.f32 0.0, %v4864
        %v4866 = vpop.f32.mrf.mxu0
        %4867 = vmatprep.mubr.bf16.mxu0 0
        %4868 = vmatmul.mubr.bf16.gmra.mxu0 %v4684
        %v4869 = vpop.f32.mrf.mxu0
        %v4870 = vadd.f32 0.0, %v4869
        %v4871 = vpop.f32.mrf.mxu0
        %v4872 = vpop.f32.mrf.mxu0
        %v4873 = vadd.f32 0.0, %v4872
        %v4874 = vpop.f32.mrf.mxu0
        %4875 = vmatprep.mubr.bf16.mxu0 0
        %4876 = vmatmul.mubr.bf16.gmra.mxu0 %v4687
        %v4877 = vpop.f32.mrf.mxu0
        %v4878 = vadd.f32 0.0, %v4877
        %v4879 = vpop.f32.mrf.mxu0
        %v4880 = vpop.f32.mrf.mxu0
        %v4881 = vadd.f32 0.0, %v4880
        %v4882 = vpop.f32.mrf.mxu0
        %4883 = vmatprep.mubr.bf16.mxu0 0
        %4884 = vmatmul.mubr.bf16.gmra.mxu0 %v4690
        %v4885 = vpop.f32.mrf.mxu0
        %v4886 = vadd.f32 0.0, %v4885
        %v4887 = vpop.f32.mrf.mxu0
        %v4888 = vpop.f32.mrf.mxu0
        %v4889 = vadd.f32 0.0, %v4888
        %v4890 = vpop.f32.mrf.mxu0
        %4891 = vmatprep.mubr.bf16.mxu0 0
        %4892 = vmatmul.mubr.bf16.gmra.mxu0 %v4693
        %v4893 = vpop.f32.mrf.mxu0
        %v4894 = vadd.f32 0.0, %v4893
        %v4895 = vpop.f32.mrf.mxu0
        %v4896 = vpop.f32.mrf.mxu0
        %v4897 = vadd.f32 0.0, %v4896
        %v4898 = vpop.f32.mrf.mxu0
        %4899 = vmatprep.mubr.bf16.mxu0 0
        %4900 = vmatmul.mubr.bf16.gmra.mxu0 %v4696
        %v4901 = vpop.f32.mrf.mxu0
        %v4902 = vadd.f32 0.0, %v4901
        %v4903 = vpop.f32.mrf.mxu0
        %v4904 = vpop.f32.mrf.mxu0
        %v4905 = vadd.f32 0.0, %v4904
        %v4906 = vpop.f32.mrf.mxu0
        %4907 = vmatprep.mubr.bf16.mxu0 0
        %4908 = vmatmul.mubr.bf16.gmra.mxu0 %v4699
        %v4909 = vpop.f32.mrf.mxu0
        %v4910 = vadd.f32 0.0, %v4909
        %v4911 = vpop.f32.mrf.mxu0
        %v4912 = vpop.f32.mrf.mxu0
        %v4913 = vadd.f32 0.0, %v4912
        %v4914 = vpop.f32.mrf.mxu0
        %4915 = vmatprep.mubr.bf16.mxu0 0
        %4916 = vmatmul.mubr.bf16.gmra.mxu0 %v4702
        %v4917 = vpop.f32.mrf.mxu0
        %v4918 = vadd.f32 0.0, %v4917
        %v4919 = vpop.f32.mrf.mxu0
        %v4920 = vpop.f32.mrf.mxu0
        %v4921 = vadd.f32 0.0, %v4920
        %v4922 = vpop.f32.mrf.mxu0
        %4923 = vmatprep.mubr.bf16.mxu0 0
        %4924 = vmatmul.mubr.bf16.gmra.mxu0 %v4705
        %v4925 = vpop.f32.mrf.mxu0
        %v4926 = vadd.f32 0.0, %v4925
        %v4927 = vpop.f32.mrf.mxu0
        %v4928 = vpop.f32.mrf.mxu0
        %v4929 = vadd.f32 0.0, %v4928
        %v4930 = vpop.f32.mrf.mxu0
        %4931 = vdwg.mxu0
        %v4933 = vlaneseq
        %v4934 = vshrl.u32 %v4933, 7
        %v4935 = vsub.s32 0, %v4934
        %v4936 = vrot.slane %v4610, %v4935
        %v4938 = vadd.f32 %v4806, %v4936
        %v4939 = vadd.f32 %v4809, %v4936
        %v4940 = vadd.f32 %v4814, %v4936
        %v4941 = vadd.f32 %v4817, %v4936
        %v4942 = vadd.f32 %v4822, %v4936
        %v4943 = vadd.f32 %v4825, %v4936
        %v4944 = vadd.f32 %v4830, %v4936
        %v4945 = vadd.f32 %v4833, %v4936
        %v4946 = vadd.f32 %v4838, %v4936
        %v4947 = vadd.f32 %v4841, %v4936
        %v4948 = vadd.f32 %v4846, %v4936
        %v4949 = vadd.f32 %v4849, %v4936
        %v4950 = vadd.f32 %v4854, %v4936
        %v4951 = vadd.f32 %v4857, %v4936
        %v4952 = vadd.f32 %v4862, %v4936
        %v4953 = vadd.f32 %v4865, %v4936
        %v4954 = vadd.f32 %v4870, %v4936
        %v4955 = vadd.f32 %v4873, %v4936
        %v4956 = vadd.f32 %v4878, %v4936
        %v4957 = vadd.f32 %v4881, %v4936
        %v4958 = vadd.f32 %v4886, %v4936
        %v4959 = vadd.f32 %v4889, %v4936
        %v4960 = vadd.f32 %v4894, %v4936
        %v4961 = vadd.f32 %v4897, %v4936
        %v4962 = vadd.f32 %v4902, %v4936
        %v4963 = vadd.f32 %v4905, %v4936
        %v4964 = vadd.f32 %v4910, %v4936
        %v4965 = vadd.f32 %v4913, %v4936
        %v4966 = vadd.f32 %v4918, %v4936
        %v4967 = vadd.f32 %v4921, %v4936
        %v4968 = vadd.f32 %v4926, %v4936
        %v4969 = vadd.f32 %v4929, %v4936
        %4971 = vrot.lane.b32.xlu0 0, 64
        %v4972 = vpop.permute.xlu0 %4971
        %v4975 = vsel %vm830, 0, %v4972
        %v4977 = vld [vmem:[#allocation5] sm:$0xf]
        %v4978 = vld [vmem:[#allocation5 + $0x4] sm:$0xf]
        %v4979 = vld [vmem:[#allocation5 + $0x8] sm:$0xf]
        %v4980 = vld [vmem:[#allocation5 + $0xc] sm:$0xf]
        %v4981 = vld [vmem:[#allocation5 + $0x10] sm:$0xf]
        %v4982 = vld [vmem:[#allocation5 + $0x14] sm:$0xf]
        %v4983 = vld [vmem:[#allocation5 + $0x18] sm:$0xf]
        %v4984 = vld [vmem:[#allocation5 + $0x1c] sm:$0xf]
        %v4985 = vld [vmem:[#allocation5 + $0x20] sm:$0xf]
        %v4986 = vld [vmem:[#allocation5 + $0x24] sm:$0xf]
        %v4987 = vld [vmem:[#allocation5 + $0x28] sm:$0xf]
        %v4988 = vld [vmem:[#allocation5 + $0x2c] sm:$0xf]
        %v4989 = vld [vmem:[#allocation5 + $0x30] sm:$0xf]
        %v4990 = vld [vmem:[#allocation5 + $0x34] sm:$0xf]
        %v4991 = vld [vmem:[#allocation5 + $0x38] sm:$0xf]
        %v4992 = vld [vmem:[#allocation5 + $0x3c] sm:$0xf]
        %v4993 = vld [vmem:[#allocation5 + $0x40] sm:$0xf]
        %v4994 = vld [vmem:[#allocation5 + $0x44] sm:$0xf]
        %v4995 = vld [vmem:[#allocation5 + $0x48] sm:$0xf]
        %v4996 = vld [vmem:[#allocation5 + $0x4c] sm:$0xf]
        %v4997 = vld [vmem:[#allocation5 + $0x50] sm:$0xf]
        %v4998 = vld [vmem:[#allocation5 + $0x54] sm:$0xf]
        %v4999 = vld [vmem:[#allocation5 + $0x58] sm:$0xf]
        %v5000 = vld [vmem:[#allocation5 + $0x5c] sm:$0xf]
        %v5001 = vld [vmem:[#allocation5 + $0x60] sm:$0xf]
        %v5002 = vld [vmem:[#allocation5 + $0x64] sm:$0xf]
        %v5003 = vld [vmem:[#allocation5 + $0x68] sm:$0xf]
        %v5004 = vld [vmem:[#allocation5 + $0x6c] sm:$0xf]
        %v5005 = vld [vmem:[#allocation5 + $0x70] sm:$0xf]
        %v5006 = vld [vmem:[#allocation5 + $0x74] sm:$0xf]
        %v5007 = vld [vmem:[#allocation5 + $0x78] sm:$0xf]
        %v5008 = vld [vmem:[#allocation5 + $0x7c] sm:$0xf]
        %v5041 = vunpack.c.l.b16 %v4977
        %v5042 = vunpack.c.l.b16 %v4978
        %v5043 = vunpack.c.l.b16 %v4979
        %v5044 = vunpack.c.l.b16 %v4980
        %v5045 = vunpack.c.l.b16 %v4981
        %v5046 = vunpack.c.l.b16 %v4982
        %v5047 = vunpack.c.l.b16 %v4983
        %v5048 = vunpack.c.l.b16 %v4984
        %v5049 = vunpack.c.l.b16 %v4985
        %v5050 = vunpack.c.l.b16 %v4986
        %v5051 = vunpack.c.l.b16 %v4987
        %v5052 = vunpack.c.l.b16 %v4988
        %v5053 = vunpack.c.l.b16 %v4989
        %v5054 = vunpack.c.l.b16 %v4990
        %v5055 = vunpack.c.l.b16 %v4991
        %v5056 = vunpack.c.l.b16 %v4992
        %v5057 = vunpack.c.l.b16 %v4993
        %v5058 = vunpack.c.l.b16 %v4994
        %v5059 = vunpack.c.l.b16 %v4995
        %v5060 = vunpack.c.l.b16 %v4996
        %v5061 = vunpack.c.l.b16 %v4997
        %v5062 = vunpack.c.l.b16 %v4998
        %v5063 = vunpack.c.l.b16 %v4999
        %v5064 = vunpack.c.l.b16 %v5000
        %v5065 = vunpack.c.l.b16 %v5001
        %v5066 = vunpack.c.l.b16 %v5002
        %v5067 = vunpack.c.l.b16 %v5003
        %v5068 = vunpack.c.l.b16 %v5004
        %v5069 = vunpack.c.l.b16 %v5005
        %v5070 = vunpack.c.l.b16 %v5006
        %v5071 = vunpack.c.l.b16 %v5007
        %v5072 = vunpack.c.l.b16 %v5008
        %v5073 = vpack.c.b16 %v5042, %v5041
        %v5074 = vpack.c.b16 %v5044, %v5043
        %v5075 = vpack.c.b16 %v5046, %v5045
        %v5076 = vpack.c.b16 %v5048, %v5047
        %v5077 = vpack.c.b16 %v5050, %v5049
        %v5078 = vpack.c.b16 %v5052, %v5051
        %v5079 = vpack.c.b16 %v5054, %v5053
        %v5080 = vpack.c.b16 %v5056, %v5055
        %v5081 = vpack.c.b16 %v5058, %v5057
        %v5082 = vpack.c.b16 %v5060, %v5059
        %v5083 = vpack.c.b16 %v5062, %v5061
        %v5084 = vpack.c.b16 %v5064, %v5063
        %v5085 = vpack.c.b16 %v5066, %v5065
        %v5086 = vpack.c.b16 %v5068, %v5067
        %v5087 = vpack.c.b16 %v5070, %v5069
        %v5088 = vpack.c.b16 %v5072, %v5071
        %5105 = vmatprep.subr.bf16.mxu0 0
        %5106 = vmatpush1.bf16.msra.mxu0 %v5080
        %5107 = vmatprep.subr.bf16.mxu0 0
        %5108 = vmatpush1.bf16.msra.mxu0 %v5079
        %5109 = vmatprep.subr.bf16.mxu0 0
        %5110 = vmatpush1.bf16.msra.mxu0 %v5078
        %5111 = vmatprep.subr.bf16.mxu0 0
        %5112 = vmatpush1.bf16.msra.mxu0 %v5077
        %5113 = vmatprep.subr.bf16.mxu0 0
        %5114 = vmatpush1.bf16.msra.mxu0 %v5076
        %5115 = vmatprep.subr.bf16.mxu0 0
        %5116 = vmatpush1.bf16.msra.mxu0 %v5075
        %5117 = vmatprep.subr.bf16.mxu0 0
        %5118 = vmatpush1.bf16.msra.mxu0 %v5074
        %5119 = vmatprep.subr.bf16.mxu0 0
        %5120 = vmatpush1.bf16.msra.mxu0 %v5073
        %5121 = vmatprep.subr.bf16.mxu0 0
        %5122 = vmatpush2.bf16.msra.mxu0 %v5088
        %5123 = vmatprep.subr.bf16.mxu0 0
        %5124 = vmatpush2.bf16.msra.mxu0 %v5087
        %5125 = vmatprep.subr.bf16.mxu0 0
        %5126 = vmatpush2.bf16.msra.mxu0 %v5086
        %5127 = vmatprep.subr.bf16.mxu0 0
        %5128 = vmatpush2.bf16.msra.mxu0 %v5085
        %5129 = vmatprep.subr.bf16.mxu0 0
        %5130 = vmatpush2.bf16.msra.mxu0 %v5084
        %5131 = vmatprep.subr.bf16.mxu0 0
        %5132 = vmatpush2.bf16.msra.mxu0 %v5083
        %5133 = vmatprep.subr.bf16.mxu0 0
        %5134 = vmatpush2.bf16.msra.mxu0 %v5082
        %5135 = vmatprep.subr.bf16.mxu0 0
        %5136 = vmatpush2.bf16.msra.mxu0 %v5081
        %5137 = vmatprep.mubr.bf16.mxu0 %v4663
        %5138 = vmatmul.mubr.bf16.gmra.mxu0 %v4660
        %v5139 = vpop.f32.mrf.mxu0
        %v5140 = vadd.f32 0.0, %v5139
        %v5141 = vpop.f32.mrf.mxu0
        %v5142 = vpop.f32.mrf.mxu0
        %v5143 = vadd.f32 0.0, %v5142
        %v5144 = vpop.f32.mrf.mxu0
        %5145 = vmatprep.mubr.bf16.mxu0 %v4666
        %5146 = vmatmul.mubr.bf16.gmra.mxu0 %v4663
        %v5147 = vpop.f32.mrf.mxu0
        %v5148 = vadd.f32 0.0, %v5147
        %v5149 = vpop.f32.mrf.mxu0
        %v5150 = vpop.f32.mrf.mxu0
        %v5151 = vadd.f32 0.0, %v5150
        %v5152 = vpop.f32.mrf.mxu0
        %5153 = vmatprep.mubr.bf16.mxu0 %v4669
        %5154 = vmatmul.mubr.bf16.gmra.mxu0 %v4666
        %v5155 = vpop.f32.mrf.mxu0
        %v5156 = vadd.f32 0.0, %v5155
        %v5157 = vpop.f32.mrf.mxu0
        %v5158 = vpop.f32.mrf.mxu0
        %v5159 = vadd.f32 0.0, %v5158
        %v5160 = vpop.f32.mrf.mxu0
        %5161 = vmatprep.mubr.bf16.mxu0 %v4672
        %5162 = vmatmul.mubr.bf16.gmra.mxu0 %v4669
        %v5163 = vpop.f32.mrf.mxu0
        %v5164 = vadd.f32 0.0, %v5163
        %v5165 = vpop.f32.mrf.mxu0
        %v5166 = vpop.f32.mrf.mxu0
        %v5167 = vadd.f32 0.0, %v5166
        %v5168 = vpop.f32.mrf.mxu0
        %5169 = vmatprep.mubr.bf16.mxu0 %v4675
        %5170 = vmatmul.mubr.bf16.gmra.mxu0 %v4672
        %v5171 = vpop.f32.mrf.mxu0
        %v5172 = vadd.f32 0.0, %v5171
        %v5173 = vpop.f32.mrf.mxu0
        %v5174 = vpop.f32.mrf.mxu0
        %v5175 = vadd.f32 0.0, %v5174
        %v5176 = vpop.f32.mrf.mxu0
        %5177 = vmatprep.mubr.bf16.mxu0 %v4678
        %5178 = vmatmul.mubr.bf16.gmra.mxu0 %v4675
        %v5179 = vpop.f32.mrf.mxu0
        %v5180 = vadd.f32 0.0, %v5179
        %v5181 = vpop.f32.mrf.mxu0
        %v5182 = vpop.f32.mrf.mxu0
        %v5183 = vadd.f32 0.0, %v5182
        %v5184 = vpop.f32.mrf.mxu0
        %5185 = vmatprep.mubr.bf16.mxu0 %v4681
        %5186 = vmatmul.mubr.bf16.gmra.mxu0 %v4678
        %v5187 = vpop.f32.mrf.mxu0
        %v5188 = vadd.f32 0.0, %v5187
        %v5189 = vpop.f32.mrf.mxu0
        %v5190 = vpop.f32.mrf.mxu0
        %v5191 = vadd.f32 0.0, %v5190
        %v5192 = vpop.f32.mrf.mxu0
        %5193 = vmatprep.mubr.bf16.mxu0 %v4684
        %5194 = vmatmul.mubr.bf16.gmra.mxu0 %v4681
        %v5195 = vpop.f32.mrf.mxu0
        %v5196 = vadd.f32 0.0, %v5195
        %v5197 = vpop.f32.mrf.mxu0
        %v5198 = vpop.f32.mrf.mxu0
        %v5199 = vadd.f32 0.0, %v5198
        %v5200 = vpop.f32.mrf.mxu0
        %5201 = vmatprep.mubr.bf16.mxu0 %v4687
        %5202 = vmatmul.mubr.bf16.gmra.mxu0 %v4684
        %v5203 = vpop.f32.mrf.mxu0
        %v5204 = vadd.f32 0.0, %v5203
        %v5205 = vpop.f32.mrf.mxu0
        %v5206 = vpop.f32.mrf.mxu0
        %v5207 = vadd.f32 0.0, %v5206
        %v5208 = vpop.f32.mrf.mxu0
        %5209 = vmatprep.mubr.bf16.mxu0 %v4690
        %5210 = vmatmul.mubr.bf16.gmra.mxu0 %v4687
        %v5211 = vpop.f32.mrf.mxu0
        %v5212 = vadd.f32 0.0, %v5211
        %v5213 = vpop.f32.mrf.mxu0
        %v5214 = vpop.f32.mrf.mxu0
        %v5215 = vadd.f32 0.0, %v5214
        %v5216 = vpop.f32.mrf.mxu0
        %5217 = vmatprep.mubr.bf16.mxu0 %v4693
        %5218 = vmatmul.mubr.bf16.gmra.mxu0 %v4690
        %v5219 = vpop.f32.mrf.mxu0
        %v5220 = vadd.f32 0.0, %v5219
        %v5221 = vpop.f32.mrf.mxu0
        %v5222 = vpop.f32.mrf.mxu0
        %v5223 = vadd.f32 0.0, %v5222
        %v5224 = vpop.f32.mrf.mxu0
        %5225 = vmatprep.mubr.bf16.mxu0 %v4696
        %5226 = vmatmul.mubr.bf16.gmra.mxu0 %v4693
        %v5227 = vpop.f32.mrf.mxu0
        %v5228 = vadd.f32 0.0, %v5227
        %v5229 = vpop.f32.mrf.mxu0
        %v5230 = vpop.f32.mrf.mxu0
        %v5231 = vadd.f32 0.0, %v5230
        %v5232 = vpop.f32.mrf.mxu0
        %5233 = vmatprep.mubr.bf16.mxu0 %v4699
        %5234 = vmatmul.mubr.bf16.gmra.mxu0 %v4696
        %v5235 = vpop.f32.mrf.mxu0
        %v5236 = vadd.f32 0.0, %v5235
        %v5237 = vpop.f32.mrf.mxu0
        %v5238 = vpop.f32.mrf.mxu0
        %v5239 = vadd.f32 0.0, %v5238
        %v5240 = vpop.f32.mrf.mxu0
        %5241 = vmatprep.mubr.bf16.mxu0 %v4702
        %5242 = vmatmul.mubr.bf16.gmra.mxu0 %v4699
        %v5243 = vpop.f32.mrf.mxu0
        %v5244 = vadd.f32 0.0, %v5243
        %v5245 = vpop.f32.mrf.mxu0
        %v5246 = vpop.f32.mrf.mxu0
        %v5247 = vadd.f32 0.0, %v5246
        %v5248 = vpop.f32.mrf.mxu0
        %5249 = vmatprep.mubr.bf16.mxu0 %v4705
        %5250 = vmatmul.mubr.bf16.gmra.mxu0 %v4702
        %v5251 = vpop.f32.mrf.mxu0
        %v5252 = vadd.f32 0.0, %v5251
        %v5253 = vpop.f32.mrf.mxu0
        %v5254 = vpop.f32.mrf.mxu0
        %v5255 = vadd.f32 0.0, %v5254
        %v5256 = vpop.f32.mrf.mxu0
        %5257 = vmatprep.mubr.bf16.mxu0 %v4975
        %5258 = vmatmul.mubr.bf16.gmra.mxu0 %v4705
        %v5259 = vpop.f32.mrf.mxu0
        %v5260 = vadd.f32 0.0, %v5259
        %v5261 = vpop.f32.mrf.mxu0
        %v5262 = vpop.f32.mrf.mxu0
        %v5263 = vadd.f32 0.0, %v5262
        %v5264 = vpop.f32.mrf.mxu0
        %5265 = vdwg.mxu0
        %v5266 = vadd.f32 %v5140, %v4936
        %v5267 = vadd.f32 %v5143, %v4936
        %v5268 = vadd.f32 %v5148, %v4936
        %v5269 = vadd.f32 %v5151, %v4936
        %v5270 = vadd.f32 %v5156, %v4936
        %v5271 = vadd.f32 %v5159, %v4936
        %v5272 = vadd.f32 %v5164, %v4936
        %v5273 = vadd.f32 %v5167, %v4936
        %v5274 = vadd.f32 %v5172, %v4936
        %v5275 = vadd.f32 %v5175, %v4936
        %v5276 = vadd.f32 %v5180, %v4936
        %v5277 = vadd.f32 %v5183, %v4936
        %v5278 = vadd.f32 %v5188, %v4936
        %v5279 = vadd.f32 %v5191, %v4936
        %v5280 = vadd.f32 %v5196, %v4936
        %v5281 = vadd.f32 %v5199, %v4936
        %v5282 = vadd.f32 %v5204, %v4936
        %v5283 = vadd.f32 %v5207, %v4936
        %v5284 = vadd.f32 %v5212, %v4936
        %v5285 = vadd.f32 %v5215, %v4936
        %v5286 = vadd.f32 %v5220, %v4936
        %v5287 = vadd.f32 %v5223, %v4936
        %v5288 = vadd.f32 %v5228, %v4936
        %v5289 = vadd.f32 %v5231, %v4936
        %v5290 = vadd.f32 %v5236, %v4936
        %v5291 = vadd.f32 %v5239, %v4936
        %v5292 = vadd.f32 %v5244, %v4936
        %v5293 = vadd.f32 %v5247, %v4936
        %v5294 = vadd.f32 %v5252, %v4936
        %v5295 = vadd.f32 %v5255, %v4936
        %v5296 = vadd.f32 %v5260, %v4936
        %v5297 = vadd.f32 %v5263, %v4936
        %5298 = vst [vmem:[%s420] sm:$0xff] %v4938
        %5299 = vst [vmem:[%s420 + $0x8] sm:$0xff] %v4939
        %5300 = vst [vmem:[%s420 + $0x10] sm:$0xff] %v5266
        %5301 = vst [vmem:[%s420 + $0x18] sm:$0xff] %v5267
        %5302 = vst [vmem:[%s420 + $0x20] sm:$0xff] %v4940
        %5303 = vst [vmem:[%s420 + $0x28] sm:$0xff] %v4941
        %5304 = vst [vmem:[%s420 + $0x30] sm:$0xff] %v5268
        %5305 = vst [vmem:[%s420 + $0x38] sm:$0xff] %v5269
        %5306 = vst [vmem:[%s420 + $0x40] sm:$0xff] %v4942
        %5307 = vst [vmem:[%s420 + $0x48] sm:$0xff] %v4943
        %5308 = vst [vmem:[%s420 + $0x50] sm:$0xff] %v5270
        %5309 = vst [vmem:[%s420 + $0x58] sm:$0xff] %v5271
        %5310 = vst [vmem:[%s420 + $0x60] sm:$0xff] %v4944
        %5311 = vst [vmem:[%s420 + $0x68] sm:$0xff] %v4945
        %5312 = vst [vmem:[%s420 + $0x70] sm:$0xff] %v5272
        %5313 = vst [vmem:[%s420 + $0x78] sm:$0xff] %v5273
        %5314 = vst [vmem:[%s420 + $0x80] sm:$0xff] %v4946
        %5315 = vst [vmem:[%s420 + $0x88] sm:$0xff] %v4947
        %5316 = vst [vmem:[%s420 + $0x90] sm:$0xff] %v5274
        %5317 = vst [vmem:[%s420 + $0x98] sm:$0xff] %v5275
        %5318 = vst [vmem:[%s420 + $0xa0] sm:$0xff] %v4948
        %5319 = vst [vmem:[%s420 + $0xa8] sm:$0xff] %v4949
        %5320 = vst [vmem:[%s420 + $0xb0] sm:$0xff] %v5276
        %5321 = vst [vmem:[%s420 + $0xb8] sm:$0xff] %v5277
        %5322 = vst [vmem:[%s420 + $0xc0] sm:$0xff] %v4950
        %5323 = vst [vmem:[%s420 + $0xc8] sm:$0xff] %v4951
        %5324 = vst [vmem:[%s420 + $0xd0] sm:$0xff] %v5278
        %5325 = vst [vmem:[%s420 + $0xd8] sm:$0xff] %v5279
        %5326 = vst [vmem:[%s420 + $0xe0] sm:$0xff] %v4952
        %5327 = vst [vmem:[%s420 + $0xe8] sm:$0xff] %v4953
        %5328 = vst [vmem:[%s420 + $0xf0] sm:$0xff] %v5280
        %5329 = vst [vmem:[%s420 + $0xf8] sm:$0xff] %v5281
        %5330 = vst [vmem:[%s420 + $0x100] sm:$0xff] %v4954
        %5331 = vst [vmem:[%s420 + $0x108] sm:$0xff] %v4955
        %5332 = vst [vmem:[%s420 + $0x110] sm:$0xff] %v5282
        %5333 = vst [vmem:[%s420 + $0x118] sm:$0xff] %v5283
        %5334 = vst [vmem:[%s420 + $0x120] sm:$0xff] %v4956
        %5335 = vst [vmem:[%s420 + $0x128] sm:$0xff] %v4957
        %5336 = vst [vmem:[%s420 + $0x130] sm:$0xff] %v5284
        %5337 = vst [vmem:[%s420 + $0x138] sm:$0xff] %v5285
        %5338 = vst [vmem:[%s420 + $0x140] sm:$0xff] %v4958
        %5339 = vst [vmem:[%s420 + $0x148] sm:$0xff] %v4959
        %5340 = vst [vmem:[%s420 + $0x150] sm:$0xff] %v5286
        %5341 = vst [vmem:[%s420 + $0x158] sm:$0xff] %v5287
        %5342 = vst [vmem:[%s420 + $0x160] sm:$0xff] %v4960
        %5343 = vst [vmem:[%s420 + $0x168] sm:$0xff] %v4961
        %5344 = vst [vmem:[%s420 + $0x170] sm:$0xff] %v5288
        %5345 = vst [vmem:[%s420 + $0x178] sm:$0xff] %v5289
        %5346 = vst [vmem:[%s420 + $0x180] sm:$0xff] %v4962
        %5347 = vst [vmem:[%s420 + $0x188] sm:$0xff] %v4963
        %5348 = vst [vmem:[%s420 + $0x190] sm:$0xff] %v5290
        %5349 = vst [vmem:[%s420 + $0x198] sm:$0xff] %v5291
        %5350 = vst [vmem:[%s420 + $0x1a0] sm:$0xff] %v4964
        %5351 = vst [vmem:[%s420 + $0x1a8] sm:$0xff] %v4965
        %5352 = vst [vmem:[%s420 + $0x1b0] sm:$0xff] %v5292
        %5353 = vst [vmem:[%s420 + $0x1b8] sm:$0xff] %v5293
        %5354 = vst [vmem:[%s420 + $0x1c0] sm:$0xff] %v4966
        %5355 = vst [vmem:[%s420 + $0x1c8] sm:$0xff] %v4967
        %5356 = vst [vmem:[%s420 + $0x1d0] sm:$0xff] %v5294
        %5357 = vst [vmem:[%s420 + $0x1d8] sm:$0xff] %v5295
        %5358 = vst [vmem:[%s420 + $0x1e0] sm:$0xff] %v4968
        %5359 = vst [vmem:[%s420 + $0x1e8] sm:$0xff] %v4969
        %5360 = vst [vmem:[%s420 + $0x1f0] sm:$0xff] %v5296
        %5361 = vst [vmem:[%s420 + $0x1f8] sm:$0xff] %v5297
        %p5362 = scmp.lt.s32.totalorder %s27, 1
        %s5363 = scalar_select %p5362, %s27, 1
        %s5364 = smul.addr %s5363, 64
        %s5365 = smul.addr %s5364, 8
        %s5366 = scalar_lea.vmem %s9, %s5365
        %s5367 = sand.u32 %s260, 1
        %s5368 = scalar_lea.sflag [#allocation4], %s5367
        %s5369 = sand.u32 %s260, 1
        %s5370 = smul.addr %s5369, 256
        %s5371 = scalar_lea.vmem [#allocation7], %s5370
        // Predicated region
        $region65: #{refine_up_forward.1} parent=55 // pred_check
          %p5372 = pneg %p244
        $region66: #{refine_up_forward.1} parent=55 // pred_check_branch
          %5374 = sbr.rel (%p5372) target = $region68
        $region67: #{refine_up_forward.1} parent=55 // pred_region
          _
        $region68: #{refine_up_forward.1} parent=55 // pred_fallthru
          _
        // Predicated region
        $region69: #{refine_up_forward.1} parent=55 // pred_check
          %p5375 = pneg %p270
        $region70: #{refine_up_forward.1} parent=55 // pred_check_branch
          %5377 = sbr.rel (%p5375) target = $region72
        $region71: #{refine_up_forward.1} parent=55 // pred_region
          %s5379 = ssub.s32 4096, 4096
          %5380 = vsyncadd %s5368, %s5379
          %s5381 = smul.addr %s27, 32
          %s5382 = smul.addr %s5381, 128
          %s5383 = scalar_lea.hbm %s10, %s5382
          %s5384 = sshll.u32 %s5371, 4
          %s5385 = int_to_ptr.vmem [resolvable:$true] %s5384
          %5390 = dma.vmem_to_hbm [thread:$0]  %s5385, 4096, %s5383, %s5368, 128, 128, 8
        $region72: #{refine_up_forward.1} parent=55 // pred_fallthru
          _
      $region56: #{refine_up_forward.1} parent=5 // pred_fallthru
        _
      %p5391 = scmp.le.s32.totalorder 2, %s22
      // Predicated region
      $region73: #{refine_up_forward.1} parent=5 // pred_check
        %p5392 = pneg %p5391
      $region74: #{refine_up_forward.1} parent=5 // pred_check_branch
        %5394 = sbr.rel (%p5392) target = $region76
      $region75: #{refine_up_forward.1} parent=5 // pred_region
        %s5395 = ssub.s32 %s22, 2
        // Predicated region
        $region77: #{refine_up_forward.1} parent=75 // pred_check
          %p5396 = pneg %p250
        $region78: #{refine_up_forward.1} parent=75 // pred_check_branch
          %5398 = sbr.rel (%p5396) target = $region80
        $region79: #{refine_up_forward.1} parent=75 // pred_region
          %p5399 = scmp.lt.s32.totalorder %s28, 1
          %s5400 = scalar_select %p5399, %s28, 1
          %s5401 = smul.addr %s5400, 64
          %s5402 = smul.addr %s5401, 8
          %s5403 = scalar_lea.vmem %s9, %s5402
        $region80: #{refine_up_forward.1} parent=75 // pred_fallthru
          _
        // Predicated region
        $region81: #{refine_up_forward.1} parent=75 // pred_check
          %p5404 = pneg %p276
        $region82: #{refine_up_forward.1} parent=75 // pred_check_branch
          %5406 = sbr.rel (%p5404) target = $region84
        $region83: #{refine_up_forward.1} parent=75 // pred_region
          %s5407 = sand.u32 %s261, 1
          %s5408 = scalar_lea.sflag [#allocation4], %s5407
          %s5409 = sand.u32 %s261, 1
          %s5410 = smul.addr %s5409, 256
          %s5411 = scalar_lea.vmem [#allocation7], %s5410
          %5412 = dma.done %s5408, 4096
        $region84: #{refine_up_forward.1} parent=75 // pred_fallthru
          _
      $region76: #{refine_up_forward.1} parent=5 // pred_fallthru
        _
    $region6: #{refine_up_forward.1} parent=1 // loop_footer
      %s26 = sadd.s32 1, %s22
    $region7: #{refine_up_forward.1} parent=1 // loop_footer_branch
      %21 = sbr.rel target = $region3
    $region8: #{refine_up_forward.1} parent=1 // loop_exit
      _
    %5413 = vsyncpa [#allocation3], 1
    %s5414 = scalar_lea.sflag [#allocation3], 1
    %5415 = vsyncpa %s5414, 1
    %5416 = vsyncpa [#allocation6], 1
    %5417 = vsyncpa [#allocation4], 1
    %s5418 = scalar_lea.sflag [#allocation4], 1
    %5419 = vsyncpa %s5418, 1

</llo_original>
